<compile_context>
chip_gen: v7x
topology: tpu7x:2x2x1
jax: 0.10.0
libtpu: 0.0.40
codegen_flags: <defaults>
</compile_context>

<pallas_src>
import functools

import jax
import jax.numpy as jnp
from jax.experimental import pallas as pl
from jax.experimental.pallas import tpu as pltpu


def _round_up(x, m):
    return (x + m - 1) // m * m


def _generator_kernel(x_ref, w1_ref, b1_ref, w2_ref, b2_ref, o_ref):
    # Linear(img_dim -> 128), f32 accumulation on the MXU.
    h = jnp.dot(x_ref[...], w1_ref[...], preferred_element_type=jnp.float32)
    h = h + b1_ref[...]                       # (tb, Hp) + (1, Hp) broadcast
    # LeakyReLU(negative_slope=0.1): one vmul + one vmax per vreg.
    h = jnp.maximum(h, 0.1 * h)
    # Linear(128 -> img_dim). Cast h to the weight dtype (no-op for f32,
    # enables the optional bf16 MXU path) while keeping f32 accumulation.
    y = jnp.dot(h.astype(w2_ref.dtype), w2_ref[...],
                preferred_element_type=jnp.float32)
    y = y + b2_ref[...]                       # (tb, Dp) + (1, Dp) broadcast
    # Tanh
    o_ref[...] = jnp.tanh(y).astype(o_ref.dtype)


@functools.partial(jax.jit, static_argnames=("block_b", "use_bf16"))
def generator_forward(x, w1, b1, w2, b2, *, block_b=256, use_bf16=False):
    """x: (B, img_dim). w1: (img_dim, H), b1: (1, H), w2: (H, img_dim), b2: (1, img_dim).

    Returns (B, img_dim) in x.dtype. Handles arbitrary B and non-128-multiple
    img_dim by zero-padding (padding contributes exactly zero to the result).
    """
    B, D = x.shape
    H = w1.shape[1]
    out_dtype = x.dtype

    # ---- lane-align the feature dims (e.g. 784 -> 896) ----
    Dp = _round_up(D, 128)
    Hp = _round_up(H, 128)

    # ---- choose the batch tile ----
    tb = min(int(block_b), _round_up(B, 8))
    tb = max(8, _round_up(tb, 8))
    # VMEM budget: weights + 2x double-buffered (x tile + out tile) under ~24 MiB
    # (conservative for v7x's 64 MiB VMEM / 32 MiB scoped default).
    weight_bytes = 4 * (Dp * Hp + Hp + Hp * Dp + Dp)
    budget = 24 * 1024 * 1024
    max_tb = max(8, ((budget - weight_bytes) // (16 * Dp)) // 8 * 8)
    tb = min(tb, max_tb)
    Bp = _round_up(B, tb)
    # Keep at least 2 parallel grid tiles when the batch allows it (v7x: 2 TCs).
    if Bp // tb < 2 and B >= 16:
        tb = max(8, _round_up(pl.cdiv(B, 2), 8))
        Bp = _round_up(B, tb)

    # ---- zero-pad operands (no-ops when already aligned) ----
    xp = jnp.pad(x, ((0, Bp - B), (0, Dp - D)))
    w1p = jnp.pad(w1, ((0, Dp - D), (0, Hp - H)))
    b1p = jnp.pad(b1, ((0, 0), (0, Hp - H)))
    w2p = jnp.pad(w2, ((0, Hp - H), (0, Dp - D)))
    b2p = jnp.pad(b2, ((0, 0), (0, Dp - D)))

    if use_bf16:
        # bf16 MXU inputs, f32 accumulation (biases / epilogue stay f32).
        xp = xp.astype(jnp.bfloat16)
        w1p = w1p.astype(jnp.bfloat16)
        w2p = w2p.astype(jnp.bfloat16)

    grid = (Bp // tb,)
    out_padded = pl.pallas_call(
        _generator_kernel,
        out_shape=jax.ShapeDtypeStruct((Bp, Dp), out_dtype),
        grid_spec=pltpu.PrefetchScalarGridSpec(
            num_scalar_prefetch=0,
            grid=grid,
            in_specs=[
                pl.BlockSpec((tb, Dp), lambda i: (i, 0)),   # x tile
                # Grid-invariant weights/biases: constant index_map, so the
                # pipeline fetches them once and does not re-DMA per step.
                pl.BlockSpec((Dp, Hp), lambda i: (0, 0)),   # W1 (in, out)
                pl.BlockSpec((1, Hp), lambda i: (0, 0)),    # b1
                pl.BlockSpec((Hp, Dp), lambda i: (0, 0)),   # W2 (in, out)
                pl.BlockSpec((1, Dp), lambda i: (0, 0)),    # b2
            ],
            out_specs=pl.BlockSpec((tb, Dp), lambda i: (i, 0)),
        ),
        compiler_params=pltpu.CompilerParams(
            dimension_semantics=("parallel",),
        ),
    )(xp, w1p, b1p, w2p, b2p)

    return out_padded[:B, :D]


def init_generator_params(key, img_dim, hidden=128, dtype=jnp.float32):
    """Deterministic PyTorch-style (uniform +/- 1/sqrt(fan_in)) init.

    Returns weights pre-transposed to (in_features, out_features)."""
    k1, k2, k3, k4 = jax.random.split(key, 4)
    bound1 = 1.0 / jnp.sqrt(img_dim)
    bound2 = 1.0 / jnp.sqrt(hidden)
    w1 = jax.random.uniform(k1, (img_dim, hidden), dtype, -bound1, bound1)
    b1 = jax.random.uniform(k2, (1, hidden), dtype, -bound1, bound1)
    w2 = jax.random.uniform(k3, (hidden, img_dim), dtype, -bound2, bound2)
    b2 = jax.random.uniform(k4, (1, img_dim), dtype, -bound2, bound2)
    return w1, b1, w2, b2


def generator_reference(x, w1, b1, w2, b2):
    h = x @ w1 + b1
    h = jnp.where(h > 0, h, 0.1 * h)
    return jnp.tanh(h @ w2 + b2)


if __name__ == "__main__":
    key = jax.random.PRNGKey(0)

    # MNIST-like shapes: img_dim = 28*28 = 784 (not lane-aligned -> exercises
    # the 784 -> 896 padding path); batch = 512 -> two 256-row parallel tiles.
    batch, img_dim = 512, 784

    kx, kp = jax.random.split(key)
    x = jax.random.normal(kx, (batch, img_dim), jnp.float32)
    w1, b1, w2, b2 = init_generator_params(kp, img_dim)

    out = generator_forward(x, w1, b1, w2, b2)
    out = jax.block_until_ready(out)

    ref = generator_reference(x, w1, b1, w2, b2)
    assert out.shape == (batch, img_dim)
    assert jnp.allclose(out, ref, atol=1e-5, rtol=1e-5), "mismatch vs reference"

    # Ragged-batch path (no divisibility requirement on B).
    xr = jax.random.normal(kx, (37, img_dim), jnp.float32)
    out_r = jax.block_until_ready(generator_forward(xr, w1, b1, w2, b2))
    ref_r = generator_reference(xr, w1, b1, w2, b2)
    assert out_r.shape == (37, img_dim)
    assert jnp.allclose(out_r, ref_r, atol=1e-5, rtol=1e-5), "ragged mismatch"

    print("KERNEL_OK")
</pallas_src>

<mosaic_0001>
module attributes {stable_mosaic.version = 11 : i64} {
  func.func @_generator_kernel(%arg0: i32, %arg1: memref<256x896xf32, #tpu.memory_space<vmem>>, %arg2: memref<896x128xf32, #tpu.memory_space<vmem>>, %arg3: memref<1x128xf32, #tpu.memory_space<vmem>>, %arg4: memref<128x896xf32, #tpu.memory_space<vmem>>, %arg5: memref<1x896xf32, #tpu.memory_space<vmem>>, %arg6: memref<256x896xf32, #tpu.memory_space<vmem>>) attributes {dimension_semantics = [#tpu.dimension_semantics<parallel>], iteration_bounds = array<i64: 2>, scalar_prefetch = 0 : i64, scratch_operands = 0 : i64, tpu.core_type = #tpu.core_type<tc>, window_params = [{transform_indices = @transform_0, window_bounds = array<i64: 256, 896>}, {pipeline_mode = #tpu.pipeline_mode<synchronous>, transform_indices = @transform_1, window_bounds = array<i64: 896, 128>}, {pipeline_mode = #tpu.pipeline_mode<synchronous>, transform_indices = @transform_2, window_bounds = array<i64: 1, 128>}, {pipeline_mode = #tpu.pipeline_mode<synchronous>, transform_indices = @transform_3, window_bounds = array<i64: 128, 896>}, {pipeline_mode = #tpu.pipeline_mode<synchronous>, transform_indices = @transform_4, window_bounds = array<i64: 1, 896>}, {transform_indices = @transform_5, window_bounds = array<i64: 256, 896>}]} {
    %c0 = arith.constant 0 : index
    %c0_0 = arith.constant 0 : index
    %0 = vector.load %arg1[%c0, %c0_0] : memref<256x896xf32, #tpu.memory_space<vmem>>, vector<256x896xf32>
    %c0_1 = arith.constant 0 : index
    %c0_2 = arith.constant 0 : index
    %1 = vector.load %arg2[%c0_1, %c0_2] : memref<896x128xf32, #tpu.memory_space<vmem>>, vector<896x128xf32>
    %cst = arith.constant dense<0.000000e+00> : vector<256x128xf32>
    %2 = tpu.matmul %0, %1, %cst {dimension_numbers = #tpu.dot_dimension_numbers<[1], [0], [0], [1], [0, 0, 1, 1], [], []>} : vector<256x896xf32>, vector<896x128xf32>, vector<256x128xf32> -> vector<256x128xf32>
    %c0_3 = arith.constant 0 : index
    %c0_4 = arith.constant 0 : index
    %3 = vector.load %arg3[%c0_3, %c0_4] : memref<1x128xf32, #tpu.memory_space<vmem>>, vector<1x128xf32>
    %4 = vector.broadcast %3 : vector<1x128xf32> to vector<256x128xf32>
    %5 = arith.addf %2, %4 : vector<256x128xf32>
    %cst_5 = arith.constant 1.000000e-01 : f32
    %6 = vector.broadcast %cst_5 : f32 to vector<256x128xf32>
    %7 = arith.mulf %6, %5 : vector<256x128xf32>
    %8 = arith.maximumf %5, %7 : vector<256x128xf32>
    %c0_6 = arith.constant 0 : index
    %c0_7 = arith.constant 0 : index
    %9 = vector.load %arg4[%c0_6, %c0_7] : memref<128x896xf32, #tpu.memory_space<vmem>>, vector<128x896xf32>
    %cst_8 = arith.constant dense<0.000000e+00> : vector<256x896xf32>
    %10 = tpu.matmul %8, %9, %cst_8 {dimension_numbers = #tpu.dot_dimension_numbers<[1], [0], [0], [1], [0, 0, 1, 1], [], []>} : vector<256x128xf32>, vector<128x896xf32>, vector<256x896xf32> -> vector<256x896xf32>
    %c0_9 = arith.constant 0 : index
    %c0_10 = arith.constant 0 : index
    %11 = vector.load %arg5[%c0_9, %c0_10] : memref<1x896xf32, #tpu.memory_space<vmem>>, vector<1x896xf32>
    %12 = vector.broadcast %11 : vector<1x896xf32> to vector<256x896xf32>
    %13 = arith.addf %10, %12 : vector<256x896xf32>
    %14 = math.tanh %13 : vector<256x896xf32>
    %c0_11 = arith.constant 0 : index
    %c0_12 = arith.constant 0 : index
    %15 = vector.load %arg6[%c0_11, %c0_12] : memref<256x896xf32, #tpu.memory_space<vmem>>, vector<256x896xf32>
    tpu.vector_store %arg6[%c0_11, %c0_12], %14 {strides = array<i32>} : memref<256x896xf32, #tpu.memory_space<vmem>>, vector<256x896xf32>,
    return
  }
  func.func @transform_0(%arg0: i32) -> (i32, i32) {
    %c0_i32 = arith.constant 0 : i32
    %c0_i32_0 = arith.constant 0 : i32
    return %arg0, %c0_i32 : i32, i32
  }
  func.func @transform_1(%arg0: i32) -> (i32, i32) {
    %c0_i32 = arith.constant 0 : i32
    %c0_i32_0 = arith.constant 0 : i32
    %c0_i32_1 = arith.constant 0 : i32
    return %c0_i32, %c0_i32_0 : i32, i32
  }
  func.func @transform_2(%arg0: i32) -> (i32, i32) {
    %c0_i32 = arith.constant 0 : i32
    %c0_i32_0 = arith.constant 0 : i32
    %c0_i32_1 = arith.constant 0 : i32
    return %c0_i32, %c0_i32_0 : i32, i32
  }
  func.func @transform_3(%arg0: i32) -> (i32, i32) {
    %c0_i32 = arith.constant 0 : i32
    %c0_i32_0 = arith.constant 0 : i32
    %c0_i32_1 = arith.constant 0 : i32
    return %c0_i32, %c0_i32_0 : i32, i32
  }
  func.func @transform_4(%arg0: i32) -> (i32, i32) {
    %c0_i32 = arith.constant 0 : i32
    %c0_i32_0 = arith.constant 0 : i32
    %c0_i32_1 = arith.constant 0 : i32
    return %c0_i32, %c0_i32_0 : i32, i32
  }
  func.func @transform_5(%arg0: i32) -> (i32, i32) {
    %c0_i32 = arith.constant 0 : i32
    %c0_i32_0 = arith.constant 0 : i32
    return %arg0, %c0_i32 : i32, i32
  }
}

</mosaic_0001>

<llo_original>
// kernel: generator_forward.1
$region0: #{generator_forward.1}
  #allocation0 [shape = 'u32[]', space=smem, size = 0x4, offset = 0x4, fixed_abs, tag = 'smem constant byte address 0x4 - core index']
  #allocation1 [shape = 'u32[144,128]{1,0:T(1,128)}', space=vmem, size = 0x12000, scoped, tag = 'internal scratch']
  %s0 = inlined_call_operand.vmem [shape: f32[512,896], index: 0, kind: input, shape index: {}]
  %s1 = inlined_call_operand.vmem [shape: f32[896,128], index: 1, kind: input, shape index: {}]
  %s2 = inlined_call_operand.vmem [shape: f32[1,128], index: 2, kind: input, shape index: {}]
  %s3 = inlined_call_operand.vmem [shape: f32[128,896], index: 3, kind: input, shape index: {}]
  %s4 = inlined_call_operand.vmem [shape: f32[1,896], index: 4, kind: input, shape index: {}]
  %s5 = inlined_call_operand.vmem [shape: f32[512,896], index: 5, kind: output, shape index: {}]
  %s6 = sld [smem:[#allocation0]]
  $region53: #{generator_forward.1} parent=0
    _
  %s8 = ssub.s32 1, %s6
  %s9 = scalar_select 0, %s8, %s6
  loop: start=0, step=1, limit=4
  $region2: #{generator_forward.1} parent=0 // loop_pre_header
    _
  $region3: #{generator_forward.1} parent=0 // loop_header
    %s11 = sphi 0, %s15
    %p12 = scmp.ge.s32.totalorder %s11, 4
    %s21 = sphi 0, %s23
    %s24 = sphi 0, %s21
    %s25 = sphi 0, %s24
    %s41 = sphi 0, %s25
    %s45 = sphi 0, %s45
    %s47 = sphi 0, %s45
    %s48 = sphi 0, %s47
    %s62 = sphi 0, %s48
    %s66 = sphi 0, %s66
    %s68 = sphi 0, %s66
    %s69 = sphi 0, %s68
    %s83 = sphi 0, %s69
    %s87 = sphi 0, %s87
    %s89 = sphi 0, %s87
    %s90 = sphi 0, %s89
    %s104 = sphi 0, %s90
    %s108 = sphi 0, %s108
    %s110 = sphi 0, %s108
    %s111 = sphi 0, %s110
    %s125 = sphi 0, %s111
    %s131 = sphi 0, %s133
    %s134 = sphi 0, %s131
    %s135 = sphi 0, %s134
    %s151 = sphi 0, %s135
  $region4: #{generator_forward.1} parent=0 // loop_header_branch
    %14 = sbr.rel (%p12) target = $region8
  $region5: #{generator_forward.1} parent=0 // loop_body
    %s16 = ssub.s32 %s11, 1
    %s17 = ssub.s32 %s11, 2
    %s18 = sadd.s32 %s11, 1
    %s19 = ssub.s32 %s11, %s18
    %p20 = scmp.eq.s32.totalorder %s19, 0
    %s22 = sadd.s32 %s21, 1
    %s23 = scalar_select %p20, %s21, %s22
    %p26 = pneg %p20
    %p27 = scmp.eq.s32.totalorder %s11, 1
    %p28 = por %p26, %p27
    %p29 = scmp.ne.s32.totalorder %s21, %s24
    %p30 = scmp.eq.s32.totalorder %s11, 0
    %p31 = por %p29, %p30
    %p32 = scmp.ne.s32.totalorder %s21, %s24
    %p33 = scmp.eq.s32.totalorder %s16, 1
    %p34 = por %p32, %p33
    %p35 = scmp.ne.s32.totalorder %s24, %s25
    %p36 = scmp.eq.s32.totalorder %s16, 0
    %p37 = por %p35, %p36
    %p38 = scmp.ne.s32.totalorder %s24, %s25
    %p39 = scmp.eq.s32.totalorder %s17, 1
    %p40 = por %p38, %p39
    %p42 = scmp.ne.s32.totalorder %s25, %s41
    %p43 = scmp.eq.s32.totalorder %s17, 0
    %p44 = por %p42, %p43
    %s46 = sadd.s32 %s45, 1
    %p49 = scmp.eq.s32.totalorder %s11, 1
    %p50 = scmp.ne.s32.totalorder %s45, %s47
    %p51 = scmp.eq.s32.totalorder %s11, 0
    %p52 = por %p50, %p51
    %p53 = scmp.ne.s32.totalorder %s45, %s47
    %p54 = scmp.eq.s32.totalorder %s16, 1
    %p55 = por %p53, %p54
    %p56 = scmp.ne.s32.totalorder %s47, %s48
    %p57 = scmp.eq.s32.totalorder %s16, 0
    %p58 = por %p56, %p57
    %p59 = scmp.ne.s32.totalorder %s47, %s48
    %p60 = scmp.eq.s32.totalorder %s17, 1
    %p61 = por %p59, %p60
    %p63 = scmp.ne.s32.totalorder %s48, %s62
    %p64 = scmp.eq.s32.totalorder %s17, 0
    %p65 = por %p63, %p64
    %s67 = sadd.s32 %s66, 1
    %p70 = scmp.eq.s32.totalorder %s11, 1
    %p71 = scmp.ne.s32.totalorder %s66, %s68
    %p72 = scmp.eq.s32.totalorder %s11, 0
    %p73 = por %p71, %p72
    %p74 = scmp.ne.s32.totalorder %s66, %s68
    %p75 = scmp.eq.s32.totalorder %s16, 1
    %p76 = por %p74, %p75
    %p77 = scmp.ne.s32.totalorder %s68, %s69
    %p78 = scmp.eq.s32.totalorder %s16, 0
    %p79 = por %p77, %p78
    %p80 = scmp.ne.s32.totalorder %s68, %s69
    %p81 = scmp.eq.s32.totalorder %s17, 1
    %p82 = por %p80, %p81
    %p84 = scmp.ne.s32.totalorder %s69, %s83
    %p85 = scmp.eq.s32.totalorder %s17, 0
    %p86 = por %p84, %p85
    %s88 = sadd.s32 %s87, 1
    %p91 = scmp.eq.s32.totalorder %s11, 1
    %p92 = scmp.ne.s32.totalorder %s87, %s89
    %p93 = scmp.eq.s32.totalorder %s11, 0
    %p94 = por %p92, %p93
    %p95 = scmp.ne.s32.totalorder %s87, %s89
    %p96 = scmp.eq.s32.totalorder %s16, 1
    %p97 = por %p95, %p96
    %p98 = scmp.ne.s32.totalorder %s89, %s90
    %p99 = scmp.eq.s32.totalorder %s16, 0
    %p100 = por %p98, %p99
    %p101 = scmp.ne.s32.totalorder %s89, %s90
    %p102 = scmp.eq.s32.totalorder %s17, 1
    %p103 = por %p101, %p102
    %p105 = scmp.ne.s32.totalorder %s90, %s104
    %p106 = scmp.eq.s32.totalorder %s17, 0
    %p107 = por %p105, %p106
    %s109 = sadd.s32 %s108, 1
    %p112 = scmp.eq.s32.totalorder %s11, 1
    %p113 = scmp.ne.s32.totalorder %s108, %s110
    %p114 = scmp.eq.s32.totalorder %s11, 0
    %p115 = por %p113, %p114
    %p116 = scmp.ne.s32.totalorder %s108, %s110
    %p117 = scmp.eq.s32.totalorder %s16, 1
    %p118 = por %p116, %p117
    %p119 = scmp.ne.s32.totalorder %s110, %s111
    %p120 = scmp.eq.s32.totalorder %s16, 0
    %p121 = por %p119, %p120
    %p122 = scmp.ne.s32.totalorder %s110, %s111
    %p123 = scmp.eq.s32.totalorder %s17, 1
    %p124 = por %p122, %p123
    %p126 = scmp.ne.s32.totalorder %s111, %s125
    %p127 = scmp.eq.s32.totalorder %s17, 0
    %p128 = por %p126, %p127
    %s129 = ssub.s32 %s11, %s18
    %p130 = scmp.eq.s32.totalorder %s129, 0
    %s132 = sadd.s32 %s131, 1
    %s133 = scalar_select %p130, %s131, %s132
    %p136 = pneg %p130
    %p137 = scmp.eq.s32.totalorder %s11, 1
    %p138 = por %p136, %p137
    %p139 = scmp.ne.s32.totalorder %s131, %s134
    %p140 = scmp.eq.s32.totalorder %s11, 0
    %p141 = por %p139, %p140
    %p142 = scmp.ne.s32.totalorder %s131, %s134
    %p143 = scmp.eq.s32.totalorder %s16, 1
    %p144 = por %p142, %p143
    %p145 = scmp.ne.s32.totalorder %s134, %s135
    %p146 = scmp.eq.s32.totalorder %s16, 0
    %p147 = por %p145, %p146
    %p148 = scmp.ne.s32.totalorder %s134, %s135
    %p149 = scmp.eq.s32.totalorder %s17, 1
    %p150 = por %p148, %p149
    %p152 = scmp.ne.s32.totalorder %s135, %s151
    %p153 = scmp.eq.s32.totalorder %s17, 0
    %p154 = por %p152, %p153
    %p155 = scmp.le.s32.totalorder 1, %s11
    %p156 = scmp.lt.s32.totalorder %s11, 3
    %p157 = pnand %p155, %p156
    %p158 = pneg %p157
    // Predicated region
    $region9: #{generator_forward.1} parent=5 // pred_check
      _
    $region10: #{generator_forward.1} parent=5 // pred_check_branch
      %160 = sbr.rel (%p157) target = $region12
    $region11: #{generator_forward.1} parent=5 // pred_region
      %s161 = ssub.s32 %s11, 1
      // Predicated region
      $region13: #{generator_forward.1} parent=11 // pred_check
        %p162 = pneg %p58
      $region14: #{generator_forward.1} parent=11 // pred_check_branch
        %164 = sbr.rel (%p162) target = $region16
      $region15: #{generator_forward.1} parent=11 // pred_region
        _
      $region16: #{generator_forward.1} parent=11 // pred_fallthru
        _
      // Predicated region
      $region17: #{generator_forward.1} parent=11 // pred_check
        %p165 = pneg %p79
      $region18: #{generator_forward.1} parent=11 // pred_check_branch
        %167 = sbr.rel (%p165) target = $region20
      $region19: #{generator_forward.1} parent=11 // pred_region
        _
      $region20: #{generator_forward.1} parent=11 // pred_fallthru
        _
      // Predicated region
      $region21: #{generator_forward.1} parent=11 // pred_check
        %p168 = pneg %p100
      $region22: #{generator_forward.1} parent=11 // pred_check_branch
        %170 = sbr.rel (%p168) target = $region24
      $region23: #{generator_forward.1} parent=11 // pred_region
        _
      $region24: #{generator_forward.1} parent=11 // pred_fallthru
        _
      // Predicated region
      $region25: #{generator_forward.1} parent=11 // pred_check
        %p171 = pneg %p121
      $region26: #{generator_forward.1} parent=11 // pred_check_branch
        %173 = sbr.rel (%p171) target = $region28
      $region27: #{generator_forward.1} parent=11 // pred_region
        _
      $region28: #{generator_forward.1} parent=11 // pred_fallthru
        _
    $region12: #{generator_forward.1} parent=5 // pred_fallthru
      _
    %p174 = scmp.lt.s32.totalorder %s11, 2
    // Predicated region
    $region29: #{generator_forward.1} parent=5 // pred_check
      %p175 = pneg %p174
    $region30: #{generator_forward.1} parent=5 // pred_check_branch
      %177 = sbr.rel (%p175) target = $region32
    $region31: #{generator_forward.1} parent=5 // pred_region
      // Predicated region
      $region33: #{generator_forward.1} parent=31 // pred_check
        %p178 = pneg %p31
      $region34: #{generator_forward.1} parent=31 // pred_check_branch
        %180 = sbr.rel (%p178) target = $region36
      $region35: #{generator_forward.1} parent=31 // pred_region
        %s181 = smul.u32 32, %s11
        %p182 = scmp.lt.s32.totalorder %s181, 63
        %s183 = scalar_select %p182, %s181, 63
        %s184 = smul.addr %s183, 7
        %s185 = smul.addr %s184, 8
        %s186 = scalar_lea.vmem %s0, %s185
        %s187 = smul.u32 32, %s11
      $region36: #{generator_forward.1} parent=31 // pred_fallthru
        _
    $region32: #{generator_forward.1} parent=5 // pred_fallthru
      _
    %p188 = scmp.le.s32.totalorder 1, %s11
    %p189 = scmp.lt.s32.totalorder %s11, 3
    %p190 = pnand %p188, %p189
    %p191 = pneg %p190
    // Predicated region
    $region37: #{generator_forward.1} parent=5 // pred_check
      _
    $region38: #{generator_forward.1} parent=5 // pred_check_branch
      %193 = sbr.rel (%p190) target = $region40
    $region39: #{generator_forward.1} parent=5 // pred_region
      %s194 = ssub.s32 %s11, 1
      %s195 = smul.u32 32, %s16
      %p196 = scmp.lt.s32.totalorder %s195, 63
      %s197 = scalar_select %p196, %s195, 63
      %s198 = smul.addr %s197, 7
      %s199 = smul.addr %s198, 8
      %s200 = scalar_lea.vmem %s0, %s199
      %p201 = pneg %p37
      %p202 = pneg %p34
      %p203 = pneg %p58
      %p204 = pneg %p55
      %p205 = pneg %p79
      %p206 = pneg %p76
      %p207 = pneg %p100
      %p208 = pneg %p97
      %p209 = pneg %p121
      %p210 = pneg %p118
      %p211 = pneg %p147
      %p212 = pneg %p144
      %s213 = smul.u32 32, %s16
      %p214 = scmp.lt.s32.totalorder %s213, 63
      %s215 = scalar_select %p214, %s213, 63
      %s216 = smul.addr %s215, 7
      %s217 = smul.addr %s216, 8
      %s218 = scalar_lea.vmem %s5, %s217
      %s219 = smul.u32 32, %s16
      %p220 = scmp.lt.s32.totalorder %s219, 63
      %s221 = scalar_select %p220, %s219, 63
      %s222 = smul.addr %s221, 7
      %s223 = smul.addr %s222, 8
      %s224 = scalar_lea.vmem %s0, %s223
      %s225 = smul.u32 32, %s16
      %s226 = smul.u32 32, %s16
      %p227 = scmp.lt.s32.totalorder %s226, 63
      %s228 = scalar_select %p227, %s226, 63
      %s229 = smul.addr %s228, 7
      %s230 = smul.addr %s229, 8
      %s231 = scalar_lea.vmem %s5, %s230
      %s232 = smul.u32 32, %s16
      %v233 = vld [vmem:[%s224] sm:$0xff]
      %v234 = vld [vmem:[%s224 + $0x8] sm:$0xff]
      %v235 = vld [vmem:[%s224 + $0x10] sm:$0xff]
      %v236 = vld [vmem:[%s224 + $0x18] sm:$0xff]
      %v237 = vld [vmem:[%s224 + $0x20] sm:$0xff]
      %v238 = vld [vmem:[%s224 + $0x28] sm:$0xff]
      %v239 = vld [vmem:[%s224 + $0x30] sm:$0xff]
      %v240 = vld [vmem:[%s224 + $0x38] sm:$0xff]
      %v241 = vld [vmem:[%s224 + $0x40] sm:$0xff]
      %v242 = vld [vmem:[%s224 + $0x48] sm:$0xff]
      %v243 = vld [vmem:[%s224 + $0x50] sm:$0xff]
      %v244 = vld [vmem:[%s224 + $0x58] sm:$0xff]
      %v245 = vld [vmem:[%s224 + $0x60] sm:$0xff]
      %v246 = vld [vmem:[%s224 + $0x68] sm:$0xff]
      %v247 = vld [vmem:[%s224 + $0x70] sm:$0xff]
      %v248 = vld [vmem:[%s224 + $0x78] sm:$0xff]
      %v249 = vld [vmem:[%s224 + $0x80] sm:$0xff]
      %v250 = vld [vmem:[%s224 + $0x88] sm:$0xff]
      %v251 = vld [vmem:[%s224 + $0x90] sm:$0xff]
      %v252 = vld [vmem:[%s224 + $0x98] sm:$0xff]
      %v253 = vld [vmem:[%s224 + $0xa0] sm:$0xff]
      %v254 = vld [vmem:[%s224 + $0xa8] sm:$0xff]
      %v255 = vld [vmem:[%s224 + $0xb0] sm:$0xff]
      %v256 = vld [vmem:[%s224 + $0xb8] sm:$0xff]
      %v257 = vld [vmem:[%s224 + $0xc0] sm:$0xff]
      %v258 = vld [vmem:[%s224 + $0xc8] sm:$0xff]
      %v259 = vld [vmem:[%s224 + $0xd0] sm:$0xff]
      %v260 = vld [vmem:[%s224 + $0xd8] sm:$0xff]
      %v261 = vld [vmem:[%s224 + $0xe0] sm:$0xff]
      %v262 = vld [vmem:[%s224 + $0xe8] sm:$0xff]
      %v263 = vld [vmem:[%s224 + $0xf0] sm:$0xff]
      %v264 = vld [vmem:[%s224 + $0xf8] sm:$0xff]
      %v265 = vld [vmem:[%s224 + $0x100] sm:$0xff]
      %v266 = vld [vmem:[%s224 + $0x108] sm:$0xff]
      %v267 = vld [vmem:[%s224 + $0x110] sm:$0xff]
      %v268 = vld [vmem:[%s224 + $0x118] sm:$0xff]
      %v269 = vld [vmem:[%s224 + $0x120] sm:$0xff]
      %v270 = vld [vmem:[%s224 + $0x128] sm:$0xff]
      %v271 = vld [vmem:[%s224 + $0x130] sm:$0xff]
      %v272 = vld [vmem:[%s224 + $0x138] sm:$0xff]
      %v273 = vld [vmem:[%s224 + $0x140] sm:$0xff]
      %v274 = vld [vmem:[%s224 + $0x148] sm:$0xff]
      %v275 = vld [vmem:[%s224 + $0x150] sm:$0xff]
      %v276 = vld [vmem:[%s224 + $0x158] sm:$0xff]
      %v277 = vld [vmem:[%s224 + $0x160] sm:$0xff]
      %v278 = vld [vmem:[%s224 + $0x168] sm:$0xff]
      %v279 = vld [vmem:[%s224 + $0x170] sm:$0xff]
      %v280 = vld [vmem:[%s224 + $0x178] sm:$0xff]
      %v281 = vld [vmem:[%s224 + $0x180] sm:$0xff]
      %v282 = vld [vmem:[%s224 + $0x188] sm:$0xff]
      %v283 = vld [vmem:[%s224 + $0x190] sm:$0xff]
      %v284 = vld [vmem:[%s224 + $0x198] sm:$0xff]
      %v285 = vld [vmem:[%s224 + $0x1a0] sm:$0xff]
      %v286 = vld [vmem:[%s224 + $0x1a8] sm:$0xff]
      %v287 = vld [vmem:[%s224 + $0x1b0] sm:$0xff]
      %v288 = vld [vmem:[%s224 + $0x1b8] sm:$0xff]
      %v289 = vld [vmem:[%s224 + $0x1c0] sm:$0xff]
      %v290 = vld [vmem:[%s224 + $0x1c8] sm:$0xff]
      %v291 = vld [vmem:[%s224 + $0x1d0] sm:$0xff]
      %v292 = vld [vmem:[%s224 + $0x1d8] sm:$0xff]
      %v293 = vld [vmem:[%s224 + $0x1e0] sm:$0xff]
      %v294 = vld [vmem:[%s224 + $0x1e8] sm:$0xff]
      %v295 = vld [vmem:[%s224 + $0x1f0] sm:$0xff]
      %v296 = vld [vmem:[%s224 + $0x1f8] sm:$0xff]
      %v297 = vld [vmem:[%s224 + $0x200] sm:$0xff]
      %v298 = vld [vmem:[%s224 + $0x208] sm:$0xff]
      %v299 = vld [vmem:[%s224 + $0x210] sm:$0xff]
      %v300 = vld [vmem:[%s224 + $0x218] sm:$0xff]
      %v301 = vld [vmem:[%s224 + $0x220] sm:$0xff]
      %v302 = vld [vmem:[%s224 + $0x228] sm:$0xff]
      %v303 = vld [vmem:[%s224 + $0x230] sm:$0xff]
      %v304 = vld [vmem:[%s224 + $0x238] sm:$0xff]
      %v305 = vld [vmem:[%s224 + $0x240] sm:$0xff]
      %v306 = vld [vmem:[%s224 + $0x248] sm:$0xff]
      %v307 = vld [vmem:[%s224 + $0x250] sm:$0xff]
      %v308 = vld [vmem:[%s224 + $0x258] sm:$0xff]
      %v309 = vld [vmem:[%s224 + $0x260] sm:$0xff]
      %v310 = vld [vmem:[%s224 + $0x268] sm:$0xff]
      %v311 = vld [vmem:[%s224 + $0x270] sm:$0xff]
      %v312 = vld [vmem:[%s224 + $0x278] sm:$0xff]
      %v313 = vld [vmem:[%s224 + $0x280] sm:$0xff]
      %v314 = vld [vmem:[%s224 + $0x288] sm:$0xff]
      %v315 = vld [vmem:[%s224 + $0x290] sm:$0xff]
      %v316 = vld [vmem:[%s224 + $0x298] sm:$0xff]
      %v317 = vld [vmem:[%s224 + $0x2a0] sm:$0xff]
      %v318 = vld [vmem:[%s224 + $0x2a8] sm:$0xff]
      %v319 = vld [vmem:[%s224 + $0x2b0] sm:$0xff]
      %v320 = vld [vmem:[%s224 + $0x2b8] sm:$0xff]
      %v321 = vld [vmem:[%s224 + $0x2c0] sm:$0xff]
      %v322 = vld [vmem:[%s224 + $0x2c8] sm:$0xff]
      %v323 = vld [vmem:[%s224 + $0x2d0] sm:$0xff]
      %v324 = vld [vmem:[%s224 + $0x2d8] sm:$0xff]
      %v325 = vld [vmem:[%s224 + $0x2e0] sm:$0xff]
      %v326 = vld [vmem:[%s224 + $0x2e8] sm:$0xff]
      %v327 = vld [vmem:[%s224 + $0x2f0] sm:$0xff]
      %v328 = vld [vmem:[%s224 + $0x2f8] sm:$0xff]
      %v329 = vld [vmem:[%s224 + $0x300] sm:$0xff]
      %v330 = vld [vmem:[%s224 + $0x308] sm:$0xff]
      %v331 = vld [vmem:[%s224 + $0x310] sm:$0xff]
      %v332 = vld [vmem:[%s224 + $0x318] sm:$0xff]
      %v333 = vld [vmem:[%s224 + $0x320] sm:$0xff]
      %v334 = vld [vmem:[%s224 + $0x328] sm:$0xff]
      %v335 = vld [vmem:[%s224 + $0x330] sm:$0xff]
      %v336 = vld [vmem:[%s224 + $0x338] sm:$0xff]
      %v337 = vld [vmem:[%s224 + $0x340] sm:$0xff]
      %v338 = vld [vmem:[%s224 + $0x348] sm:$0xff]
      %v339 = vld [vmem:[%s224 + $0x350] sm:$0xff]
      %v340 = vld [vmem:[%s224 + $0x358] sm:$0xff]
      %v341 = vld [vmem:[%s224 + $0x360] sm:$0xff]
      %v342 = vld [vmem:[%s224 + $0x368] sm:$0xff]
      %v343 = vld [vmem:[%s224 + $0x370] sm:$0xff]
      %v344 = vld [vmem:[%s224 + $0x378] sm:$0xff]
      %v345 = vld [vmem:[%s224 + $0x380] sm:$0xff]
      %v346 = vld [vmem:[%s224 + $0x388] sm:$0xff]
      %v347 = vld [vmem:[%s224 + $0x390] sm:$0xff]
      %v348 = vld [vmem:[%s224 + $0x398] sm:$0xff]
      %v349 = vld [vmem:[%s224 + $0x3a0] sm:$0xff]
      %v350 = vld [vmem:[%s224 + $0x3a8] sm:$0xff]
      %v351 = vld [vmem:[%s224 + $0x3b0] sm:$0xff]
      %v352 = vld [vmem:[%s224 + $0x3b8] sm:$0xff]
      %v353 = vld [vmem:[%s224 + $0x3c0] sm:$0xff]
      %v354 = vld [vmem:[%s224 + $0x3c8] sm:$0xff]
      %v355 = vld [vmem:[%s224 + $0x3d0] sm:$0xff]
      %v356 = vld [vmem:[%s224 + $0x3d8] sm:$0xff]
      %v357 = vld [vmem:[%s224 + $0x3e0] sm:$0xff]
      %v358 = vld [vmem:[%s224 + $0x3e8] sm:$0xff]
      %v359 = vld [vmem:[%s224 + $0x3f0] sm:$0xff]
      %v360 = vld [vmem:[%s224 + $0x3f8] sm:$0xff]
      %v361 = vld [vmem:[%s224 + $0x400] sm:$0xff]
      %v362 = vld [vmem:[%s224 + $0x408] sm:$0xff]
      %v363 = vld [vmem:[%s224 + $0x410] sm:$0xff]
      %v364 = vld [vmem:[%s224 + $0x418] sm:$0xff]
      %v365 = vld [vmem:[%s224 + $0x420] sm:$0xff]
      %v366 = vld [vmem:[%s224 + $0x428] sm:$0xff]
      %v367 = vld [vmem:[%s224 + $0x430] sm:$0xff]
      %v368 = vld [vmem:[%s224 + $0x438] sm:$0xff]
      %v369 = vld [vmem:[%s224 + $0x440] sm:$0xff]
      %v370 = vld [vmem:[%s224 + $0x448] sm:$0xff]
      %v371 = vld [vmem:[%s224 + $0x450] sm:$0xff]
      %v372 = vld [vmem:[%s224 + $0x458] sm:$0xff]
      %v373 = vld [vmem:[%s224 + $0x460] sm:$0xff]
      %v374 = vld [vmem:[%s224 + $0x468] sm:$0xff]
      %v375 = vld [vmem:[%s224 + $0x470] sm:$0xff]
      %v376 = vld [vmem:[%s224 + $0x478] sm:$0xff]
      %v377 = vld [vmem:[%s224 + $0x480] sm:$0xff]
      %v378 = vld [vmem:[%s224 + $0x488] sm:$0xff]
      %v379 = vld [vmem:[%s224 + $0x490] sm:$0xff]
      %v380 = vld [vmem:[%s224 + $0x498] sm:$0xff]
      %v381 = vld [vmem:[%s224 + $0x4a0] sm:$0xff]
      %v382 = vld [vmem:[%s224 + $0x4a8] sm:$0xff]
      %v383 = vld [vmem:[%s224 + $0x4b0] sm:$0xff]
      %v384 = vld [vmem:[%s224 + $0x4b8] sm:$0xff]
      %v385 = vld [vmem:[%s224 + $0x4c0] sm:$0xff]
      %v386 = vld [vmem:[%s224 + $0x4c8] sm:$0xff]
      %v387 = vld [vmem:[%s224 + $0x4d0] sm:$0xff]
      %v388 = vld [vmem:[%s224 + $0x4d8] sm:$0xff]
      %v389 = vld [vmem:[%s224 + $0x4e0] sm:$0xff]
      %v390 = vld [vmem:[%s224 + $0x4e8] sm:$0xff]
      %v391 = vld [vmem:[%s224 + $0x4f0] sm:$0xff]
      %v392 = vld [vmem:[%s224 + $0x4f8] sm:$0xff]
      %v393 = vld [vmem:[%s224 + $0x500] sm:$0xff]
      %v394 = vld [vmem:[%s224 + $0x508] sm:$0xff]
      %v395 = vld [vmem:[%s224 + $0x510] sm:$0xff]
      %v396 = vld [vmem:[%s224 + $0x518] sm:$0xff]
      %v397 = vld [vmem:[%s224 + $0x520] sm:$0xff]
      %v398 = vld [vmem:[%s224 + $0x528] sm:$0xff]
      %v399 = vld [vmem:[%s224 + $0x530] sm:$0xff]
      %v400 = vld [vmem:[%s224 + $0x538] sm:$0xff]
      %v401 = vld [vmem:[%s224 + $0x540] sm:$0xff]
      %v402 = vld [vmem:[%s224 + $0x548] sm:$0xff]
      %v403 = vld [vmem:[%s224 + $0x550] sm:$0xff]
      %v404 = vld [vmem:[%s224 + $0x558] sm:$0xff]
      %v405 = vld [vmem:[%s224 + $0x560] sm:$0xff]
      %v406 = vld [vmem:[%s224 + $0x568] sm:$0xff]
      %v407 = vld [vmem:[%s224 + $0x570] sm:$0xff]
      %v408 = vld [vmem:[%s224 + $0x578] sm:$0xff]
      %v409 = vld [vmem:[%s224 + $0x580] sm:$0xff]
      %v410 = vld [vmem:[%s224 + $0x588] sm:$0xff]
      %v411 = vld [vmem:[%s224 + $0x590] sm:$0xff]
      %v412 = vld [vmem:[%s224 + $0x598] sm:$0xff]
      %v413 = vld [vmem:[%s224 + $0x5a0] sm:$0xff]
      %v414 = vld [vmem:[%s224 + $0x5a8] sm:$0xff]
      %v415 = vld [vmem:[%s224 + $0x5b0] sm:$0xff]
      %v416 = vld [vmem:[%s224 + $0x5b8] sm:$0xff]
      %v417 = vld [vmem:[%s224 + $0x5c0] sm:$0xff]
      %v418 = vld [vmem:[%s224 + $0x5c8] sm:$0xff]
      %v419 = vld [vmem:[%s224 + $0x5d0] sm:$0xff]
      %v420 = vld [vmem:[%s224 + $0x5d8] sm:$0xff]
      %v421 = vld [vmem:[%s224 + $0x5e0] sm:$0xff]
      %v422 = vld [vmem:[%s224 + $0x5e8] sm:$0xff]
      %v423 = vld [vmem:[%s224 + $0x5f0] sm:$0xff]
      %v424 = vld [vmem:[%s224 + $0x5f8] sm:$0xff]
      %v425 = vld [vmem:[%s224 + $0x600] sm:$0xff]
      %v426 = vld [vmem:[%s224 + $0x608] sm:$0xff]
      %v427 = vld [vmem:[%s224 + $0x610] sm:$0xff]
      %v428 = vld [vmem:[%s224 + $0x618] sm:$0xff]
      %v429 = vld [vmem:[%s224 + $0x620] sm:$0xff]
      %v430 = vld [vmem:[%s224 + $0x628] sm:$0xff]
      %v431 = vld [vmem:[%s224 + $0x630] sm:$0xff]
      %v432 = vld [vmem:[%s224 + $0x638] sm:$0xff]
      %v433 = vld [vmem:[%s224 + $0x640] sm:$0xff]
      %v434 = vld [vmem:[%s224 + $0x648] sm:$0xff]
      %v435 = vld [vmem:[%s224 + $0x650] sm:$0xff]
      %v436 = vld [vmem:[%s224 + $0x658] sm:$0xff]
      %v437 = vld [vmem:[%s224 + $0x660] sm:$0xff]
      %v438 = vld [vmem:[%s224 + $0x668] sm:$0xff]
      %v439 = vld [vmem:[%s224 + $0x670] sm:$0xff]
      %v440 = vld [vmem:[%s224 + $0x678] sm:$0xff]
      %v441 = vld [vmem:[%s224 + $0x680] sm:$0xff]
      %v442 = vld [vmem:[%s224 + $0x688] sm:$0xff]
      %v443 = vld [vmem:[%s224 + $0x690] sm:$0xff]
      %v444 = vld [vmem:[%s224 + $0x698] sm:$0xff]
      %v445 = vld [vmem:[%s224 + $0x6a0] sm:$0xff]
      %v446 = vld [vmem:[%s224 + $0x6a8] sm:$0xff]
      %v447 = vld [vmem:[%s224 + $0x6b0] sm:$0xff]
      %v448 = vld [vmem:[%s224 + $0x6b8] sm:$0xff]
      %v449 = vld [vmem:[%s224 + $0x6c0] sm:$0xff]
      %v450 = vld [vmem:[%s224 + $0x6c8] sm:$0xff]
      %v451 = vld [vmem:[%s224 + $0x6d0] sm:$0xff]
      %v452 = vld [vmem:[%s224 + $0x6d8] sm:$0xff]
      %v453 = vld [vmem:[%s224 + $0x6e0] sm:$0xff]
      %v454 = vld [vmem:[%s224 + $0x6e8] sm:$0xff]
      %v455 = vld [vmem:[%s224 + $0x6f0] sm:$0xff]
      %v456 = vld [vmem:[%s224 + $0x6f8] sm:$0xff]
      %v457 = vld [vmem:[%s1] sm:$0xff]
      %v458 = vld [vmem:[%s1 + $0x8] sm:$0xff]
      %v459 = vld [vmem:[%s1 + $0x10] sm:$0xff]
      %v460 = vld [vmem:[%s1 + $0x18] sm:$0xff]
      %v461 = vld [vmem:[%s1 + $0x20] sm:$0xff]
      %v462 = vld [vmem:[%s1 + $0x28] sm:$0xff]
      %v463 = vld [vmem:[%s1 + $0x30] sm:$0xff]
      %v464 = vld [vmem:[%s1 + $0x38] sm:$0xff]
      %v465 = vld [vmem:[%s1 + $0x40] sm:$0xff]
      %v466 = vld [vmem:[%s1 + $0x48] sm:$0xff]
      %v467 = vld [vmem:[%s1 + $0x50] sm:$0xff]
      %v468 = vld [vmem:[%s1 + $0x58] sm:$0xff]
      %v469 = vld [vmem:[%s1 + $0x60] sm:$0xff]
      %v470 = vld [vmem:[%s1 + $0x68] sm:$0xff]
      %v471 = vld [vmem:[%s1 + $0x70] sm:$0xff]
      %v472 = vld [vmem:[%s1 + $0x78] sm:$0xff]
      %v473 = vld [vmem:[%s1 + $0x80] sm:$0xff]
      %v474 = vld [vmem:[%s1 + $0x88] sm:$0xff]
      %v475 = vld [vmem:[%s1 + $0x90] sm:$0xff]
      %v476 = vld [vmem:[%s1 + $0x98] sm:$0xff]
      %v477 = vld [vmem:[%s1 + $0xa0] sm:$0xff]
      %v478 = vld [vmem:[%s1 + $0xa8] sm:$0xff]
      %v479 = vld [vmem:[%s1 + $0xb0] sm:$0xff]
      %v480 = vld [vmem:[%s1 + $0xb8] sm:$0xff]
      %v481 = vld [vmem:[%s1 + $0xc0] sm:$0xff]
      %v482 = vld [vmem:[%s1 + $0xc8] sm:$0xff]
      %v483 = vld [vmem:[%s1 + $0xd0] sm:$0xff]
      %v484 = vld [vmem:[%s1 + $0xd8] sm:$0xff]
      %v485 = vld [vmem:[%s1 + $0xe0] sm:$0xff]
      %v486 = vld [vmem:[%s1 + $0xe8] sm:$0xff]
      %v487 = vld [vmem:[%s1 + $0xf0] sm:$0xff]
      %v488 = vld [vmem:[%s1 + $0xf8] sm:$0xff]
      %v489 = vld [vmem:[%s1 + $0x100] sm:$0xff]
      %v490 = vld [vmem:[%s1 + $0x108] sm:$0xff]
      %v491 = vld [vmem:[%s1 + $0x110] sm:$0xff]
      %v492 = vld [vmem:[%s1 + $0x118] sm:$0xff]
      %v493 = vld [vmem:[%s1 + $0x120] sm:$0xff]
      %v494 = vld [vmem:[%s1 + $0x128] sm:$0xff]
      %v495 = vld [vmem:[%s1 + $0x130] sm:$0xff]
      %v496 = vld [vmem:[%s1 + $0x138] sm:$0xff]
      %v497 = vld [vmem:[%s1 + $0x140] sm:$0xff]
      %v498 = vld [vmem:[%s1 + $0x148] sm:$0xff]
      %v499 = vld [vmem:[%s1 + $0x150] sm:$0xff]
      %v500 = vld [vmem:[%s1 + $0x158] sm:$0xff]
      %v501 = vld [vmem:[%s1 + $0x160] sm:$0xff]
      %v502 = vld [vmem:[%s1 + $0x168] sm:$0xff]
      %v503 = vld [vmem:[%s1 + $0x170] sm:$0xff]
      %v504 = vld [vmem:[%s1 + $0x178] sm:$0xff]
      %v505 = vld [vmem:[%s1 + $0x180] sm:$0xff]
      %v506 = vld [vmem:[%s1 + $0x188] sm:$0xff]
      %v507 = vld [vmem:[%s1 + $0x190] sm:$0xff]
      %v508 = vld [vmem:[%s1 + $0x198] sm:$0xff]
      %v509 = vld [vmem:[%s1 + $0x1a0] sm:$0xff]
      %v510 = vld [vmem:[%s1 + $0x1a8] sm:$0xff]
      %v511 = vld [vmem:[%s1 + $0x1b0] sm:$0xff]
      %v512 = vld [vmem:[%s1 + $0x1b8] sm:$0xff]
      %v513 = vld [vmem:[%s1 + $0x1c0] sm:$0xff]
      %v514 = vld [vmem:[%s1 + $0x1c8] sm:$0xff]
      %v515 = vld [vmem:[%s1 + $0x1d0] sm:$0xff]
      %v516 = vld [vmem:[%s1 + $0x1d8] sm:$0xff]
      %v517 = vld [vmem:[%s1 + $0x1e0] sm:$0xff]
      %v518 = vld [vmem:[%s1 + $0x1e8] sm:$0xff]
      %v519 = vld [vmem:[%s1 + $0x1f0] sm:$0xff]
      %v520 = vld [vmem:[%s1 + $0x1f8] sm:$0xff]
      %v521 = vld [vmem:[%s1 + $0x200] sm:$0xff]
      %v522 = vld [vmem:[%s1 + $0x208] sm:$0xff]
      %v523 = vld [vmem:[%s1 + $0x210] sm:$0xff]
      %v524 = vld [vmem:[%s1 + $0x218] sm:$0xff]
      %v525 = vld [vmem:[%s1 + $0x220] sm:$0xff]
      %v526 = vld [vmem:[%s1 + $0x228] sm:$0xff]
      %v527 = vld [vmem:[%s1 + $0x230] sm:$0xff]
      %v528 = vld [vmem:[%s1 + $0x238] sm:$0xff]
      %v529 = vld [vmem:[%s1 + $0x240] sm:$0xff]
      %v530 = vld [vmem:[%s1 + $0x248] sm:$0xff]
      %v531 = vld [vmem:[%s1 + $0x250] sm:$0xff]
      %v532 = vld [vmem:[%s1 + $0x258] sm:$0xff]
      %v533 = vld [vmem:[%s1 + $0x260] sm:$0xff]
      %v534 = vld [vmem:[%s1 + $0x268] sm:$0xff]
      %v535 = vld [vmem:[%s1 + $0x270] sm:$0xff]
      %v536 = vld [vmem:[%s1 + $0x278] sm:$0xff]
      %v537 = vld [vmem:[%s1 + $0x280] sm:$0xff]
      %v538 = vld [vmem:[%s1 + $0x288] sm:$0xff]
      %v539 = vld [vmem:[%s1 + $0x290] sm:$0xff]
      %v540 = vld [vmem:[%s1 + $0x298] sm:$0xff]
      %v541 = vld [vmem:[%s1 + $0x2a0] sm:$0xff]
      %v542 = vld [vmem:[%s1 + $0x2a8] sm:$0xff]
      %v543 = vld [vmem:[%s1 + $0x2b0] sm:$0xff]
      %v544 = vld [vmem:[%s1 + $0x2b8] sm:$0xff]
      %v545 = vld [vmem:[%s1 + $0x2c0] sm:$0xff]
      %v546 = vld [vmem:[%s1 + $0x2c8] sm:$0xff]
      %v547 = vld [vmem:[%s1 + $0x2d0] sm:$0xff]
      %v548 = vld [vmem:[%s1 + $0x2d8] sm:$0xff]
      %v549 = vld [vmem:[%s1 + $0x2e0] sm:$0xff]
      %v550 = vld [vmem:[%s1 + $0x2e8] sm:$0xff]
      %v551 = vld [vmem:[%s1 + $0x2f0] sm:$0xff]
      %v552 = vld [vmem:[%s1 + $0x2f8] sm:$0xff]
      %v553 = vld [vmem:[%s1 + $0x300] sm:$0xff]
      %v554 = vld [vmem:[%s1 + $0x308] sm:$0xff]
      %v555 = vld [vmem:[%s1 + $0x310] sm:$0xff]
      %v556 = vld [vmem:[%s1 + $0x318] sm:$0xff]
      %v557 = vld [vmem:[%s1 + $0x320] sm:$0xff]
      %v558 = vld [vmem:[%s1 + $0x328] sm:$0xff]
      %v559 = vld [vmem:[%s1 + $0x330] sm:$0xff]
      %v560 = vld [vmem:[%s1 + $0x338] sm:$0xff]
      %v561 = vld [vmem:[%s1 + $0x340] sm:$0xff]
      %v562 = vld [vmem:[%s1 + $0x348] sm:$0xff]
      %v563 = vld [vmem:[%s1 + $0x350] sm:$0xff]
      %v564 = vld [vmem:[%s1 + $0x358] sm:$0xff]
      %v565 = vld [vmem:[%s1 + $0x360] sm:$0xff]
      %v566 = vld [vmem:[%s1 + $0x368] sm:$0xff]
      %v567 = vld [vmem:[%s1 + $0x370] sm:$0xff]
      %v568 = vld [vmem:[%s1 + $0x378] sm:$0xff]
      %v569 = vld [vmem:[%s2] sm:$0x1]
      %v571 = vlaneseq
      %v572 = vshrl.u32 %v571, 7
      %v573 = vsub.s32 0, %v572
      %v574 = vrot.slane %v569, %v573
      %576 = vmatprep.subr.mxu0 0.0
      %577 = vmatpush1.msra.mxu0 %v457
      %578 = vmatprep.subr.mxu0 0.0
      %579 = vmatpush1.msra.mxu0 %v458
      %580 = vmatprep.subr.mxu0 0.0
      %581 = vmatpush1.msra.mxu0 %v459
      %582 = vmatprep.subr.mxu0 0.0
      %583 = vmatpush1.msra.mxu0 %v460
      %584 = vmatprep.subr.mxu0 0.0
      %585 = vmatpush1.msra.mxu0 %v461
      %586 = vmatprep.subr.mxu0 0.0
      %587 = vmatpush1.msra.mxu0 %v462
      %588 = vmatprep.subr.mxu0 0.0
      %589 = vmatpush1.msra.mxu0 %v463
      %590 = vmatprep.subr.mxu0 0.0
      %591 = vmatpush1.msra.mxu0 %v464
      %592 = vmatprep.subr.mxu0 0.0
      %593 = vmatpush1.msra.mxu0 %v465
      %594 = vmatprep.subr.mxu0 0.0
      %595 = vmatpush1.msra.mxu0 %v466
      %596 = vmatprep.subr.mxu0 0.0
      %597 = vmatpush1.msra.mxu0 %v467
      %598 = vmatprep.subr.mxu0 0.0
      %599 = vmatpush1.msra.mxu0 %v468
      %600 = vmatprep.subr.mxu0 0.0
      %601 = vmatpush1.msra.mxu0 %v469
      %602 = vmatprep.subr.mxu0 0.0
      %603 = vmatpush1.msra.mxu0 %v470
      %604 = vmatprep.subr.mxu0 0.0
      %605 = vmatpush1.msra.mxu0 %v471
      %606 = vmatprep.subr.mxu0 0.0
      %607 = vmatpush1.msra.mxu0 %v472
      %608 = vmatprep.subr.mxu0 0.0
      %609 = vmatpush1.msra.mxu0 %v473
      %610 = vmatprep.subr.mxu0 0.0
      %611 = vmatpush1.msra.mxu0 %v474
      %612 = vmatprep.subr.mxu0 0.0
      %613 = vmatpush1.msra.mxu0 %v475
      %614 = vmatprep.subr.mxu0 0.0
      %615 = vmatpush1.msra.mxu0 %v476
      %616 = vmatprep.subr.mxu0 0.0
      %617 = vmatpush1.msra.mxu0 %v477
      %618 = vmatprep.subr.mxu0 0.0
      %619 = vmatpush1.msra.mxu0 %v478
      %620 = vmatprep.subr.mxu0 0.0
      %621 = vmatpush1.msra.mxu0 %v479
      %622 = vmatprep.subr.mxu0 0.0
      %623 = vmatpush1.msra.mxu0 %v480
      %624 = vmatprep.subr.mxu0 0.0
      %625 = vmatpush1.msra.mxu0 %v481
      %626 = vmatprep.subr.mxu0 0.0
      %627 = vmatpush1.msra.mxu0 %v482
      %628 = vmatprep.subr.mxu0 0.0
      %629 = vmatpush1.msra.mxu0 %v483
      %630 = vmatprep.subr.mxu0 0.0
      %631 = vmatpush1.msra.mxu0 %v484
      %632 = vmatprep.subr.mxu0 0.0
      %633 = vmatpush1.msra.mxu0 %v485
      %634 = vmatprep.subr.mxu0 0.0
      %635 = vmatpush1.msra.mxu0 %v486
      %636 = vmatprep.subr.mxu0 0.0
      %637 = vmatpush1.msra.mxu0 %v487
      %638 = vmatprep.subr.mxu0 0.0
      %639 = vmatpush1.msra.mxu0 %v488
      %640 = vmatprep.mubr.f32.mxu0 %v234
      %641 = vmatmul.mubr.f32.gmra.mrb[0].mxu0 %v233
      %v642 = vpop.f32.mrb[0].mxu0
      %v643 = vadd.f32 %v574, %v642
      %v644 = vpop.f32.mrb[0].mxu0
      %645 = vmatprep.mubr.f32.mxu0 %v241
      %646 = vmatmul.mubr.f32.gmra.mrb[0].mxu0 %v240
      %v647 = vpop.f32.mrb[0].mxu0
      %v648 = vadd.f32 %v574, %v647
      %v649 = vpop.f32.mrb[0].mxu0
      %650 = vmatprep.mubr.f32.mxu0 %v248
      %651 = vmatmul.mubr.f32.gmra.mrb[0].mxu0 %v247
      %v652 = vpop.f32.mrb[0].mxu0
      %v653 = vadd.f32 %v574, %v652
      %v654 = vpop.f32.mrb[0].mxu0
      %655 = vmatprep.mubr.f32.mxu0 %v255
      %656 = vmatmul.mubr.f32.gmra.mrb[0].mxu0 %v254
      %v657 = vpop.f32.mrb[0].mxu0
      %v658 = vadd.f32 %v574, %v657
      %v659 = vpop.f32.mrb[0].mxu0
      %660 = vmatprep.mubr.f32.mxu0 %v262
      %661 = vmatmul.mubr.f32.gmra.mrb[0].mxu0 %v261
      %v662 = vpop.f32.mrb[0].mxu0
      %v663 = vadd.f32 %v574, %v662
      %v664 = vpop.f32.mrb[0].mxu0
      %665 = vmatprep.mubr.f32.mxu0 %v269
      %666 = vmatmul.mubr.f32.gmra.mrb[0].mxu0 %v268
      %v667 = vpop.f32.mrb[0].mxu0
      %v668 = vadd.f32 %v574, %v667
      %v669 = vpop.f32.mrb[0].mxu0
      %670 = vmatprep.mubr.f32.mxu0 %v276
      %671 = vmatmul.mubr.f32.gmra.mrb[0].mxu0 %v275
      %v672 = vpop.f32.mrb[0].mxu0
      %v673 = vadd.f32 %v574, %v672
      %v674 = vpop.f32.mrb[0].mxu0
      %675 = vmatprep.mubr.f32.mxu0 %v283
      %676 = vmatmul.mubr.f32.gmra.mrb[0].mxu0 %v282
      %v677 = vpop.f32.mrb[0].mxu0
      %v678 = vadd.f32 %v574, %v677
      %v679 = vpop.f32.mrb[0].mxu0
      %680 = vmatprep.mubr.f32.mxu0 %v290
      %681 = vmatmul.mubr.f32.gmra.mrb[0].mxu0 %v289
      %v682 = vpop.f32.mrb[0].mxu0
      %v683 = vadd.f32 %v574, %v682
      %v684 = vpop.f32.mrb[0].mxu0
      %685 = vmatprep.mubr.f32.mxu0 %v297
      %686 = vmatmul.mubr.f32.gmra.mrb[0].mxu0 %v296
      %v687 = vpop.f32.mrb[0].mxu0
      %v688 = vadd.f32 %v574, %v687
      %v689 = vpop.f32.mrb[0].mxu0
      %690 = vmatprep.mubr.f32.mxu0 %v304
      %691 = vmatmul.mubr.f32.gmra.mrb[0].mxu0 %v303
      %v692 = vpop.f32.mrb[0].mxu0
      %v693 = vadd.f32 %v574, %v692
      %v694 = vpop.f32.mrb[0].mxu0
      %695 = vmatprep.mubr.f32.mxu0 %v311
      %696 = vmatmul.mubr.f32.gmra.mrb[0].mxu0 %v310
      %v697 = vpop.f32.mrb[0].mxu0
      %v698 = vadd.f32 %v574, %v697
      %v699 = vpop.f32.mrb[0].mxu0
      %700 = vmatprep.mubr.f32.mxu0 %v318
      %701 = vmatmul.mubr.f32.gmra.mrb[0].mxu0 %v317
      %v702 = vpop.f32.mrb[0].mxu0
      %v703 = vadd.f32 %v574, %v702
      %v704 = vpop.f32.mrb[0].mxu0
      %705 = vmatprep.mubr.f32.mxu0 %v325
      %706 = vmatmul.mubr.f32.gmra.mrb[0].mxu0 %v324
      %v707 = vpop.f32.mrb[0].mxu0
      %v708 = vadd.f32 %v574, %v707
      %v709 = vpop.f32.mrb[0].mxu0
      %710 = vmatprep.mubr.f32.mxu0 %v332
      %711 = vmatmul.mubr.f32.gmra.mrb[0].mxu0 %v331
      %v712 = vpop.f32.mrb[0].mxu0
      %v713 = vadd.f32 %v574, %v712
      %v714 = vpop.f32.mrb[0].mxu0
      %715 = vmatprep.mubr.f32.mxu0 %v339
      %716 = vmatmul.mubr.f32.gmra.mrb[0].mxu0 %v338
      %v717 = vpop.f32.mrb[0].mxu0
      %v718 = vadd.f32 %v574, %v717
      %v719 = vpop.f32.mrb[0].mxu0
      %720 = vmatprep.mubr.f32.mxu0 %v346
      %721 = vmatmul.mubr.f32.gmra.mrb[0].mxu0 %v345
      %v722 = vpop.f32.mrb[0].mxu0
      %v723 = vadd.f32 %v574, %v722
      %v724 = vpop.f32.mrb[0].mxu0
      %725 = vmatprep.mubr.f32.mxu0 %v353
      %726 = vmatmul.mubr.f32.gmra.mrb[0].mxu0 %v352
      %v727 = vpop.f32.mrb[0].mxu0
      %v728 = vadd.f32 %v574, %v727
      %v729 = vpop.f32.mrb[0].mxu0
      %730 = vmatprep.mubr.f32.mxu0 %v360
      %731 = vmatmul.mubr.f32.gmra.mrb[0].mxu0 %v359
      %v732 = vpop.f32.mrb[0].mxu0
      %v733 = vadd.f32 %v574, %v732
      %v734 = vpop.f32.mrb[0].mxu0
      %735 = vmatprep.mubr.f32.mxu0 %v367
      %736 = vmatmul.mubr.f32.gmra.mrb[0].mxu0 %v366
      %v737 = vpop.f32.mrb[0].mxu0
      %v738 = vadd.f32 %v574, %v737
      %v739 = vpop.f32.mrb[0].mxu0
      %740 = vmatprep.mubr.f32.mxu0 %v374
      %741 = vmatmul.mubr.f32.gmra.mrb[0].mxu0 %v373
      %v742 = vpop.f32.mrb[0].mxu0
      %v743 = vadd.f32 %v574, %v742
      %v744 = vpop.f32.mrb[0].mxu0
      %745 = vmatprep.mubr.f32.mxu0 %v381
      %746 = vmatmul.mubr.f32.gmra.mrb[0].mxu0 %v380
      %v747 = vpop.f32.mrb[0].mxu0
      %v748 = vadd.f32 %v574, %v747
      %v749 = vpop.f32.mrb[0].mxu0
      %750 = vmatprep.mubr.f32.mxu0 %v388
      %751 = vmatmul.mubr.f32.gmra.mrb[0].mxu0 %v387
      %v752 = vpop.f32.mrb[0].mxu0
      %v753 = vadd.f32 %v574, %v752
      %v754 = vpop.f32.mrb[0].mxu0
      %755 = vmatprep.mubr.f32.mxu0 %v395
      %756 = vmatmul.mubr.f32.gmra.mrb[0].mxu0 %v394
      %v757 = vpop.f32.mrb[0].mxu0
      %v758 = vadd.f32 %v574, %v757
      %v759 = vpop.f32.mrb[0].mxu0
      %760 = vmatprep.mubr.f32.mxu0 %v402
      %761 = vmatmul.mubr.f32.gmra.mrb[0].mxu0 %v401
      %v762 = vpop.f32.mrb[0].mxu0
      %v763 = vadd.f32 %v574, %v762
      %v764 = vpop.f32.mrb[0].mxu0
      %765 = vmatprep.mubr.f32.mxu0 %v409
      %766 = vmatmul.mubr.f32.gmra.mrb[0].mxu0 %v408
      %v767 = vpop.f32.mrb[0].mxu0
      %v768 = vadd.f32 %v574, %v767
      %v769 = vpop.f32.mrb[0].mxu0
      %770 = vmatprep.mubr.f32.mxu0 %v416
      %771 = vmatmul.mubr.f32.gmra.mrb[0].mxu0 %v415
      %v772 = vpop.f32.mrb[0].mxu0
      %v773 = vadd.f32 %v574, %v772
      %v774 = vpop.f32.mrb[0].mxu0
      %775 = vmatprep.mubr.f32.mxu0 %v423
      %776 = vmatmul.mubr.f32.gmra.mrb[0].mxu0 %v422
      %v777 = vpop.f32.mrb[0].mxu0
      %v778 = vadd.f32 %v574, %v777
      %v779 = vpop.f32.mrb[0].mxu0
      %780 = vmatprep.mubr.f32.mxu0 %v430
      %781 = vmatmul.mubr.f32.gmra.mrb[0].mxu0 %v429
      %v782 = vpop.f32.mrb[0].mxu0
      %v783 = vadd.f32 %v574, %v782
      %v784 = vpop.f32.mrb[0].mxu0
      %785 = vmatprep.mubr.f32.mxu0 %v437
      %786 = vmatmul.mubr.f32.gmra.mrb[0].mxu0 %v436
      %v787 = vpop.f32.mrb[0].mxu0
      %v788 = vadd.f32 %v574, %v787
      %v789 = vpop.f32.mrb[0].mxu0
      %790 = vmatprep.mubr.f32.mxu0 %v444
      %791 = vmatmul.mubr.f32.gmra.mrb[0].mxu0 %v443
      %v792 = vpop.f32.mrb[0].mxu0
      %v793 = vadd.f32 %v574, %v792
      %v794 = vpop.f32.mrb[0].mxu0
      %795 = vmatprep.mubr.f32.mxu0 %v451
      %796 = vmatmul.mubr.f32.gmra.mrb[0].mxu0 %v450
      %v797 = vpop.f32.mrb[0].mxu0
      %v798 = vadd.f32 %v574, %v797
      %v799 = vpop.f32.mrb[0].mxu0
      %800 = vdwg.mxu0
      %801 = vmatprep.subr.mxu0 0.0
      %802 = vmatpush1.msra.mxu0 %v489
      %803 = vmatprep.subr.mxu0 0.0
      %804 = vmatpush1.msra.mxu0 %v490
      %805 = vmatprep.subr.mxu0 0.0
      %806 = vmatpush1.msra.mxu0 %v491
      %807 = vmatprep.subr.mxu0 0.0
      %808 = vmatpush1.msra.mxu0 %v492
      %809 = vmatprep.subr.mxu0 0.0
      %810 = vmatpush1.msra.mxu0 %v493
      %811 = vmatprep.subr.mxu0 0.0
      %812 = vmatpush1.msra.mxu0 %v494
      %813 = vmatprep.subr.mxu0 0.0
      %814 = vmatpush1.msra.mxu0 %v495
      %815 = vmatprep.subr.mxu0 0.0
      %816 = vmatpush1.msra.mxu0 %v496
      %817 = vmatprep.subr.mxu0 0.0
      %818 = vmatpush1.msra.mxu0 %v497
      %819 = vmatprep.subr.mxu0 0.0
      %820 = vmatpush1.msra.mxu0 %v498
      %821 = vmatprep.subr.mxu0 0.0
      %822 = vmatpush1.msra.mxu0 %v499
      %823 = vmatprep.subr.mxu0 0.0
      %824 = vmatpush1.msra.mxu0 %v500
      %825 = vmatprep.subr.mxu0 0.0
      %826 = vmatpush1.msra.mxu0 %v501
      %827 = vmatprep.subr.mxu0 0.0
      %828 = vmatpush1.msra.mxu0 %v502
      %829 = vmatprep.subr.mxu0 0.0
      %830 = vmatpush1.msra.mxu0 %v503
      %831 = vmatprep.subr.mxu0 0.0
      %832 = vmatpush1.msra.mxu0 %v504
      %833 = vmatprep.subr.mxu0 0.0
      %834 = vmatpush1.msra.mxu0 %v505
      %835 = vmatprep.subr.mxu0 0.0
      %836 = vmatpush1.msra.mxu0 %v506
      %837 = vmatprep.subr.mxu0 0.0
      %838 = vmatpush1.msra.mxu0 %v507
      %839 = vmatprep.subr.mxu0 0.0
      %840 = vmatpush1.msra.mxu0 %v508
      %841 = vmatprep.subr.mxu0 0.0
      %842 = vmatpush1.msra.mxu0 %v509
      %843 = vmatprep.subr.mxu0 0.0
      %844 = vmatpush1.msra.mxu0 %v510
      %845 = vmatprep.subr.mxu0 0.0
      %846 = vmatpush1.msra.mxu0 %v511
      %847 = vmatprep.subr.mxu0 0.0
      %848 = vmatpush1.msra.mxu0 %v512
      %849 = vmatprep.subr.mxu0 0.0
      %850 = vmatpush1.msra.mxu0 %v513
      %851 = vmatprep.subr.mxu0 0.0
      %852 = vmatpush1.msra.mxu0 %v514
      %853 = vmatprep.subr.mxu0 0.0
      %854 = vmatpush1.msra.mxu0 %v515
      %855 = vmatprep.subr.mxu0 0.0
      %856 = vmatpush1.msra.mxu0 %v516
      %857 = vmatprep.subr.mxu0 0.0
      %858 = vmatpush1.msra.mxu0 %v517
      %859 = vmatprep.subr.mxu0 0.0
      %860 = vmatpush1.msra.mxu0 %v518
      %861 = vmatprep.subr.mxu0 0.0
      %862 = vmatpush1.msra.mxu0 %v519
      %863 = vmatprep.subr.mxu0 0.0
      %864 = vmatpush1.msra.mxu0 %v520
      %865 = vmatprep.mubr.f32.mxu0 %v236
      %866 = vmatmul.mubr.f32.gmra.mrb[0].mxu0 %v235
      %v867 = vpop.f32.mrb[0].mxu0
      %v868 = vadd.f32 %v643, %v867
      %v869 = vpop.f32.mrb[0].mxu0
      %870 = vmatprep.mubr.f32.mxu0 %v243
      %871 = vmatmul.mubr.f32.gmra.mrb[0].mxu0 %v242
      %v872 = vpop.f32.mrb[0].mxu0
      %v873 = vadd.f32 %v648, %v872
      %v874 = vpop.f32.mrb[0].mxu0
      %875 = vmatprep.mubr.f32.mxu0 %v250
      %876 = vmatmul.mubr.f32.gmra.mrb[0].mxu0 %v249
      %v877 = vpop.f32.mrb[0].mxu0
      %v878 = vadd.f32 %v653, %v877
      %v879 = vpop.f32.mrb[0].mxu0
      %880 = vmatprep.mubr.f32.mxu0 %v257
      %881 = vmatmul.mubr.f32.gmra.mrb[0].mxu0 %v256
      %v882 = vpop.f32.mrb[0].mxu0
      %v883 = vadd.f32 %v658, %v882
      %v884 = vpop.f32.mrb[0].mxu0
      %885 = vmatprep.mubr.f32.mxu0 %v264
      %886 = vmatmul.mubr.f32.gmra.mrb[0].mxu0 %v263
      %v887 = vpop.f32.mrb[0].mxu0
      %v888 = vadd.f32 %v663, %v887
      %v889 = vpop.f32.mrb[0].mxu0
      %890 = vmatprep.mubr.f32.mxu0 %v271
      %891 = vmatmul.mubr.f32.gmra.mrb[0].mxu0 %v270
      %v892 = vpop.f32.mrb[0].mxu0
      %v893 = vadd.f32 %v668, %v892
      %v894 = vpop.f32.mrb[0].mxu0
      %895 = vmatprep.mubr.f32.mxu0 %v278
      %896 = vmatmul.mubr.f32.gmra.mrb[0].mxu0 %v277
      %v897 = vpop.f32.mrb[0].mxu0
      %v898 = vadd.f32 %v673, %v897
      %v899 = vpop.f32.mrb[0].mxu0
      %900 = vmatprep.mubr.f32.mxu0 %v285
      %901 = vmatmul.mubr.f32.gmra.mrb[0].mxu0 %v284
      %v902 = vpop.f32.mrb[0].mxu0
      %v903 = vadd.f32 %v678, %v902
      %v904 = vpop.f32.mrb[0].mxu0
      %905 = vmatprep.mubr.f32.mxu0 %v292
      %906 = vmatmul.mubr.f32.gmra.mrb[0].mxu0 %v291
      %v907 = vpop.f32.mrb[0].mxu0
      %v908 = vadd.f32 %v683, %v907
      %v909 = vpop.f32.mrb[0].mxu0
      %910 = vmatprep.mubr.f32.mxu0 %v299
      %911 = vmatmul.mubr.f32.gmra.mrb[0].mxu0 %v298
      %v912 = vpop.f32.mrb[0].mxu0
      %v913 = vadd.f32 %v688, %v912
      %v914 = vpop.f32.mrb[0].mxu0
      %915 = vmatprep.mubr.f32.mxu0 %v306
      %916 = vmatmul.mubr.f32.gmra.mrb[0].mxu0 %v305
      %v917 = vpop.f32.mrb[0].mxu0
      %v918 = vadd.f32 %v693, %v917
      %v919 = vpop.f32.mrb[0].mxu0
      %920 = vmatprep.mubr.f32.mxu0 %v313
      %921 = vmatmul.mubr.f32.gmra.mrb[0].mxu0 %v312
      %v922 = vpop.f32.mrb[0].mxu0
      %v923 = vadd.f32 %v698, %v922
      %v924 = vpop.f32.mrb[0].mxu0
      %925 = vmatprep.mubr.f32.mxu0 %v320
      %926 = vmatmul.mubr.f32.gmra.mrb[0].mxu0 %v319
      %v927 = vpop.f32.mrb[0].mxu0
      %v928 = vadd.f32 %v703, %v927
      %v929 = vpop.f32.mrb[0].mxu0
      %930 = vmatprep.mubr.f32.mxu0 %v327
      %931 = vmatmul.mubr.f32.gmra.mrb[0].mxu0 %v326
      %v932 = vpop.f32.mrb[0].mxu0
      %v933 = vadd.f32 %v708, %v932
      %v934 = vpop.f32.mrb[0].mxu0
      %935 = vmatprep.mubr.f32.mxu0 %v334
      %936 = vmatmul.mubr.f32.gmra.mrb[0].mxu0 %v333
      %v937 = vpop.f32.mrb[0].mxu0
      %v938 = vadd.f32 %v713, %v937
      %v939 = vpop.f32.mrb[0].mxu0
      %940 = vmatprep.mubr.f32.mxu0 %v341
      %941 = vmatmul.mubr.f32.gmra.mrb[0].mxu0 %v340
      %v942 = vpop.f32.mrb[0].mxu0
      %v943 = vadd.f32 %v718, %v942
      %v944 = vpop.f32.mrb[0].mxu0
      %945 = vmatprep.mubr.f32.mxu0 %v348
      %946 = vmatmul.mubr.f32.gmra.mrb[0].mxu0 %v347
      %v947 = vpop.f32.mrb[0].mxu0
      %v948 = vadd.f32 %v723, %v947
      %v949 = vpop.f32.mrb[0].mxu0
      %950 = vmatprep.mubr.f32.mxu0 %v355
      %951 = vmatmul.mubr.f32.gmra.mrb[0].mxu0 %v354
      %v952 = vpop.f32.mrb[0].mxu0
      %v953 = vadd.f32 %v728, %v952
      %v954 = vpop.f32.mrb[0].mxu0
      %955 = vmatprep.mubr.f32.mxu0 %v362
      %956 = vmatmul.mubr.f32.gmra.mrb[0].mxu0 %v361
      %v957 = vpop.f32.mrb[0].mxu0
      %v958 = vadd.f32 %v733, %v957
      %v959 = vpop.f32.mrb[0].mxu0
      %960 = vmatprep.mubr.f32.mxu0 %v369
      %961 = vmatmul.mubr.f32.gmra.mrb[0].mxu0 %v368
      %v962 = vpop.f32.mrb[0].mxu0
      %v963 = vadd.f32 %v738, %v962
      %v964 = vpop.f32.mrb[0].mxu0
      %965 = vmatprep.mubr.f32.mxu0 %v376
      %966 = vmatmul.mubr.f32.gmra.mrb[0].mxu0 %v375
      %v967 = vpop.f32.mrb[0].mxu0
      %v968 = vadd.f32 %v743, %v967
      %v969 = vpop.f32.mrb[0].mxu0
      %970 = vmatprep.mubr.f32.mxu0 %v383
      %971 = vmatmul.mubr.f32.gmra.mrb[0].mxu0 %v382
      %v972 = vpop.f32.mrb[0].mxu0
      %v973 = vadd.f32 %v748, %v972
      %v974 = vpop.f32.mrb[0].mxu0
      %975 = vmatprep.mubr.f32.mxu0 %v390
      %976 = vmatmul.mubr.f32.gmra.mrb[0].mxu0 %v389
      %v977 = vpop.f32.mrb[0].mxu0
      %v978 = vadd.f32 %v753, %v977
      %v979 = vpop.f32.mrb[0].mxu0
      %980 = vmatprep.mubr.f32.mxu0 %v397
      %981 = vmatmul.mubr.f32.gmra.mrb[0].mxu0 %v396
      %v982 = vpop.f32.mrb[0].mxu0
      %v983 = vadd.f32 %v758, %v982
      %v984 = vpop.f32.mrb[0].mxu0
      %985 = vmatprep.mubr.f32.mxu0 %v404
      %986 = vmatmul.mubr.f32.gmra.mrb[0].mxu0 %v403
      %v987 = vpop.f32.mrb[0].mxu0
      %v988 = vadd.f32 %v763, %v987
      %v989 = vpop.f32.mrb[0].mxu0
      %990 = vmatprep.mubr.f32.mxu0 %v411
      %991 = vmatmul.mubr.f32.gmra.mrb[0].mxu0 %v410
      %v992 = vpop.f32.mrb[0].mxu0
      %v993 = vadd.f32 %v768, %v992
      %v994 = vpop.f32.mrb[0].mxu0
      %995 = vmatprep.mubr.f32.mxu0 %v418
      %996 = vmatmul.mubr.f32.gmra.mrb[0].mxu0 %v417
      %v997 = vpop.f32.mrb[0].mxu0
      %v998 = vadd.f32 %v773, %v997
      %v999 = vpop.f32.mrb[0].mxu0
      %1000 = vmatprep.mubr.f32.mxu0 %v425
      %1001 = vmatmul.mubr.f32.gmra.mrb[0].mxu0 %v424
      %v1002 = vpop.f32.mrb[0].mxu0
      %v1003 = vadd.f32 %v778, %v1002
      %v1004 = vpop.f32.mrb[0].mxu0
      %1005 = vmatprep.mubr.f32.mxu0 %v432
      %1006 = vmatmul.mubr.f32.gmra.mrb[0].mxu0 %v431
      %v1007 = vpop.f32.mrb[0].mxu0
      %v1008 = vadd.f32 %v783, %v1007
      %v1009 = vpop.f32.mrb[0].mxu0
      %1010 = vmatprep.mubr.f32.mxu0 %v439
      %1011 = vmatmul.mubr.f32.gmra.mrb[0].mxu0 %v438
      %v1012 = vpop.f32.mrb[0].mxu0
      %v1013 = vadd.f32 %v788, %v1012
      %v1014 = vpop.f32.mrb[0].mxu0
      %1015 = vmatprep.mubr.f32.mxu0 %v446
      %1016 = vmatmul.mubr.f32.gmra.mrb[0].mxu0 %v445
      %v1017 = vpop.f32.mrb[0].mxu0
      %v1018 = vadd.f32 %v793, %v1017
      %v1019 = vpop.f32.mrb[0].mxu0
      %1020 = vmatprep.mubr.f32.mxu0 %v453
      %1021 = vmatmul.mubr.f32.gmra.mrb[0].mxu0 %v452
      %v1022 = vpop.f32.mrb[0].mxu0
      %v1023 = vadd.f32 %v798, %v1022
      %v1024 = vpop.f32.mrb[0].mxu0
      %1025 = vdwg.mxu0
      %1026 = vmatprep.subr.mxu0 0.0
      %1027 = vmatpush1.msra.mxu0 %v521
      %1028 = vmatprep.subr.mxu0 0.0
      %1029 = vmatpush1.msra.mxu0 %v522
      %1030 = vmatprep.subr.mxu0 0.0
      %1031 = vmatpush1.msra.mxu0 %v523
      %1032 = vmatprep.subr.mxu0 0.0
      %1033 = vmatpush1.msra.mxu0 %v524
      %1034 = vmatprep.subr.mxu0 0.0
      %1035 = vmatpush1.msra.mxu0 %v525
      %1036 = vmatprep.subr.mxu0 0.0
      %1037 = vmatpush1.msra.mxu0 %v526
      %1038 = vmatprep.subr.mxu0 0.0
      %1039 = vmatpush1.msra.mxu0 %v527
      %1040 = vmatprep.subr.mxu0 0.0
      %1041 = vmatpush1.msra.mxu0 %v528
      %1042 = vmatprep.subr.mxu0 0.0
      %1043 = vmatpush1.msra.mxu0 %v529
      %1044 = vmatprep.subr.mxu0 0.0
      %1045 = vmatpush1.msra.mxu0 %v530
      %1046 = vmatprep.subr.mxu0 0.0
      %1047 = vmatpush1.msra.mxu0 %v531
      %1048 = vmatprep.subr.mxu0 0.0
      %1049 = vmatpush1.msra.mxu0 %v532
      %1050 = vmatprep.subr.mxu0 0.0
      %1051 = vmatpush1.msra.mxu0 %v533
      %1052 = vmatprep.subr.mxu0 0.0
      %1053 = vmatpush1.msra.mxu0 %v534
      %1054 = vmatprep.subr.mxu0 0.0
      %1055 = vmatpush1.msra.mxu0 %v535
      %1056 = vmatprep.subr.mxu0 0.0
      %1057 = vmatpush1.msra.mxu0 %v536
      %1058 = vmatprep.subr.mxu0 0.0
      %1059 = vmatpush1.msra.mxu0 %v537
      %1060 = vmatprep.subr.mxu0 0.0
      %1061 = vmatpush1.msra.mxu0 %v538
      %1062 = vmatprep.subr.mxu0 0.0
      %1063 = vmatpush1.msra.mxu0 %v539
      %1064 = vmatprep.subr.mxu0 0.0
      %1065 = vmatpush1.msra.mxu0 %v540
      %1066 = vmatprep.subr.mxu0 0.0
      %1067 = vmatpush1.msra.mxu0 %v541
      %1068 = vmatprep.subr.mxu0 0.0
      %1069 = vmatpush1.msra.mxu0 %v542
      %1070 = vmatprep.subr.mxu0 0.0
      %1071 = vmatpush1.msra.mxu0 %v543
      %1072 = vmatprep.subr.mxu0 0.0
      %1073 = vmatpush1.msra.mxu0 %v544
      %1074 = vmatprep.subr.mxu0 0.0
      %1075 = vmatpush1.msra.mxu0 %v545
      %1076 = vmatprep.subr.mxu0 0.0
      %1077 = vmatpush1.msra.mxu0 %v546
      %1078 = vmatprep.subr.mxu0 0.0
      %1079 = vmatpush1.msra.mxu0 %v547
      %1080 = vmatprep.subr.mxu0 0.0
      %1081 = vmatpush1.msra.mxu0 %v548
      %1082 = vmatprep.subr.mxu0 0.0
      %1083 = vmatpush1.msra.mxu0 %v549
      %1084 = vmatprep.subr.mxu0 0.0
      %1085 = vmatpush1.msra.mxu0 %v550
      %1086 = vmatprep.subr.mxu0 0.0
      %1087 = vmatpush1.msra.mxu0 %v551
      %1088 = vmatprep.subr.mxu0 0.0
      %1089 = vmatpush1.msra.mxu0 %v552
      %1090 = vmatprep.mubr.f32.mxu0 %v238
      %1091 = vmatmul.mubr.f32.gmra.mrb[0].mxu0 %v237
      %v1092 = vpop.f32.mrb[0].mxu0
      %v1093 = vadd.f32 %v868, %v1092
      %v1094 = vpop.f32.mrb[0].mxu0
      %1095 = vmatprep.mubr.f32.mxu0 %v245
      %1096 = vmatmul.mubr.f32.gmra.mrb[0].mxu0 %v244
      %v1097 = vpop.f32.mrb[0].mxu0
      %v1098 = vadd.f32 %v873, %v1097
      %v1099 = vpop.f32.mrb[0].mxu0
      %1100 = vmatprep.mubr.f32.mxu0 %v252
      %1101 = vmatmul.mubr.f32.gmra.mrb[0].mxu0 %v251
      %v1102 = vpop.f32.mrb[0].mxu0
      %v1103 = vadd.f32 %v878, %v1102
      %v1104 = vpop.f32.mrb[0].mxu0
      %1105 = vmatprep.mubr.f32.mxu0 %v259
      %1106 = vmatmul.mubr.f32.gmra.mrb[0].mxu0 %v258
      %v1107 = vpop.f32.mrb[0].mxu0
      %v1108 = vadd.f32 %v883, %v1107
      %v1109 = vpop.f32.mrb[0].mxu0
      %1110 = vmatprep.mubr.f32.mxu0 %v266
      %1111 = vmatmul.mubr.f32.gmra.mrb[0].mxu0 %v265
      %v1112 = vpop.f32.mrb[0].mxu0
      %v1113 = vadd.f32 %v888, %v1112
      %v1114 = vpop.f32.mrb[0].mxu0
      %1115 = vmatprep.mubr.f32.mxu0 %v273
      %1116 = vmatmul.mubr.f32.gmra.mrb[0].mxu0 %v272
      %v1117 = vpop.f32.mrb[0].mxu0
      %v1118 = vadd.f32 %v893, %v1117
      %v1119 = vpop.f32.mrb[0].mxu0
      %1120 = vmatprep.mubr.f32.mxu0 %v280
      %1121 = vmatmul.mubr.f32.gmra.mrb[0].mxu0 %v279
      %v1122 = vpop.f32.mrb[0].mxu0
      %v1123 = vadd.f32 %v898, %v1122
      %v1124 = vpop.f32.mrb[0].mxu0
      %1125 = vmatprep.mubr.f32.mxu0 %v287
      %1126 = vmatmul.mubr.f32.gmra.mrb[0].mxu0 %v286
      %v1127 = vpop.f32.mrb[0].mxu0
      %v1128 = vadd.f32 %v903, %v1127
      %v1129 = vpop.f32.mrb[0].mxu0
      %1130 = vmatprep.mubr.f32.mxu0 %v294
      %1131 = vmatmul.mubr.f32.gmra.mrb[0].mxu0 %v293
      %v1132 = vpop.f32.mrb[0].mxu0
      %v1133 = vadd.f32 %v908, %v1132
      %v1134 = vpop.f32.mrb[0].mxu0
      %1135 = vmatprep.mubr.f32.mxu0 %v301
      %1136 = vmatmul.mubr.f32.gmra.mrb[0].mxu0 %v300
      %v1137 = vpop.f32.mrb[0].mxu0
      %v1138 = vadd.f32 %v913, %v1137
      %v1139 = vpop.f32.mrb[0].mxu0
      %1140 = vmatprep.mubr.f32.mxu0 %v308
      %1141 = vmatmul.mubr.f32.gmra.mrb[0].mxu0 %v307
      %v1142 = vpop.f32.mrb[0].mxu0
      %v1143 = vadd.f32 %v918, %v1142
      %v1144 = vpop.f32.mrb[0].mxu0
      %1145 = vmatprep.mubr.f32.mxu0 %v315
      %1146 = vmatmul.mubr.f32.gmra.mrb[0].mxu0 %v314
      %v1147 = vpop.f32.mrb[0].mxu0
      %v1148 = vadd.f32 %v923, %v1147
      %v1149 = vpop.f32.mrb[0].mxu0
      %1150 = vmatprep.mubr.f32.mxu0 %v322
      %1151 = vmatmul.mubr.f32.gmra.mrb[0].mxu0 %v321
      %v1152 = vpop.f32.mrb[0].mxu0
      %v1153 = vadd.f32 %v928, %v1152
      %v1154 = vpop.f32.mrb[0].mxu0
      %1155 = vmatprep.mubr.f32.mxu0 %v329
      %1156 = vmatmul.mubr.f32.gmra.mrb[0].mxu0 %v328
      %v1157 = vpop.f32.mrb[0].mxu0
      %v1158 = vadd.f32 %v933, %v1157
      %v1159 = vpop.f32.mrb[0].mxu0
      %1160 = vmatprep.mubr.f32.mxu0 %v336
      %1161 = vmatmul.mubr.f32.gmra.mrb[0].mxu0 %v335
      %v1162 = vpop.f32.mrb[0].mxu0
      %v1163 = vadd.f32 %v938, %v1162
      %v1164 = vpop.f32.mrb[0].mxu0
      %1165 = vmatprep.mubr.f32.mxu0 %v343
      %1166 = vmatmul.mubr.f32.gmra.mrb[0].mxu0 %v342
      %v1167 = vpop.f32.mrb[0].mxu0
      %v1168 = vadd.f32 %v943, %v1167
      %v1169 = vpop.f32.mrb[0].mxu0
      %1170 = vmatprep.mubr.f32.mxu0 %v350
      %1171 = vmatmul.mubr.f32.gmra.mrb[0].mxu0 %v349
      %v1172 = vpop.f32.mrb[0].mxu0
      %v1173 = vadd.f32 %v948, %v1172
      %v1174 = vpop.f32.mrb[0].mxu0
      %1175 = vmatprep.mubr.f32.mxu0 %v357
      %1176 = vmatmul.mubr.f32.gmra.mrb[0].mxu0 %v356
      %v1177 = vpop.f32.mrb[0].mxu0
      %v1178 = vadd.f32 %v953, %v1177
      %v1179 = vpop.f32.mrb[0].mxu0
      %1180 = vmatprep.mubr.f32.mxu0 %v364
      %1181 = vmatmul.mubr.f32.gmra.mrb[0].mxu0 %v363
      %v1182 = vpop.f32.mrb[0].mxu0
      %v1183 = vadd.f32 %v958, %v1182
      %v1184 = vpop.f32.mrb[0].mxu0
      %1185 = vmatprep.mubr.f32.mxu0 %v371
      %1186 = vmatmul.mubr.f32.gmra.mrb[0].mxu0 %v370
      %v1187 = vpop.f32.mrb[0].mxu0
      %v1188 = vadd.f32 %v963, %v1187
      %v1189 = vpop.f32.mrb[0].mxu0
      %1190 = vmatprep.mubr.f32.mxu0 %v378
      %1191 = vmatmul.mubr.f32.gmra.mrb[0].mxu0 %v377
      %v1192 = vpop.f32.mrb[0].mxu0
      %v1193 = vadd.f32 %v968, %v1192
      %v1194 = vpop.f32.mrb[0].mxu0
      %1195 = vmatprep.mubr.f32.mxu0 %v385
      %1196 = vmatmul.mubr.f32.gmra.mrb[0].mxu0 %v384
      %v1197 = vpop.f32.mrb[0].mxu0
      %v1198 = vadd.f32 %v973, %v1197
      %v1199 = vpop.f32.mrb[0].mxu0
      %1200 = vmatprep.mubr.f32.mxu0 %v392
      %1201 = vmatmul.mubr.f32.gmra.mrb[0].mxu0 %v391
      %v1202 = vpop.f32.mrb[0].mxu0
      %v1203 = vadd.f32 %v978, %v1202
      %v1204 = vpop.f32.mrb[0].mxu0
      %1205 = vmatprep.mubr.f32.mxu0 %v399
      %1206 = vmatmul.mubr.f32.gmra.mrb[0].mxu0 %v398
      %v1207 = vpop.f32.mrb[0].mxu0
      %v1208 = vadd.f32 %v983, %v1207
      %v1209 = vpop.f32.mrb[0].mxu0
      %1210 = vmatprep.mubr.f32.mxu0 %v406
      %1211 = vmatmul.mubr.f32.gmra.mrb[0].mxu0 %v405
      %v1212 = vpop.f32.mrb[0].mxu0
      %v1213 = vadd.f32 %v988, %v1212
      %v1214 = vpop.f32.mrb[0].mxu0
      %1215 = vmatprep.mubr.f32.mxu0 %v413
      %1216 = vmatmul.mubr.f32.gmra.mrb[0].mxu0 %v412
      %v1217 = vpop.f32.mrb[0].mxu0
      %v1218 = vadd.f32 %v993, %v1217
      %v1219 = vpop.f32.mrb[0].mxu0
      %1220 = vmatprep.mubr.f32.mxu0 %v420
      %1221 = vmatmul.mubr.f32.gmra.mrb[0].mxu0 %v419
      %v1222 = vpop.f32.mrb[0].mxu0
      %v1223 = vadd.f32 %v998, %v1222
      %v1224 = vpop.f32.mrb[0].mxu0
      %1225 = vmatprep.mubr.f32.mxu0 %v427
      %1226 = vmatmul.mubr.f32.gmra.mrb[0].mxu0 %v426
      %v1227 = vpop.f32.mrb[0].mxu0
      %v1228 = vadd.f32 %v1003, %v1227
      %v1229 = vpop.f32.mrb[0].mxu0
      %1230 = vmatprep.mubr.f32.mxu0 %v434
      %1231 = vmatmul.mubr.f32.gmra.mrb[0].mxu0 %v433
      %v1232 = vpop.f32.mrb[0].mxu0
      %v1233 = vadd.f32 %v1008, %v1232
      %v1234 = vpop.f32.mrb[0].mxu0
      %1235 = vmatprep.mubr.f32.mxu0 %v441
      %1236 = vmatmul.mubr.f32.gmra.mrb[0].mxu0 %v440
      %v1237 = vpop.f32.mrb[0].mxu0
      %v1238 = vadd.f32 %v1013, %v1237
      %v1239 = vpop.f32.mrb[0].mxu0
      %1240 = vmatprep.mubr.f32.mxu0 %v448
      %1241 = vmatmul.mubr.f32.gmra.mrb[0].mxu0 %v447
      %v1242 = vpop.f32.mrb[0].mxu0
      %v1243 = vadd.f32 %v1018, %v1242
      %v1244 = vpop.f32.mrb[0].mxu0
      %1245 = vmatprep.mubr.f32.mxu0 %v455
      %1246 = vmatmul.mubr.f32.gmra.mrb[0].mxu0 %v454
      %v1247 = vpop.f32.mrb[0].mxu0
      %v1248 = vadd.f32 %v1023, %v1247
      %v1249 = vpop.f32.mrb[0].mxu0
      %1250 = vdwg.mxu0
      %1251 = vmatprep.subr.mxu0 0.0
      %1252 = vmatpush1.msra.mxu0 %v553
      %1253 = vmatprep.subr.mxu0 0.0
      %1254 = vmatpush1.msra.mxu0 %v554
      %1255 = vmatprep.subr.mxu0 0.0
      %1256 = vmatpush1.msra.mxu0 %v555
      %1257 = vmatprep.subr.mxu0 0.0
      %1258 = vmatpush1.msra.mxu0 %v556
      %1259 = vmatprep.subr.mxu0 0.0
      %1260 = vmatpush1.msra.mxu0 %v557
      %1261 = vmatprep.subr.mxu0 0.0
      %1262 = vmatpush1.msra.mxu0 %v558
      %1263 = vmatprep.subr.mxu0 0.0
      %1264 = vmatpush1.msra.mxu0 %v559
      %1265 = vmatprep.subr.mxu0 0.0
      %1266 = vmatpush1.msra.mxu0 %v560
      %1267 = vmatprep.subr.mxu0 0.0
      %1268 = vmatpush1.msra.mxu0 %v561
      %1269 = vmatprep.subr.mxu0 0.0
      %1270 = vmatpush1.msra.mxu0 %v562
      %1271 = vmatprep.subr.mxu0 0.0
      %1272 = vmatpush1.msra.mxu0 %v563
      %1273 = vmatprep.subr.mxu0 0.0
      %1274 = vmatpush1.msra.mxu0 %v564
      %1275 = vmatprep.subr.mxu0 0.0
      %1276 = vmatpush1.msra.mxu0 %v565
      %1277 = vmatprep.subr.mxu0 0.0
      %1278 = vmatpush1.msra.mxu0 %v566
      %1279 = vmatprep.subr.mxu0 0.0
      %1280 = vmatpush1.msra.mxu0 %v567
      %1281 = vmatprep.subr.mxu0 0.0
      %1282 = vmatpush1.msra.mxu0 %v568
      %1283 = vmatprep.subr.mxu0 0.0
      %1284 = vmatpush1.msra.mxu0 0.0
      %1285 = vmatprep.subr.mxu0 0.0
      %1286 = vmatpush1.msra.mxu0 0.0
      %1287 = vmatprep.subr.mxu0 0.0
      %1288 = vmatpush1.msra.mxu0 0.0
      %1289 = vmatprep.subr.mxu0 0.0
      %1290 = vmatpush1.msra.mxu0 0.0
      %1291 = vmatprep.subr.mxu0 0.0
      %1292 = vmatpush1.msra.mxu0 0.0
      %1293 = vmatprep.subr.mxu0 0.0
      %1294 = vmatpush1.msra.mxu0 0.0
      %1295 = vmatprep.subr.mxu0 0.0
      %1296 = vmatpush1.msra.mxu0 0.0
      %1297 = vmatprep.subr.mxu0 0.0
      %1298 = vmatpush1.msra.mxu0 0.0
      %1299 = vmatprep.subr.mxu0 0.0
      %1300 = vmatpush1.msra.mxu0 0.0
      %1301 = vmatprep.subr.mxu0 0.0
      %1302 = vmatpush1.msra.mxu0 0.0
      %1303 = vmatprep.subr.mxu0 0.0
      %1304 = vmatpush1.msra.mxu0 0.0
      %1305 = vmatprep.subr.mxu0 0.0
      %1306 = vmatpush1.msra.mxu0 0.0
      %1307 = vmatprep.subr.mxu0 0.0
      %1308 = vmatpush1.msra.mxu0 0.0
      %1309 = vmatprep.subr.mxu0 0.0
      %1310 = vmatpush1.msra.mxu0 0.0
      %1311 = vmatprep.subr.mxu0 0.0
      %1312 = vmatpush1.msra.mxu0 0.0
      %1313 = vmatprep.subr.mxu0 0.0
      %1314 = vmatpush1.msra.mxu0 0.0
      %1315 = vmatprep.mubr.f32.mxu0 0.0
      %1316 = vmatmul.mubr.f32.gmra.mrb[0].mxu0 %v239
      %v1317 = vpop.f32.mrb[0].mxu0
      %v1318 = vadd.f32 %v1093, %v1317
      %v1319 = vpop.f32.mrb[0].mxu0
      %1320 = vmatprep.mubr.f32.mxu0 0.0
      %1321 = vmatmul.mubr.f32.gmra.mrb[0].mxu0 %v246
      %v1322 = vpop.f32.mrb[0].mxu0
      %v1323 = vadd.f32 %v1098, %v1322
      %v1324 = vpop.f32.mrb[0].mxu0
      %1325 = vmatprep.mubr.f32.mxu0 0.0
      %1326 = vmatmul.mubr.f32.gmra.mrb[0].mxu0 %v253
      %v1327 = vpop.f32.mrb[0].mxu0
      %v1328 = vadd.f32 %v1103, %v1327
      %v1329 = vpop.f32.mrb[0].mxu0
      %1330 = vmatprep.mubr.f32.mxu0 0.0
      %1331 = vmatmul.mubr.f32.gmra.mrb[0].mxu0 %v260
      %v1332 = vpop.f32.mrb[0].mxu0
      %v1333 = vadd.f32 %v1108, %v1332
      %v1334 = vpop.f32.mrb[0].mxu0
      %1335 = vmatprep.mubr.f32.mxu0 0.0
      %1336 = vmatmul.mubr.f32.gmra.mrb[0].mxu0 %v267
      %v1337 = vpop.f32.mrb[0].mxu0
      %v1338 = vadd.f32 %v1113, %v1337
      %v1339 = vpop.f32.mrb[0].mxu0
      %1340 = vmatprep.mubr.f32.mxu0 0.0
      %1341 = vmatmul.mubr.f32.gmra.mrb[0].mxu0 %v274
      %v1342 = vpop.f32.mrb[0].mxu0
      %v1343 = vadd.f32 %v1118, %v1342
      %v1344 = vpop.f32.mrb[0].mxu0
      %1345 = vmatprep.mubr.f32.mxu0 0.0
      %1346 = vmatmul.mubr.f32.gmra.mrb[0].mxu0 %v281
      %v1347 = vpop.f32.mrb[0].mxu0
      %v1348 = vadd.f32 %v1123, %v1347
      %v1349 = vpop.f32.mrb[0].mxu0
      %1350 = vmatprep.mubr.f32.mxu0 0.0
      %1351 = vmatmul.mubr.f32.gmra.mrb[0].mxu0 %v288
      %v1352 = vpop.f32.mrb[0].mxu0
      %v1353 = vadd.f32 %v1128, %v1352
      %v1354 = vpop.f32.mrb[0].mxu0
      %1355 = vmatprep.mubr.f32.mxu0 0.0
      %1356 = vmatmul.mubr.f32.gmra.mrb[0].mxu0 %v295
      %v1357 = vpop.f32.mrb[0].mxu0
      %v1358 = vadd.f32 %v1133, %v1357
      %v1359 = vpop.f32.mrb[0].mxu0
      %1360 = vmatprep.mubr.f32.mxu0 0.0
      %1361 = vmatmul.mubr.f32.gmra.mrb[0].mxu0 %v302
      %v1362 = vpop.f32.mrb[0].mxu0
      %v1363 = vadd.f32 %v1138, %v1362
      %v1364 = vpop.f32.mrb[0].mxu0
      %1365 = vmatprep.mubr.f32.mxu0 0.0
      %1366 = vmatmul.mubr.f32.gmra.mrb[0].mxu0 %v309
      %v1367 = vpop.f32.mrb[0].mxu0
      %v1368 = vadd.f32 %v1143, %v1367
      %v1369 = vpop.f32.mrb[0].mxu0
      %1370 = vmatprep.mubr.f32.mxu0 0.0
      %1371 = vmatmul.mubr.f32.gmra.mrb[0].mxu0 %v316
      %v1372 = vpop.f32.mrb[0].mxu0
      %v1373 = vadd.f32 %v1148, %v1372
      %v1374 = vpop.f32.mrb[0].mxu0
      %1375 = vmatprep.mubr.f32.mxu0 0.0
      %1376 = vmatmul.mubr.f32.gmra.mrb[0].mxu0 %v323
      %v1377 = vpop.f32.mrb[0].mxu0
      %v1378 = vadd.f32 %v1153, %v1377
      %v1379 = vpop.f32.mrb[0].mxu0
      %1380 = vmatprep.mubr.f32.mxu0 0.0
      %1381 = vmatmul.mubr.f32.gmra.mrb[0].mxu0 %v330
      %v1382 = vpop.f32.mrb[0].mxu0
      %v1383 = vadd.f32 %v1158, %v1382
      %v1384 = vpop.f32.mrb[0].mxu0
      %1385 = vmatprep.mubr.f32.mxu0 0.0
      %1386 = vmatmul.mubr.f32.gmra.mrb[0].mxu0 %v337
      %v1387 = vpop.f32.mrb[0].mxu0
      %v1388 = vadd.f32 %v1163, %v1387
      %v1389 = vpop.f32.mrb[0].mxu0
      %1390 = vmatprep.mubr.f32.mxu0 0.0
      %1391 = vmatmul.mubr.f32.gmra.mrb[0].mxu0 %v344
      %v1392 = vpop.f32.mrb[0].mxu0
      %v1393 = vadd.f32 %v1168, %v1392
      %v1394 = vpop.f32.mrb[0].mxu0
      %1395 = vmatprep.mubr.f32.mxu0 0.0
      %1396 = vmatmul.mubr.f32.gmra.mrb[0].mxu0 %v351
      %v1397 = vpop.f32.mrb[0].mxu0
      %v1398 = vadd.f32 %v1173, %v1397
      %v1399 = vpop.f32.mrb[0].mxu0
      %1400 = vmatprep.mubr.f32.mxu0 0.0
      %1401 = vmatmul.mubr.f32.gmra.mrb[0].mxu0 %v358
      %v1402 = vpop.f32.mrb[0].mxu0
      %v1403 = vadd.f32 %v1178, %v1402
      %v1404 = vpop.f32.mrb[0].mxu0
      %1405 = vmatprep.mubr.f32.mxu0 0.0
      %1406 = vmatmul.mubr.f32.gmra.mrb[0].mxu0 %v365
      %v1407 = vpop.f32.mrb[0].mxu0
      %v1408 = vadd.f32 %v1183, %v1407
      %v1409 = vpop.f32.mrb[0].mxu0
      %1410 = vmatprep.mubr.f32.mxu0 0.0
      %1411 = vmatmul.mubr.f32.gmra.mrb[0].mxu0 %v372
      %v1412 = vpop.f32.mrb[0].mxu0
      %v1413 = vadd.f32 %v1188, %v1412
      %v1414 = vpop.f32.mrb[0].mxu0
      %1415 = vmatprep.mubr.f32.mxu0 0.0
      %1416 = vmatmul.mubr.f32.gmra.mrb[0].mxu0 %v379
      %v1417 = vpop.f32.mrb[0].mxu0
      %v1418 = vadd.f32 %v1193, %v1417
      %v1419 = vpop.f32.mrb[0].mxu0
      %1420 = vmatprep.mubr.f32.mxu0 0.0
      %1421 = vmatmul.mubr.f32.gmra.mrb[0].mxu0 %v386
      %v1422 = vpop.f32.mrb[0].mxu0
      %v1423 = vadd.f32 %v1198, %v1422
      %v1424 = vpop.f32.mrb[0].mxu0
      %1425 = vmatprep.mubr.f32.mxu0 0.0
      %1426 = vmatmul.mubr.f32.gmra.mrb[0].mxu0 %v393
      %v1427 = vpop.f32.mrb[0].mxu0
      %v1428 = vadd.f32 %v1203, %v1427
      %v1429 = vpop.f32.mrb[0].mxu0
      %1430 = vmatprep.mubr.f32.mxu0 0.0
      %1431 = vmatmul.mubr.f32.gmra.mrb[0].mxu0 %v400
      %v1432 = vpop.f32.mrb[0].mxu0
      %v1433 = vadd.f32 %v1208, %v1432
      %v1434 = vpop.f32.mrb[0].mxu0
      %1435 = vmatprep.mubr.f32.mxu0 0.0
      %1436 = vmatmul.mubr.f32.gmra.mrb[0].mxu0 %v407
      %v1437 = vpop.f32.mrb[0].mxu0
      %v1438 = vadd.f32 %v1213, %v1437
      %v1439 = vpop.f32.mrb[0].mxu0
      %1440 = vmatprep.mubr.f32.mxu0 0.0
      %1441 = vmatmul.mubr.f32.gmra.mrb[0].mxu0 %v414
      %v1442 = vpop.f32.mrb[0].mxu0
      %v1443 = vadd.f32 %v1218, %v1442
      %v1444 = vpop.f32.mrb[0].mxu0
      %1445 = vmatprep.mubr.f32.mxu0 0.0
      %1446 = vmatmul.mubr.f32.gmra.mrb[0].mxu0 %v421
      %v1447 = vpop.f32.mrb[0].mxu0
      %v1448 = vadd.f32 %v1223, %v1447
      %v1449 = vpop.f32.mrb[0].mxu0
      %1450 = vmatprep.mubr.f32.mxu0 0.0
      %1451 = vmatmul.mubr.f32.gmra.mrb[0].mxu0 %v428
      %v1452 = vpop.f32.mrb[0].mxu0
      %v1453 = vadd.f32 %v1228, %v1452
      %v1454 = vpop.f32.mrb[0].mxu0
      %1455 = vmatprep.mubr.f32.mxu0 0.0
      %1456 = vmatmul.mubr.f32.gmra.mrb[0].mxu0 %v435
      %v1457 = vpop.f32.mrb[0].mxu0
      %v1458 = vadd.f32 %v1233, %v1457
      %v1459 = vpop.f32.mrb[0].mxu0
      %1460 = vmatprep.mubr.f32.mxu0 0.0
      %1461 = vmatmul.mubr.f32.gmra.mrb[0].mxu0 %v442
      %v1462 = vpop.f32.mrb[0].mxu0
      %v1463 = vadd.f32 %v1238, %v1462
      %v1464 = vpop.f32.mrb[0].mxu0
      %1465 = vmatprep.mubr.f32.mxu0 0.0
      %1466 = vmatmul.mubr.f32.gmra.mrb[0].mxu0 %v449
      %v1467 = vpop.f32.mrb[0].mxu0
      %v1468 = vadd.f32 %v1243, %v1467
      %v1469 = vpop.f32.mrb[0].mxu0
      %1470 = vmatprep.mubr.f32.mxu0 0.0
      %1471 = vmatmul.mubr.f32.gmra.mrb[0].mxu0 %v456
      %v1472 = vpop.f32.mrb[0].mxu0
      %v1473 = vadd.f32 %v1248, %v1472
      %v1474 = vpop.f32.mrb[0].mxu0
      %1475 = vdwg.mxu0
      %v1476 = vmul.f32 %v1318, 0.1
      %v1477 = vmul.f32 %v1323, 0.1
      %v1478 = vmul.f32 %v1328, 0.1
      %v1479 = vmul.f32 %v1333, 0.1
      %v1480 = vmul.f32 %v1338, 0.1
      %v1481 = vmul.f32 %v1343, 0.1
      %v1482 = vmul.f32 %v1348, 0.1
      %v1483 = vmul.f32 %v1353, 0.1
      %v1484 = vmul.f32 %v1358, 0.1
      %v1485 = vmul.f32 %v1363, 0.1
      %v1486 = vmul.f32 %v1368, 0.1
      %v1487 = vmul.f32 %v1373, 0.1
      %v1488 = vmul.f32 %v1378, 0.1
      %v1489 = vmul.f32 %v1383, 0.1
      %v1490 = vmul.f32 %v1388, 0.1
      %v1491 = vmul.f32 %v1393, 0.1
      %v1492 = vmul.f32 %v1398, 0.1
      %v1493 = vmul.f32 %v1403, 0.1
      %v1494 = vmul.f32 %v1408, 0.1
      %v1495 = vmul.f32 %v1413, 0.1
      %v1496 = vmul.f32 %v1418, 0.1
      %v1497 = vmul.f32 %v1423, 0.1
      %v1498 = vmul.f32 %v1428, 0.1
      %v1499 = vmul.f32 %v1433, 0.1
      %v1500 = vmul.f32 %v1438, 0.1
      %v1501 = vmul.f32 %v1443, 0.1
      %v1502 = vmul.f32 %v1448, 0.1
      %v1503 = vmul.f32 %v1453, 0.1
      %v1504 = vmul.f32 %v1458, 0.1
      %v1505 = vmul.f32 %v1463, 0.1
      %v1506 = vmul.f32 %v1468, 0.1
      %v1507 = vmul.f32 %v1473, 0.1
      %v1508 = vmax.f32 %v1318, %v1476
      %v1509 = vmax.f32 %v1323, %v1477
      %v1510 = vmax.f32 %v1328, %v1478
      %v1511 = vmax.f32 %v1333, %v1479
      %v1512 = vmax.f32 %v1338, %v1480
      %v1513 = vmax.f32 %v1343, %v1481
      %v1514 = vmax.f32 %v1348, %v1482
      %v1515 = vmax.f32 %v1353, %v1483
      %v1516 = vmax.f32 %v1358, %v1484
      %v1517 = vmax.f32 %v1363, %v1485
      %v1518 = vmax.f32 %v1368, %v1486
      %v1519 = vmax.f32 %v1373, %v1487
      %v1520 = vmax.f32 %v1378, %v1488
      %v1521 = vmax.f32 %v1383, %v1489
      %v1522 = vmax.f32 %v1388, %v1490
      %v1523 = vmax.f32 %v1393, %v1491
      %v1524 = vmax.f32 %v1398, %v1492
      %v1525 = vmax.f32 %v1403, %v1493
      %v1526 = vmax.f32 %v1408, %v1494
      %v1527 = vmax.f32 %v1413, %v1495
      %v1528 = vmax.f32 %v1418, %v1496
      %v1529 = vmax.f32 %v1423, %v1497
      %v1530 = vmax.f32 %v1428, %v1498
      %v1531 = vmax.f32 %v1433, %v1499
      %v1532 = vmax.f32 %v1438, %v1500
      %v1533 = vmax.f32 %v1443, %v1501
      %v1534 = vmax.f32 %v1448, %v1502
      %v1535 = vmax.f32 %v1453, %v1503
      %v1536 = vmax.f32 %v1458, %v1504
      %v1537 = vmax.f32 %v1463, %v1505
      %v1538 = vmax.f32 %v1468, %v1506
      %v1539 = vmax.f32 %v1473, %v1507
      %v1540 = vld [vmem:[%s3] sm:$0xff]
      %v1541 = vld [vmem:[%s3 + $0x8] sm:$0xff]
      %v1542 = vld [vmem:[%s3 + $0x10] sm:$0xff]
      %v1543 = vld [vmem:[%s3 + $0x18] sm:$0xff]
      %v1544 = vld [vmem:[%s3 + $0x20] sm:$0xff]
      %v1545 = vld [vmem:[%s3 + $0x28] sm:$0xff]
      %v1546 = vld [vmem:[%s3 + $0x30] sm:$0xff]
      %v1547 = vld [vmem:[%s3 + $0x38] sm:$0xff]
      %v1548 = vld [vmem:[%s3 + $0x40] sm:$0xff]
      %v1549 = vld [vmem:[%s3 + $0x48] sm:$0xff]
      %v1550 = vld [vmem:[%s3 + $0x50] sm:$0xff]
      %v1551 = vld [vmem:[%s3 + $0x58] sm:$0xff]
      %v1552 = vld [vmem:[%s3 + $0x60] sm:$0xff]
      %v1553 = vld [vmem:[%s3 + $0x68] sm:$0xff]
      %v1554 = vld [vmem:[%s3 + $0x70] sm:$0xff]
      %v1555 = vld [vmem:[%s3 + $0x78] sm:$0xff]
      %v1556 = vld [vmem:[%s3 + $0x80] sm:$0xff]
      %v1557 = vld [vmem:[%s3 + $0x88] sm:$0xff]
      %v1558 = vld [vmem:[%s3 + $0x90] sm:$0xff]
      %v1559 = vld [vmem:[%s3 + $0x98] sm:$0xff]
      %v1560 = vld [vmem:[%s3 + $0xa0] sm:$0xff]
      %v1561 = vld [vmem:[%s3 + $0xa8] sm:$0xff]
      %v1562 = vld [vmem:[%s3 + $0xb0] sm:$0xff]
      %v1563 = vld [vmem:[%s3 + $0xb8] sm:$0xff]
      %v1564 = vld [vmem:[%s3 + $0xc0] sm:$0xff]
      %v1565 = vld [vmem:[%s3 + $0xc8] sm:$0xff]
      %v1566 = vld [vmem:[%s3 + $0xd0] sm:$0xff]
      %v1567 = vld [vmem:[%s3 + $0xd8] sm:$0xff]
      %v1568 = vld [vmem:[%s3 + $0xe0] sm:$0xff]
      %v1569 = vld [vmem:[%s3 + $0xe8] sm:$0xff]
      %v1570 = vld [vmem:[%s3 + $0xf0] sm:$0xff]
      %v1571 = vld [vmem:[%s3 + $0xf8] sm:$0xff]
      %v1572 = vld [vmem:[%s3 + $0x100] sm:$0xff]
      %v1573 = vld [vmem:[%s3 + $0x108] sm:$0xff]
      %v1574 = vld [vmem:[%s3 + $0x110] sm:$0xff]
      %v1575 = vld [vmem:[%s3 + $0x118] sm:$0xff]
      %v1576 = vld [vmem:[%s3 + $0x120] sm:$0xff]
      %v1577 = vld [vmem:[%s3 + $0x128] sm:$0xff]
      %v1578 = vld [vmem:[%s3 + $0x130] sm:$0xff]
      %v1579 = vld [vmem:[%s3 + $0x138] sm:$0xff]
      %v1580 = vld [vmem:[%s3 + $0x140] sm:$0xff]
      %v1581 = vld [vmem:[%s3 + $0x148] sm:$0xff]
      %v1582 = vld [vmem:[%s3 + $0x150] sm:$0xff]
      %v1583 = vld [vmem:[%s3 + $0x158] sm:$0xff]
      %v1584 = vld [vmem:[%s3 + $0x160] sm:$0xff]
      %v1585 = vld [vmem:[%s3 + $0x168] sm:$0xff]
      %v1586 = vld [vmem:[%s3 + $0x170] sm:$0xff]
      %v1587 = vld [vmem:[%s3 + $0x178] sm:$0xff]
      %v1588 = vld [vmem:[%s3 + $0x180] sm:$0xff]
      %v1589 = vld [vmem:[%s3 + $0x188] sm:$0xff]
      %v1590 = vld [vmem:[%s3 + $0x190] sm:$0xff]
      %v1591 = vld [vmem:[%s3 + $0x198] sm:$0xff]
      %v1592 = vld [vmem:[%s3 + $0x1a0] sm:$0xff]
      %v1593 = vld [vmem:[%s3 + $0x1a8] sm:$0xff]
      %v1594 = vld [vmem:[%s3 + $0x1b0] sm:$0xff]
      %v1595 = vld [vmem:[%s3 + $0x1b8] sm:$0xff]
      %v1596 = vld [vmem:[%s3 + $0x1c0] sm:$0xff]
      %v1597 = vld [vmem:[%s3 + $0x1c8] sm:$0xff]
      %v1598 = vld [vmem:[%s3 + $0x1d0] sm:$0xff]
      %v1599 = vld [vmem:[%s3 + $0x1d8] sm:$0xff]
      %v1600 = vld [vmem:[%s3 + $0x1e0] sm:$0xff]
      %v1601 = vld [vmem:[%s3 + $0x1e8] sm:$0xff]
      %v1602 = vld [vmem:[%s3 + $0x1f0] sm:$0xff]
      %v1603 = vld [vmem:[%s3 + $0x1f8] sm:$0xff]
      %v1604 = vld [vmem:[%s3 + $0x200] sm:$0xff]
      %v1605 = vld [vmem:[%s3 + $0x208] sm:$0xff]
      %v1606 = vld [vmem:[%s3 + $0x210] sm:$0xff]
      %v1607 = vld [vmem:[%s3 + $0x218] sm:$0xff]
      %v1608 = vld [vmem:[%s3 + $0x220] sm:$0xff]
      %v1609 = vld [vmem:[%s3 + $0x228] sm:$0xff]
      %v1610 = vld [vmem:[%s3 + $0x230] sm:$0xff]
      %v1611 = vld [vmem:[%s3 + $0x238] sm:$0xff]
      %v1612 = vld [vmem:[%s3 + $0x240] sm:$0xff]
      %v1613 = vld [vmem:[%s3 + $0x248] sm:$0xff]
      %v1614 = vld [vmem:[%s3 + $0x250] sm:$0xff]
      %v1615 = vld [vmem:[%s3 + $0x258] sm:$0xff]
      %v1616 = vld [vmem:[%s3 + $0x260] sm:$0xff]
      %v1617 = vld [vmem:[%s3 + $0x268] sm:$0xff]
      %v1618 = vld [vmem:[%s3 + $0x270] sm:$0xff]
      %v1619 = vld [vmem:[%s3 + $0x278] sm:$0xff]
      %v1620 = vld [vmem:[%s3 + $0x280] sm:$0xff]
      %v1621 = vld [vmem:[%s3 + $0x288] sm:$0xff]
      %v1622 = vld [vmem:[%s3 + $0x290] sm:$0xff]
      %v1623 = vld [vmem:[%s3 + $0x298] sm:$0xff]
      %v1624 = vld [vmem:[%s3 + $0x2a0] sm:$0xff]
      %v1625 = vld [vmem:[%s3 + $0x2a8] sm:$0xff]
      %v1626 = vld [vmem:[%s3 + $0x2b0] sm:$0xff]
      %v1627 = vld [vmem:[%s3 + $0x2b8] sm:$0xff]
      %v1628 = vld [vmem:[%s3 + $0x2c0] sm:$0xff]
      %v1629 = vld [vmem:[%s3 + $0x2c8] sm:$0xff]
      %v1630 = vld [vmem:[%s3 + $0x2d0] sm:$0xff]
      %v1631 = vld [vmem:[%s3 + $0x2d8] sm:$0xff]
      %v1632 = vld [vmem:[%s3 + $0x2e0] sm:$0xff]
      %v1633 = vld [vmem:[%s3 + $0x2e8] sm:$0xff]
      %v1634 = vld [vmem:[%s3 + $0x2f0] sm:$0xff]
      %v1635 = vld [vmem:[%s3 + $0x2f8] sm:$0xff]
      %v1636 = vld [vmem:[%s3 + $0x300] sm:$0xff]
      %v1637 = vld [vmem:[%s3 + $0x308] sm:$0xff]
      %v1638 = vld [vmem:[%s3 + $0x310] sm:$0xff]
      %v1639 = vld [vmem:[%s3 + $0x318] sm:$0xff]
      %v1640 = vld [vmem:[%s3 + $0x320] sm:$0xff]
      %v1641 = vld [vmem:[%s3 + $0x328] sm:$0xff]
      %v1642 = vld [vmem:[%s3 + $0x330] sm:$0xff]
      %v1643 = vld [vmem:[%s3 + $0x338] sm:$0xff]
      %v1644 = vld [vmem:[%s3 + $0x340] sm:$0xff]
      %v1645 = vld [vmem:[%s3 + $0x348] sm:$0xff]
      %v1646 = vld [vmem:[%s3 + $0x350] sm:$0xff]
      %v1647 = vld [vmem:[%s3 + $0x358] sm:$0xff]
      %v1648 = vld [vmem:[%s3 + $0x360] sm:$0xff]
      %v1649 = vld [vmem:[%s3 + $0x368] sm:$0xff]
      %v1650 = vld [vmem:[%s3 + $0x370] sm:$0xff]
      %v1651 = vld [vmem:[%s3 + $0x378] sm:$0xff]
      %v1652 = vld [vmem:[%s4] sm:$0xff]
      %v1654 = vlaneseq
      %v1655 = vshrl.u32 %v1654, 7
      %v1656 = vsub.s32 0, %v1655
      %v1657 = vrot.slane %v1652, %v1656
      %v1658 = vlaneseq
      %v1659 = vshrl.u32 %v1658, 7
      %v1660 = vsub.s32 1, %v1659
      %v1661 = vrot.slane %v1652, %v1660
      %v1662 = vlaneseq
      %v1663 = vshrl.u32 %v1662, 7
      %v1664 = vsub.s32 2, %v1663
      %v1665 = vrot.slane %v1652, %v1664
      %v1666 = vlaneseq
      %v1667 = vshrl.u32 %v1666, 7
      %v1668 = vsub.s32 3, %v1667
      %v1669 = vrot.slane %v1652, %v1668
      %v1670 = vlaneseq
      %v1671 = vshrl.u32 %v1670, 7
      %v1672 = vsub.s32 4, %v1671
      %v1673 = vrot.slane %v1652, %v1672
      %v1674 = vlaneseq
      %v1675 = vshrl.u32 %v1674, 7
      %v1676 = vsub.s32 5, %v1675
      %v1677 = vrot.slane %v1652, %v1676
      %v1678 = vlaneseq
      %v1679 = vshrl.u32 %v1678, 7
      %v1680 = vsub.s32 6, %v1679
      %v1681 = vrot.slane %v1652, %v1680
      %1689 = vmatprep.subr.mxu0 %v1541
      %1690 = vmatpush1.msra.mxu0 %v1540
      %1691 = vmatprep.subr.mxu0 %v1548
      %1692 = vmatpush1.msra.mxu0 %v1547
      %1693 = vmatprep.subr.mxu0 %v1555
      %1694 = vmatpush1.msra.mxu0 %v1554
      %1695 = vmatprep.subr.mxu0 %v1562
      %1696 = vmatpush1.msra.mxu0 %v1561
      %1697 = vmatprep.subr.mxu0 %v1569
      %1698 = vmatpush1.msra.mxu0 %v1568
      %1699 = vmatprep.subr.mxu0 %v1576
      %1700 = vmatpush1.msra.mxu0 %v1575
      %1701 = vmatprep.subr.mxu0 %v1583
      %1702 = vmatpush1.msra.mxu0 %v1582
      %1703 = vmatprep.subr.mxu0 %v1590
      %1704 = vmatpush1.msra.mxu0 %v1589
      %1705 = vmatprep.subr.mxu0 %v1597
      %1706 = vmatpush1.msra.mxu0 %v1596
      %1707 = vmatprep.subr.mxu0 %v1604
      %1708 = vmatpush1.msra.mxu0 %v1603
      %1709 = vmatprep.subr.mxu0 %v1611
      %1710 = vmatpush1.msra.mxu0 %v1610
      %1711 = vmatprep.subr.mxu0 %v1618
      %1712 = vmatpush1.msra.mxu0 %v1617
      %1713 = vmatprep.subr.mxu0 %v1625
      %1714 = vmatpush1.msra.mxu0 %v1624
      %1715 = vmatprep.subr.mxu0 %v1632
      %1716 = vmatpush1.msra.mxu0 %v1631
      %1717 = vmatprep.subr.mxu0 %v1639
      %1718 = vmatpush1.msra.mxu0 %v1638
      %1719 = vmatprep.subr.mxu0 %v1646
      %1720 = vmatpush1.msra.mxu0 %v1645
      %1721 = vmatprep.subr.mxu0 0.0
      %1722 = vmatpush1.msra.mxu0 0.0
      %1723 = vmatprep.subr.mxu0 0.0
      %1724 = vmatpush1.msra.mxu0 0.0
      %1725 = vmatprep.subr.mxu0 0.0
      %1726 = vmatpush1.msra.mxu0 0.0
      %1727 = vmatprep.subr.mxu0 0.0
      %1728 = vmatpush1.msra.mxu0 0.0
      %1729 = vmatprep.subr.mxu0 0.0
      %1730 = vmatpush1.msra.mxu0 0.0
      %1731 = vmatprep.subr.mxu0 0.0
      %1732 = vmatpush1.msra.mxu0 0.0
      %1733 = vmatprep.subr.mxu0 0.0
      %1734 = vmatpush1.msra.mxu0 0.0
      %1735 = vmatprep.subr.mxu0 0.0
      %1736 = vmatpush1.msra.mxu0 0.0
      %1737 = vmatprep.subr.mxu0 0.0
      %1738 = vmatpush1.msra.mxu0 0.0
      %1739 = vmatprep.subr.mxu0 0.0
      %1740 = vmatpush1.msra.mxu0 0.0
      %1741 = vmatprep.subr.mxu0 0.0
      %1742 = vmatpush1.msra.mxu0 0.0
      %1743 = vmatprep.subr.mxu0 0.0
      %1744 = vmatpush1.msra.mxu0 0.0
      %1745 = vmatprep.subr.mxu0 0.0
      %1746 = vmatpush1.msra.mxu0 0.0
      %1747 = vmatprep.subr.mxu0 0.0
      %1748 = vmatpush1.msra.mxu0 0.0
      %1749 = vmatprep.subr.mxu0 0.0
      %1750 = vmatpush1.msra.mxu0 0.0
      %1751 = vmatprep.subr.mxu0 0.0
      %1752 = vmatpush1.msra.mxu0 0.0
      %1753 = vmatprep.mubr.f32.mxu0 0.0
      %1754 = vmatmul.mubr.f32.gmra.mrb[0].mxu0 %v1508
      %v1755 = vpop.f32.mrb[0].mxu0
      %v1756 = vadd.f32 %v1657, %v1755
      %v1757 = vpop.f32.mrb[0].mxu0
      %v1758 = vadd.f32 %v1661, %v1757
      %1759 = vmatprep.mubr.f32.mxu0 0.0
      %1760 = vmatmul.mubr.f32.gmra.mrb[0].mxu0 %v1509
      %v1761 = vpop.f32.mrb[0].mxu0
      %v1762 = vadd.f32 %v1657, %v1761
      %v1763 = vpop.f32.mrb[0].mxu0
      %v1764 = vadd.f32 %v1661, %v1763
      %1765 = vmatprep.mubr.f32.mxu0 0.0
      %1766 = vmatmul.mubr.f32.gmra.mrb[0].mxu0 %v1510
      %v1767 = vpop.f32.mrb[0].mxu0
      %v1768 = vadd.f32 %v1657, %v1767
      %v1769 = vpop.f32.mrb[0].mxu0
      %v1770 = vadd.f32 %v1661, %v1769
      %1771 = vmatprep.mubr.f32.mxu0 0.0
      %1772 = vmatmul.mubr.f32.gmra.mrb[0].mxu0 %v1511
      %v1773 = vpop.f32.mrb[0].mxu0
      %v1774 = vadd.f32 %v1657, %v1773
      %v1775 = vpop.f32.mrb[0].mxu0
      %v1776 = vadd.f32 %v1661, %v1775
      %1777 = vmatprep.mubr.f32.mxu0 0.0
      %1778 = vmatmul.mubr.f32.gmra.mrb[0].mxu0 %v1512
      %v1779 = vpop.f32.mrb[0].mxu0
      %v1780 = vadd.f32 %v1657, %v1779
      %v1781 = vpop.f32.mrb[0].mxu0
      %v1782 = vadd.f32 %v1661, %v1781
      %1783 = vmatprep.mubr.f32.mxu0 0.0
      %1784 = vmatmul.mubr.f32.gmra.mrb[0].mxu0 %v1513
      %v1785 = vpop.f32.mrb[0].mxu0
      %v1786 = vadd.f32 %v1657, %v1785
      %v1787 = vpop.f32.mrb[0].mxu0
      %v1788 = vadd.f32 %v1661, %v1787
      %1789 = vmatprep.mubr.f32.mxu0 0.0
      %1790 = vmatmul.mubr.f32.gmra.mrb[0].mxu0 %v1514
      %v1791 = vpop.f32.mrb[0].mxu0
      %v1792 = vadd.f32 %v1657, %v1791
      %v1793 = vpop.f32.mrb[0].mxu0
      %v1794 = vadd.f32 %v1661, %v1793
      %1795 = vmatprep.mubr.f32.mxu0 0.0
      %1796 = vmatmul.mubr.f32.gmra.mrb[0].mxu0 %v1515
      %v1797 = vpop.f32.mrb[0].mxu0
      %v1798 = vadd.f32 %v1657, %v1797
      %v1799 = vpop.f32.mrb[0].mxu0
      %v1800 = vadd.f32 %v1661, %v1799
      %1801 = vmatprep.mubr.f32.mxu0 0.0
      %1802 = vmatmul.mubr.f32.gmra.mrb[0].mxu0 %v1516
      %v1803 = vpop.f32.mrb[0].mxu0
      %v1804 = vadd.f32 %v1657, %v1803
      %v1805 = vpop.f32.mrb[0].mxu0
      %v1806 = vadd.f32 %v1661, %v1805
      %1807 = vmatprep.mubr.f32.mxu0 0.0
      %1808 = vmatmul.mubr.f32.gmra.mrb[0].mxu0 %v1517
      %v1809 = vpop.f32.mrb[0].mxu0
      %v1810 = vadd.f32 %v1657, %v1809
      %v1811 = vpop.f32.mrb[0].mxu0
      %v1812 = vadd.f32 %v1661, %v1811
      %1813 = vmatprep.mubr.f32.mxu0 0.0
      %1814 = vmatmul.mubr.f32.gmra.mrb[0].mxu0 %v1518
      %v1815 = vpop.f32.mrb[0].mxu0
      %v1816 = vadd.f32 %v1657, %v1815
      %v1817 = vpop.f32.mrb[0].mxu0
      %v1818 = vadd.f32 %v1661, %v1817
      %1819 = vmatprep.mubr.f32.mxu0 0.0
      %1820 = vmatmul.mubr.f32.gmra.mrb[0].mxu0 %v1519
      %v1821 = vpop.f32.mrb[0].mxu0
      %v1822 = vadd.f32 %v1657, %v1821
      %v1823 = vpop.f32.mrb[0].mxu0
      %v1824 = vadd.f32 %v1661, %v1823
      %1825 = vmatprep.mubr.f32.mxu0 0.0
      %1826 = vmatmul.mubr.f32.gmra.mrb[0].mxu0 %v1520
      %v1827 = vpop.f32.mrb[0].mxu0
      %v1828 = vadd.f32 %v1657, %v1827
      %v1829 = vpop.f32.mrb[0].mxu0
      %v1830 = vadd.f32 %v1661, %v1829
      %1831 = vmatprep.mubr.f32.mxu0 0.0
      %1832 = vmatmul.mubr.f32.gmra.mrb[0].mxu0 %v1521
      %v1833 = vpop.f32.mrb[0].mxu0
      %v1834 = vadd.f32 %v1657, %v1833
      %v1835 = vpop.f32.mrb[0].mxu0
      %v1836 = vadd.f32 %v1661, %v1835
      %1837 = vmatprep.mubr.f32.mxu0 0.0
      %1838 = vmatmul.mubr.f32.gmra.mrb[0].mxu0 %v1522
      %v1839 = vpop.f32.mrb[0].mxu0
      %v1840 = vadd.f32 %v1657, %v1839
      %v1841 = vpop.f32.mrb[0].mxu0
      %v1842 = vadd.f32 %v1661, %v1841
      %1843 = vmatprep.mubr.f32.mxu0 0.0
      %1844 = vmatmul.mubr.f32.gmra.mrb[0].mxu0 %v1523
      %v1845 = vpop.f32.mrb[0].mxu0
      %v1846 = vadd.f32 %v1657, %v1845
      %v1847 = vpop.f32.mrb[0].mxu0
      %v1848 = vadd.f32 %v1661, %v1847
      %1849 = vmatprep.mubr.f32.mxu0 0.0
      %1850 = vmatmul.mubr.f32.gmra.mrb[0].mxu0 %v1524
      %v1851 = vpop.f32.mrb[0].mxu0
      %v1852 = vadd.f32 %v1657, %v1851
      %v1853 = vpop.f32.mrb[0].mxu0
      %v1854 = vadd.f32 %v1661, %v1853
      %1855 = vmatprep.mubr.f32.mxu0 0.0
      %1856 = vmatmul.mubr.f32.gmra.mrb[0].mxu0 %v1525
      %v1857 = vpop.f32.mrb[0].mxu0
      %v1858 = vadd.f32 %v1657, %v1857
      %v1859 = vpop.f32.mrb[0].mxu0
      %v1860 = vadd.f32 %v1661, %v1859
      %1861 = vmatprep.mubr.f32.mxu0 0.0
      %1862 = vmatmul.mubr.f32.gmra.mrb[0].mxu0 %v1526
      %v1863 = vpop.f32.mrb[0].mxu0
      %v1864 = vadd.f32 %v1657, %v1863
      %v1865 = vpop.f32.mrb[0].mxu0
      %v1866 = vadd.f32 %v1661, %v1865
      %1867 = vmatprep.mubr.f32.mxu0 0.0
      %1868 = vmatmul.mubr.f32.gmra.mrb[0].mxu0 %v1527
      %v1869 = vpop.f32.mrb[0].mxu0
      %v1870 = vadd.f32 %v1657, %v1869
      %v1871 = vpop.f32.mrb[0].mxu0
      %v1872 = vadd.f32 %v1661, %v1871
      %1873 = vmatprep.mubr.f32.mxu0 0.0
      %1874 = vmatmul.mubr.f32.gmra.mrb[0].mxu0 %v1528
      %v1875 = vpop.f32.mrb[0].mxu0
      %v1876 = vadd.f32 %v1657, %v1875
      %v1877 = vpop.f32.mrb[0].mxu0
      %v1878 = vadd.f32 %v1661, %v1877
      %1879 = vmatprep.mubr.f32.mxu0 0.0
      %1880 = vmatmul.mubr.f32.gmra.mrb[0].mxu0 %v1529
      %v1881 = vpop.f32.mrb[0].mxu0
      %v1882 = vadd.f32 %v1657, %v1881
      %v1883 = vpop.f32.mrb[0].mxu0
      %v1884 = vadd.f32 %v1661, %v1883
      %1885 = vmatprep.mubr.f32.mxu0 0.0
      %1886 = vmatmul.mubr.f32.gmra.mrb[0].mxu0 %v1530
      %v1887 = vpop.f32.mrb[0].mxu0
      %v1888 = vadd.f32 %v1657, %v1887
      %v1889 = vpop.f32.mrb[0].mxu0
      %v1890 = vadd.f32 %v1661, %v1889
      %1891 = vmatprep.mubr.f32.mxu0 0.0
      %1892 = vmatmul.mubr.f32.gmra.mrb[0].mxu0 %v1531
      %v1893 = vpop.f32.mrb[0].mxu0
      %v1894 = vadd.f32 %v1657, %v1893
      %v1895 = vpop.f32.mrb[0].mxu0
      %v1896 = vadd.f32 %v1661, %v1895
      %1897 = vmatprep.mubr.f32.mxu0 0.0
      %1898 = vmatmul.mubr.f32.gmra.mrb[0].mxu0 %v1532
      %v1899 = vpop.f32.mrb[0].mxu0
      %v1900 = vadd.f32 %v1657, %v1899
      %v1901 = vpop.f32.mrb[0].mxu0
      %v1902 = vadd.f32 %v1661, %v1901
      %1903 = vmatprep.mubr.f32.mxu0 0.0
      %1904 = vmatmul.mubr.f32.gmra.mrb[0].mxu0 %v1533
      %v1905 = vpop.f32.mrb[0].mxu0
      %v1906 = vadd.f32 %v1657, %v1905
      %v1907 = vpop.f32.mrb[0].mxu0
      %v1908 = vadd.f32 %v1661, %v1907
      %1909 = vmatprep.mubr.f32.mxu0 0.0
      %1910 = vmatmul.mubr.f32.gmra.mrb[0].mxu0 %v1534
      %v1911 = vpop.f32.mrb[0].mxu0
      %v1912 = vadd.f32 %v1657, %v1911
      %v1913 = vpop.f32.mrb[0].mxu0
      %v1914 = vadd.f32 %v1661, %v1913
      %1915 = vmatprep.mubr.f32.mxu0 0.0
      %1916 = vmatmul.mubr.f32.gmra.mrb[0].mxu0 %v1535
      %v1917 = vpop.f32.mrb[0].mxu0
      %v1918 = vadd.f32 %v1657, %v1917
      %v1919 = vpop.f32.mrb[0].mxu0
      %v1920 = vadd.f32 %v1661, %v1919
      %1921 = vmatprep.mubr.f32.mxu0 0.0
      %1922 = vmatmul.mubr.f32.gmra.mrb[0].mxu0 %v1536
      %v1923 = vpop.f32.mrb[0].mxu0
      %v1924 = vadd.f32 %v1657, %v1923
      %v1925 = vpop.f32.mrb[0].mxu0
      %v1926 = vadd.f32 %v1661, %v1925
      %1927 = vmatprep.mubr.f32.mxu0 0.0
      %1928 = vmatmul.mubr.f32.gmra.mrb[0].mxu0 %v1537
      %v1929 = vpop.f32.mrb[0].mxu0
      %v1930 = vadd.f32 %v1657, %v1929
      %v1931 = vpop.f32.mrb[0].mxu0
      %v1932 = vadd.f32 %v1661, %v1931
      %1933 = vmatprep.mubr.f32.mxu0 0.0
      %1934 = vmatmul.mubr.f32.gmra.mrb[0].mxu0 %v1538
      %v1935 = vpop.f32.mrb[0].mxu0
      %v1936 = vadd.f32 %v1657, %v1935
      %v1937 = vpop.f32.mrb[0].mxu0
      %v1938 = vadd.f32 %v1661, %v1937
      %1939 = vmatprep.mubr.f32.mxu0 0.0
      %1940 = vmatmul.mubr.f32.gmra.mrb[0].mxu0 %v1539
      %v1941 = vpop.f32.mrb[0].mxu0
      %v1942 = vadd.f32 %v1657, %v1941
      %v1943 = vpop.f32.mrb[0].mxu0
      %v1944 = vadd.f32 %v1661, %v1943
      %1945 = vdwg.mxu0
      %1946 = vmatprep.subr.mxu0 %v1543
      %1947 = vmatpush1.msra.mxu0 %v1542
      %1948 = vmatprep.subr.mxu0 %v1550
      %1949 = vmatpush1.msra.mxu0 %v1549
      %1950 = vmatprep.subr.mxu0 %v1557
      %1951 = vmatpush1.msra.mxu0 %v1556
      %1952 = vmatprep.subr.mxu0 %v1564
      %1953 = vmatpush1.msra.mxu0 %v1563
      %1954 = vmatprep.subr.mxu0 %v1571
      %1955 = vmatpush1.msra.mxu0 %v1570
      %1956 = vmatprep.subr.mxu0 %v1578
      %1957 = vmatpush1.msra.mxu0 %v1577
      %1958 = vmatprep.subr.mxu0 %v1585
      %1959 = vmatpush1.msra.mxu0 %v1584
      %1960 = vmatprep.subr.mxu0 %v1592
      %1961 = vmatpush1.msra.mxu0 %v1591
      %1962 = vmatprep.subr.mxu0 %v1599
      %1963 = vmatpush1.msra.mxu0 %v1598
      %1964 = vmatprep.subr.mxu0 %v1606
      %1965 = vmatpush1.msra.mxu0 %v1605
      %1966 = vmatprep.subr.mxu0 %v1613
      %1967 = vmatpush1.msra.mxu0 %v1612
      %1968 = vmatprep.subr.mxu0 %v1620
      %1969 = vmatpush1.msra.mxu0 %v1619
      %1970 = vmatprep.subr.mxu0 %v1627
      %1971 = vmatpush1.msra.mxu0 %v1626
      %1972 = vmatprep.subr.mxu0 %v1634
      %1973 = vmatpush1.msra.mxu0 %v1633
      %1974 = vmatprep.subr.mxu0 %v1641
      %1975 = vmatpush1.msra.mxu0 %v1640
      %1976 = vmatprep.subr.mxu0 %v1648
      %1977 = vmatpush1.msra.mxu0 %v1647
      %1978 = vmatprep.subr.mxu0 0.0
      %1979 = vmatpush1.msra.mxu0 0.0
      %1980 = vmatprep.subr.mxu0 0.0
      %1981 = vmatpush1.msra.mxu0 0.0
      %1982 = vmatprep.subr.mxu0 0.0
      %1983 = vmatpush1.msra.mxu0 0.0
      %1984 = vmatprep.subr.mxu0 0.0
      %1985 = vmatpush1.msra.mxu0 0.0
      %1986 = vmatprep.subr.mxu0 0.0
      %1987 = vmatpush1.msra.mxu0 0.0
      %1988 = vmatprep.subr.mxu0 0.0
      %1989 = vmatpush1.msra.mxu0 0.0
      %1990 = vmatprep.subr.mxu0 0.0
      %1991 = vmatpush1.msra.mxu0 0.0
      %1992 = vmatprep.subr.mxu0 0.0
      %1993 = vmatpush1.msra.mxu0 0.0
      %1994 = vmatprep.subr.mxu0 0.0
      %1995 = vmatpush1.msra.mxu0 0.0
      %1996 = vmatprep.subr.mxu0 0.0
      %1997 = vmatpush1.msra.mxu0 0.0
      %1998 = vmatprep.subr.mxu0 0.0
      %1999 = vmatpush1.msra.mxu0 0.0
      %2000 = vmatprep.subr.mxu0 0.0
      %2001 = vmatpush1.msra.mxu0 0.0
      %2002 = vmatprep.subr.mxu0 0.0
      %2003 = vmatpush1.msra.mxu0 0.0
      %2004 = vmatprep.subr.mxu0 0.0
      %2005 = vmatpush1.msra.mxu0 0.0
      %2006 = vmatprep.subr.mxu0 0.0
      %2007 = vmatpush1.msra.mxu0 0.0
      %2008 = vmatprep.subr.mxu0 0.0
      %2009 = vmatpush1.msra.mxu0 0.0
      %2010 = vmatprep.mubr.f32.mxu0 0.0
      %2011 = vmatmul.mubr.f32.gmra.mrb[0].mxu0 %v1508
      %v2012 = vpop.f32.mrb[0].mxu0
      %v2013 = vadd.f32 %v1665, %v2012
      %v2014 = vpop.f32.mrb[0].mxu0
      %v2015 = vadd.f32 %v1669, %v2014
      %2016 = vmatprep.mubr.f32.mxu0 0.0
      %2017 = vmatmul.mubr.f32.gmra.mrb[0].mxu0 %v1509
      %v2018 = vpop.f32.mrb[0].mxu0
      %v2019 = vadd.f32 %v1665, %v2018
      %v2020 = vpop.f32.mrb[0].mxu0
      %v2021 = vadd.f32 %v1669, %v2020
      %2022 = vmatprep.mubr.f32.mxu0 0.0
      %2023 = vmatmul.mubr.f32.gmra.mrb[0].mxu0 %v1510
      %v2024 = vpop.f32.mrb[0].mxu0
      %v2025 = vadd.f32 %v1665, %v2024
      %v2026 = vpop.f32.mrb[0].mxu0
      %v2027 = vadd.f32 %v1669, %v2026
      %2028 = vmatprep.mubr.f32.mxu0 0.0
      %2029 = vmatmul.mubr.f32.gmra.mrb[0].mxu0 %v1511
      %v2030 = vpop.f32.mrb[0].mxu0
      %v2031 = vadd.f32 %v1665, %v2030
      %v2032 = vpop.f32.mrb[0].mxu0
      %v2033 = vadd.f32 %v1669, %v2032
      %2034 = vmatprep.mubr.f32.mxu0 0.0
      %2035 = vmatmul.mubr.f32.gmra.mrb[0].mxu0 %v1512
      %v2036 = vpop.f32.mrb[0].mxu0
      %v2037 = vadd.f32 %v1665, %v2036
      %v2038 = vpop.f32.mrb[0].mxu0
      %v2039 = vadd.f32 %v1669, %v2038
      %2040 = vmatprep.mubr.f32.mxu0 0.0
      %2041 = vmatmul.mubr.f32.gmra.mrb[0].mxu0 %v1513
      %v2042 = vpop.f32.mrb[0].mxu0
      %v2043 = vadd.f32 %v1665, %v2042
      %v2044 = vpop.f32.mrb[0].mxu0
      %v2045 = vadd.f32 %v1669, %v2044
      %2046 = vmatprep.mubr.f32.mxu0 0.0
      %2047 = vmatmul.mubr.f32.gmra.mrb[0].mxu0 %v1514
      %v2048 = vpop.f32.mrb[0].mxu0
      %v2049 = vadd.f32 %v1665, %v2048
      %v2050 = vpop.f32.mrb[0].mxu0
      %v2051 = vadd.f32 %v1669, %v2050
      %2052 = vmatprep.mubr.f32.mxu0 0.0
      %2053 = vmatmul.mubr.f32.gmra.mrb[0].mxu0 %v1515
      %v2054 = vpop.f32.mrb[0].mxu0
      %v2055 = vadd.f32 %v1665, %v2054
      %v2056 = vpop.f32.mrb[0].mxu0
      %v2057 = vadd.f32 %v1669, %v2056
      %2058 = vmatprep.mubr.f32.mxu0 0.0
      %2059 = vmatmul.mubr.f32.gmra.mrb[0].mxu0 %v1516
      %v2060 = vpop.f32.mrb[0].mxu0
      %v2061 = vadd.f32 %v1665, %v2060
      %v2062 = vpop.f32.mrb[0].mxu0
      %v2063 = vadd.f32 %v1669, %v2062
      %2064 = vmatprep.mubr.f32.mxu0 0.0
      %2065 = vmatmul.mubr.f32.gmra.mrb[0].mxu0 %v1517
      %v2066 = vpop.f32.mrb[0].mxu0
      %v2067 = vadd.f32 %v1665, %v2066
      %v2068 = vpop.f32.mrb[0].mxu0
      %v2069 = vadd.f32 %v1669, %v2068
      %2070 = vmatprep.mubr.f32.mxu0 0.0
      %2071 = vmatmul.mubr.f32.gmra.mrb[0].mxu0 %v1518
      %v2072 = vpop.f32.mrb[0].mxu0
      %v2073 = vadd.f32 %v1665, %v2072
      %v2074 = vpop.f32.mrb[0].mxu0
      %v2075 = vadd.f32 %v1669, %v2074
      %2076 = vmatprep.mubr.f32.mxu0 0.0
      %2077 = vmatmul.mubr.f32.gmra.mrb[0].mxu0 %v1519
      %v2078 = vpop.f32.mrb[0].mxu0
      %v2079 = vadd.f32 %v1665, %v2078
      %v2080 = vpop.f32.mrb[0].mxu0
      %v2081 = vadd.f32 %v1669, %v2080
      %2082 = vmatprep.mubr.f32.mxu0 0.0
      %2083 = vmatmul.mubr.f32.gmra.mrb[0].mxu0 %v1520
      %v2084 = vpop.f32.mrb[0].mxu0
      %v2085 = vadd.f32 %v1665, %v2084
      %v2086 = vpop.f32.mrb[0].mxu0
      %v2087 = vadd.f32 %v1669, %v2086
      %2088 = vmatprep.mubr.f32.mxu0 0.0
      %2089 = vmatmul.mubr.f32.gmra.mrb[0].mxu0 %v1521
      %v2090 = vpop.f32.mrb[0].mxu0
      %v2091 = vadd.f32 %v1665, %v2090
      %v2092 = vpop.f32.mrb[0].mxu0
      %v2093 = vadd.f32 %v1669, %v2092
      %2094 = vmatprep.mubr.f32.mxu0 0.0
      %2095 = vmatmul.mubr.f32.gmra.mrb[0].mxu0 %v1522
      %v2096 = vpop.f32.mrb[0].mxu0
      %v2097 = vadd.f32 %v1665, %v2096
      %v2098 = vpop.f32.mrb[0].mxu0
      %v2099 = vadd.f32 %v1669, %v2098
      %2100 = vmatprep.mubr.f32.mxu0 0.0
      %2101 = vmatmul.mubr.f32.gmra.mrb[0].mxu0 %v1523
      %v2102 = vpop.f32.mrb[0].mxu0
      %v2103 = vadd.f32 %v1665, %v2102
      %v2104 = vpop.f32.mrb[0].mxu0
      %v2105 = vadd.f32 %v1669, %v2104
      %2106 = vmatprep.mubr.f32.mxu0 0.0
      %2107 = vmatmul.mubr.f32.gmra.mrb[0].mxu0 %v1524
      %v2108 = vpop.f32.mrb[0].mxu0
      %v2109 = vadd.f32 %v1665, %v2108
      %v2110 = vpop.f32.mrb[0].mxu0
      %v2111 = vadd.f32 %v1669, %v2110
      %2112 = vmatprep.mubr.f32.mxu0 0.0
      %2113 = vmatmul.mubr.f32.gmra.mrb[0].mxu0 %v1525
      %v2114 = vpop.f32.mrb[0].mxu0
      %v2115 = vadd.f32 %v1665, %v2114
      %v2116 = vpop.f32.mrb[0].mxu0
      %v2117 = vadd.f32 %v1669, %v2116
      %2118 = vmatprep.mubr.f32.mxu0 0.0
      %2119 = vmatmul.mubr.f32.gmra.mrb[0].mxu0 %v1526
      %v2120 = vpop.f32.mrb[0].mxu0
      %v2121 = vadd.f32 %v1665, %v2120
      %v2122 = vpop.f32.mrb[0].mxu0
      %v2123 = vadd.f32 %v1669, %v2122
      %2124 = vmatprep.mubr.f32.mxu0 0.0
      %2125 = vmatmul.mubr.f32.gmra.mrb[0].mxu0 %v1527
      %v2126 = vpop.f32.mrb[0].mxu0
      %v2127 = vadd.f32 %v1665, %v2126
      %v2128 = vpop.f32.mrb[0].mxu0
      %v2129 = vadd.f32 %v1669, %v2128
      %2130 = vmatprep.mubr.f32.mxu0 0.0
      %2131 = vmatmul.mubr.f32.gmra.mrb[0].mxu0 %v1528
      %v2132 = vpop.f32.mrb[0].mxu0
      %v2133 = vadd.f32 %v1665, %v2132
      %v2134 = vpop.f32.mrb[0].mxu0
      %v2135 = vadd.f32 %v1669, %v2134
      %2136 = vmatprep.mubr.f32.mxu0 0.0
      %2137 = vmatmul.mubr.f32.gmra.mrb[0].mxu0 %v1529
      %v2138 = vpop.f32.mrb[0].mxu0
      %v2139 = vadd.f32 %v1665, %v2138
      %v2140 = vpop.f32.mrb[0].mxu0
      %v2141 = vadd.f32 %v1669, %v2140
      %2142 = vmatprep.mubr.f32.mxu0 0.0
      %2143 = vmatmul.mubr.f32.gmra.mrb[0].mxu0 %v1530
      %v2144 = vpop.f32.mrb[0].mxu0
      %v2145 = vadd.f32 %v1665, %v2144
      %v2146 = vpop.f32.mrb[0].mxu0
      %v2147 = vadd.f32 %v1669, %v2146
      %2148 = vmatprep.mubr.f32.mxu0 0.0
      %2149 = vmatmul.mubr.f32.gmra.mrb[0].mxu0 %v1531
      %v2150 = vpop.f32.mrb[0].mxu0
      %v2151 = vadd.f32 %v1665, %v2150
      %v2152 = vpop.f32.mrb[0].mxu0
      %v2153 = vadd.f32 %v1669, %v2152
      %2154 = vmatprep.mubr.f32.mxu0 0.0
      %2155 = vmatmul.mubr.f32.gmra.mrb[0].mxu0 %v1532
      %v2156 = vpop.f32.mrb[0].mxu0
      %v2157 = vadd.f32 %v1665, %v2156
      %v2158 = vpop.f32.mrb[0].mxu0
      %v2159 = vadd.f32 %v1669, %v2158
      %2160 = vmatprep.mubr.f32.mxu0 0.0
      %2161 = vmatmul.mubr.f32.gmra.mrb[0].mxu0 %v1533
      %v2162 = vpop.f32.mrb[0].mxu0
      %v2163 = vadd.f32 %v1665, %v2162
      %v2164 = vpop.f32.mrb[0].mxu0
      %v2165 = vadd.f32 %v1669, %v2164
      %2166 = vmatprep.mubr.f32.mxu0 0.0
      %2167 = vmatmul.mubr.f32.gmra.mrb[0].mxu0 %v1534
      %v2168 = vpop.f32.mrb[0].mxu0
      %v2169 = vadd.f32 %v1665, %v2168
      %v2170 = vpop.f32.mrb[0].mxu0
      %v2171 = vadd.f32 %v1669, %v2170
      %2172 = vmatprep.mubr.f32.mxu0 0.0
      %2173 = vmatmul.mubr.f32.gmra.mrb[0].mxu0 %v1535
      %v2174 = vpop.f32.mrb[0].mxu0
      %v2175 = vadd.f32 %v1665, %v2174
      %v2176 = vpop.f32.mrb[0].mxu0
      %v2177 = vadd.f32 %v1669, %v2176
      %2178 = vmatprep.mubr.f32.mxu0 0.0
      %2179 = vmatmul.mubr.f32.gmra.mrb[0].mxu0 %v1536
      %v2180 = vpop.f32.mrb[0].mxu0
      %v2181 = vadd.f32 %v1665, %v2180
      %v2182 = vpop.f32.mrb[0].mxu0
      %v2183 = vadd.f32 %v1669, %v2182
      %2184 = vmatprep.mubr.f32.mxu0 0.0
      %2185 = vmatmul.mubr.f32.gmra.mrb[0].mxu0 %v1537
      %v2186 = vpop.f32.mrb[0].mxu0
      %v2187 = vadd.f32 %v1665, %v2186
      %v2188 = vpop.f32.mrb[0].mxu0
      %v2189 = vadd.f32 %v1669, %v2188
      %2190 = vmatprep.mubr.f32.mxu0 0.0
      %2191 = vmatmul.mubr.f32.gmra.mrb[0].mxu0 %v1538
      %v2192 = vpop.f32.mrb[0].mxu0
      %v2193 = vadd.f32 %v1665, %v2192
      %v2194 = vpop.f32.mrb[0].mxu0
      %v2195 = vadd.f32 %v1669, %v2194
      %2196 = vmatprep.mubr.f32.mxu0 0.0
      %2197 = vmatmul.mubr.f32.gmra.mrb[0].mxu0 %v1539
      %v2198 = vpop.f32.mrb[0].mxu0
      %v2199 = vadd.f32 %v1665, %v2198
      %v2200 = vpop.f32.mrb[0].mxu0
      %v2201 = vadd.f32 %v1669, %v2200
      %2202 = vdwg.mxu0
      %2203 = vmatprep.subr.mxu0 %v1545
      %2204 = vmatpush1.msra.mxu0 %v1544
      %2205 = vmatprep.subr.mxu0 %v1552
      %2206 = vmatpush1.msra.mxu0 %v1551
      %2207 = vmatprep.subr.mxu0 %v1559
      %2208 = vmatpush1.msra.mxu0 %v1558
      %2209 = vmatprep.subr.mxu0 %v1566
      %2210 = vmatpush1.msra.mxu0 %v1565
      %2211 = vmatprep.subr.mxu0 %v1573
      %2212 = vmatpush1.msra.mxu0 %v1572
      %2213 = vmatprep.subr.mxu0 %v1580
      %2214 = vmatpush1.msra.mxu0 %v1579
      %2215 = vmatprep.subr.mxu0 %v1587
      %2216 = vmatpush1.msra.mxu0 %v1586
      %2217 = vmatprep.subr.mxu0 %v1594
      %2218 = vmatpush1.msra.mxu0 %v1593
      %2219 = vmatprep.subr.mxu0 %v1601
      %2220 = vmatpush1.msra.mxu0 %v1600
      %2221 = vmatprep.subr.mxu0 %v1608
      %2222 = vmatpush1.msra.mxu0 %v1607
      %2223 = vmatprep.subr.mxu0 %v1615
      %2224 = vmatpush1.msra.mxu0 %v1614
      %2225 = vmatprep.subr.mxu0 %v1622
      %2226 = vmatpush1.msra.mxu0 %v1621
      %2227 = vmatprep.subr.mxu0 %v1629
      %2228 = vmatpush1.msra.mxu0 %v1628
      %2229 = vmatprep.subr.mxu0 %v1636
      %2230 = vmatpush1.msra.mxu0 %v1635
      %2231 = vmatprep.subr.mxu0 %v1643
      %2232 = vmatpush1.msra.mxu0 %v1642
      %2233 = vmatprep.subr.mxu0 %v1650
      %2234 = vmatpush1.msra.mxu0 %v1649
      %2235 = vmatprep.subr.mxu0 0.0
      %2236 = vmatpush1.msra.mxu0 0.0
      %2237 = vmatprep.subr.mxu0 0.0
      %2238 = vmatpush1.msra.mxu0 0.0
      %2239 = vmatprep.subr.mxu0 0.0
      %2240 = vmatpush1.msra.mxu0 0.0
      %2241 = vmatprep.subr.mxu0 0.0
      %2242 = vmatpush1.msra.mxu0 0.0
      %2243 = vmatprep.subr.mxu0 0.0
      %2244 = vmatpush1.msra.mxu0 0.0
      %2245 = vmatprep.subr.mxu0 0.0
      %2246 = vmatpush1.msra.mxu0 0.0
      %2247 = vmatprep.subr.mxu0 0.0
      %2248 = vmatpush1.msra.mxu0 0.0
      %2249 = vmatprep.subr.mxu0 0.0
      %2250 = vmatpush1.msra.mxu0 0.0
      %2251 = vmatprep.subr.mxu0 0.0
      %2252 = vmatpush1.msra.mxu0 0.0
      %2253 = vmatprep.subr.mxu0 0.0
      %2254 = vmatpush1.msra.mxu0 0.0
      %2255 = vmatprep.subr.mxu0 0.0
      %2256 = vmatpush1.msra.mxu0 0.0
      %2257 = vmatprep.subr.mxu0 0.0
      %2258 = vmatpush1.msra.mxu0 0.0
      %2259 = vmatprep.subr.mxu0 0.0
      %2260 = vmatpush1.msra.mxu0 0.0
      %2261 = vmatprep.subr.mxu0 0.0
      %2262 = vmatpush1.msra.mxu0 0.0
      %2263 = vmatprep.subr.mxu0 0.0
      %2264 = vmatpush1.msra.mxu0 0.0
      %2265 = vmatprep.subr.mxu0 0.0
      %2266 = vmatpush1.msra.mxu0 0.0
      %2267 = vmatprep.mubr.f32.mxu0 0.0
      %2268 = vmatmul.mubr.f32.gmra.mrb[0].mxu0 %v1508
      %v2269 = vpop.f32.mrb[0].mxu0
      %v2270 = vadd.f32 %v1673, %v2269
      %v2271 = vpop.f32.mrb[0].mxu0
      %v2272 = vadd.f32 %v1677, %v2271
      %2273 = vmatprep.mubr.f32.mxu0 0.0
      %2274 = vmatmul.mubr.f32.gmra.mrb[0].mxu0 %v1509
      %v2275 = vpop.f32.mrb[0].mxu0
      %v2276 = vadd.f32 %v1673, %v2275
      %v2277 = vpop.f32.mrb[0].mxu0
      %v2278 = vadd.f32 %v1677, %v2277
      %2279 = vmatprep.mubr.f32.mxu0 0.0
      %2280 = vmatmul.mubr.f32.gmra.mrb[0].mxu0 %v1510
      %v2281 = vpop.f32.mrb[0].mxu0
      %v2282 = vadd.f32 %v1673, %v2281
      %v2283 = vpop.f32.mrb[0].mxu0
      %v2284 = vadd.f32 %v1677, %v2283
      %2285 = vmatprep.mubr.f32.mxu0 0.0
      %2286 = vmatmul.mubr.f32.gmra.mrb[0].mxu0 %v1511
      %v2287 = vpop.f32.mrb[0].mxu0
      %v2288 = vadd.f32 %v1673, %v2287
      %v2289 = vpop.f32.mrb[0].mxu0
      %v2290 = vadd.f32 %v1677, %v2289
      %2291 = vmatprep.mubr.f32.mxu0 0.0
      %2292 = vmatmul.mubr.f32.gmra.mrb[0].mxu0 %v1512
      %v2293 = vpop.f32.mrb[0].mxu0
      %v2294 = vadd.f32 %v1673, %v2293
      %v2295 = vpop.f32.mrb[0].mxu0
      %v2296 = vadd.f32 %v1677, %v2295
      %2297 = vmatprep.mubr.f32.mxu0 0.0
      %2298 = vmatmul.mubr.f32.gmra.mrb[0].mxu0 %v1513
      %v2299 = vpop.f32.mrb[0].mxu0
      %v2300 = vadd.f32 %v1673, %v2299
      %v2301 = vpop.f32.mrb[0].mxu0
      %v2302 = vadd.f32 %v1677, %v2301
      %2303 = vmatprep.mubr.f32.mxu0 0.0
      %2304 = vmatmul.mubr.f32.gmra.mrb[0].mxu0 %v1514
      %v2305 = vpop.f32.mrb[0].mxu0
      %v2306 = vadd.f32 %v1673, %v2305
      %v2307 = vpop.f32.mrb[0].mxu0
      %v2308 = vadd.f32 %v1677, %v2307
      %2309 = vmatprep.mubr.f32.mxu0 0.0
      %2310 = vmatmul.mubr.f32.gmra.mrb[0].mxu0 %v1515
      %v2311 = vpop.f32.mrb[0].mxu0
      %v2312 = vadd.f32 %v1673, %v2311
      %v2313 = vpop.f32.mrb[0].mxu0
      %v2314 = vadd.f32 %v1677, %v2313
      %2315 = vmatprep.mubr.f32.mxu0 0.0
      %2316 = vmatmul.mubr.f32.gmra.mrb[0].mxu0 %v1516
      %v2317 = vpop.f32.mrb[0].mxu0
      %v2318 = vadd.f32 %v1673, %v2317
      %v2319 = vpop.f32.mrb[0].mxu0
      %v2320 = vadd.f32 %v1677, %v2319
      %2321 = vmatprep.mubr.f32.mxu0 0.0
      %2322 = vmatmul.mubr.f32.gmra.mrb[0].mxu0 %v1517
      %v2323 = vpop.f32.mrb[0].mxu0
      %v2324 = vadd.f32 %v1673, %v2323
      %v2325 = vpop.f32.mrb[0].mxu0
      %v2326 = vadd.f32 %v1677, %v2325
      %2327 = vmatprep.mubr.f32.mxu0 0.0
      %2328 = vmatmul.mubr.f32.gmra.mrb[0].mxu0 %v1518
      %v2329 = vpop.f32.mrb[0].mxu0
      %v2330 = vadd.f32 %v1673, %v2329
      %v2331 = vpop.f32.mrb[0].mxu0
      %v2332 = vadd.f32 %v1677, %v2331
      %2333 = vmatprep.mubr.f32.mxu0 0.0
      %2334 = vmatmul.mubr.f32.gmra.mrb[0].mxu0 %v1519
      %v2335 = vpop.f32.mrb[0].mxu0
      %v2336 = vadd.f32 %v1673, %v2335
      %v2337 = vpop.f32.mrb[0].mxu0
      %v2338 = vadd.f32 %v1677, %v2337
      %2339 = vmatprep.mubr.f32.mxu0 0.0
      %2340 = vmatmul.mubr.f32.gmra.mrb[0].mxu0 %v1520
      %v2341 = vpop.f32.mrb[0].mxu0
      %v2342 = vadd.f32 %v1673, %v2341
      %v2343 = vpop.f32.mrb[0].mxu0
      %v2344 = vadd.f32 %v1677, %v2343
      %2345 = vmatprep.mubr.f32.mxu0 0.0
      %2346 = vmatmul.mubr.f32.gmra.mrb[0].mxu0 %v1521
      %v2347 = vpop.f32.mrb[0].mxu0
      %v2348 = vadd.f32 %v1673, %v2347
      %v2349 = vpop.f32.mrb[0].mxu0
      %v2350 = vadd.f32 %v1677, %v2349
      %2351 = vmatprep.mubr.f32.mxu0 0.0
      %2352 = vmatmul.mubr.f32.gmra.mrb[0].mxu0 %v1522
      %v2353 = vpop.f32.mrb[0].mxu0
      %v2354 = vadd.f32 %v1673, %v2353
      %v2355 = vpop.f32.mrb[0].mxu0
      %v2356 = vadd.f32 %v1677, %v2355
      %2357 = vmatprep.mubr.f32.mxu0 0.0
      %2358 = vmatmul.mubr.f32.gmra.mrb[0].mxu0 %v1523
      %v2359 = vpop.f32.mrb[0].mxu0
      %v2360 = vadd.f32 %v1673, %v2359
      %v2361 = vpop.f32.mrb[0].mxu0
      %v2362 = vadd.f32 %v1677, %v2361
      %2363 = vmatprep.mubr.f32.mxu0 0.0
      %2364 = vmatmul.mubr.f32.gmra.mrb[0].mxu0 %v1524
      %v2365 = vpop.f32.mrb[0].mxu0
      %v2366 = vadd.f32 %v1673, %v2365
      %v2367 = vpop.f32.mrb[0].mxu0
      %v2368 = vadd.f32 %v1677, %v2367
      %2369 = vmatprep.mubr.f32.mxu0 0.0
      %2370 = vmatmul.mubr.f32.gmra.mrb[0].mxu0 %v1525
      %v2371 = vpop.f32.mrb[0].mxu0
      %v2372 = vadd.f32 %v1673, %v2371
      %v2373 = vpop.f32.mrb[0].mxu0
      %v2374 = vadd.f32 %v1677, %v2373
      %2375 = vmatprep.mubr.f32.mxu0 0.0
      %2376 = vmatmul.mubr.f32.gmra.mrb[0].mxu0 %v1526
      %v2377 = vpop.f32.mrb[0].mxu0
      %v2378 = vadd.f32 %v1673, %v2377
      %v2379 = vpop.f32.mrb[0].mxu0
      %v2380 = vadd.f32 %v1677, %v2379
      %2381 = vmatprep.mubr.f32.mxu0 0.0
      %2382 = vmatmul.mubr.f32.gmra.mrb[0].mxu0 %v1527
      %v2383 = vpop.f32.mrb[0].mxu0
      %v2384 = vadd.f32 %v1673, %v2383
      %v2385 = vpop.f32.mrb[0].mxu0
      %v2386 = vadd.f32 %v1677, %v2385
      %2387 = vmatprep.mubr.f32.mxu0 0.0
      %2388 = vmatmul.mubr.f32.gmra.mrb[0].mxu0 %v1528
      %v2389 = vpop.f32.mrb[0].mxu0
      %v2390 = vadd.f32 %v1673, %v2389
      %v2391 = vpop.f32.mrb[0].mxu0
      %v2392 = vadd.f32 %v1677, %v2391
      %2393 = vmatprep.mubr.f32.mxu0 0.0
      %2394 = vmatmul.mubr.f32.gmra.mrb[0].mxu0 %v1529
      %v2395 = vpop.f32.mrb[0].mxu0
      %v2396 = vadd.f32 %v1673, %v2395
      %v2397 = vpop.f32.mrb[0].mxu0
      %v2398 = vadd.f32 %v1677, %v2397
      %2399 = vmatprep.mubr.f32.mxu0 0.0
      %2400 = vmatmul.mubr.f32.gmra.mrb[0].mxu0 %v1530
      %v2401 = vpop.f32.mrb[0].mxu0
      %v2402 = vadd.f32 %v1673, %v2401
      %v2403 = vpop.f32.mrb[0].mxu0
      %v2404 = vadd.f32 %v1677, %v2403
      %2405 = vmatprep.mubr.f32.mxu0 0.0
      %2406 = vmatmul.mubr.f32.gmra.mrb[0].mxu0 %v1531
      %v2407 = vpop.f32.mrb[0].mxu0
      %v2408 = vadd.f32 %v1673, %v2407
      %v2409 = vpop.f32.mrb[0].mxu0
      %v2410 = vadd.f32 %v1677, %v2409
      %2411 = vmatprep.mubr.f32.mxu0 0.0
      %2412 = vmatmul.mubr.f32.gmra.mrb[0].mxu0 %v1532
      %v2413 = vpop.f32.mrb[0].mxu0
      %v2414 = vadd.f32 %v1673, %v2413
      %v2415 = vpop.f32.mrb[0].mxu0
      %v2416 = vadd.f32 %v1677, %v2415
      %2417 = vmatprep.mubr.f32.mxu0 0.0
      %2418 = vmatmul.mubr.f32.gmra.mrb[0].mxu0 %v1533
      %v2419 = vpop.f32.mrb[0].mxu0
      %v2420 = vadd.f32 %v1673, %v2419
      %v2421 = vpop.f32.mrb[0].mxu0
      %v2422 = vadd.f32 %v1677, %v2421
      %2423 = vmatprep.mubr.f32.mxu0 0.0
      %2424 = vmatmul.mubr.f32.gmra.mrb[0].mxu0 %v1534
      %v2425 = vpop.f32.mrb[0].mxu0
      %v2426 = vadd.f32 %v1673, %v2425
      %v2427 = vpop.f32.mrb[0].mxu0
      %v2428 = vadd.f32 %v1677, %v2427
      %2429 = vmatprep.mubr.f32.mxu0 0.0
      %2430 = vmatmul.mubr.f32.gmra.mrb[0].mxu0 %v1535
      %v2431 = vpop.f32.mrb[0].mxu0
      %v2432 = vadd.f32 %v1673, %v2431
      %v2433 = vpop.f32.mrb[0].mxu0
      %v2434 = vadd.f32 %v1677, %v2433
      %2435 = vmatprep.mubr.f32.mxu0 0.0
      %2436 = vmatmul.mubr.f32.gmra.mrb[0].mxu0 %v1536
      %v2437 = vpop.f32.mrb[0].mxu0
      %v2438 = vadd.f32 %v1673, %v2437
      %v2439 = vpop.f32.mrb[0].mxu0
      %v2440 = vadd.f32 %v1677, %v2439
      %2441 = vmatprep.mubr.f32.mxu0 0.0
      %2442 = vmatmul.mubr.f32.gmra.mrb[0].mxu0 %v1537
      %v2443 = vpop.f32.mrb[0].mxu0
      %v2444 = vadd.f32 %v1673, %v2443
      %v2445 = vpop.f32.mrb[0].mxu0
      %v2446 = vadd.f32 %v1677, %v2445
      %2447 = vmatprep.mubr.f32.mxu0 0.0
      %2448 = vmatmul.mubr.f32.gmra.mrb[0].mxu0 %v1538
      %v2449 = vpop.f32.mrb[0].mxu0
      %v2450 = vadd.f32 %v1673, %v2449
      %v2451 = vpop.f32.mrb[0].mxu0
      %v2452 = vadd.f32 %v1677, %v2451
      %2453 = vmatprep.mubr.f32.mxu0 0.0
      %2454 = vmatmul.mubr.f32.gmra.mrb[0].mxu0 %v1539
      %v2455 = vpop.f32.mrb[0].mxu0
      %v2456 = vadd.f32 %v1673, %v2455
      %v2457 = vpop.f32.mrb[0].mxu0
      %v2458 = vadd.f32 %v1677, %v2457
      %2459 = vdwg.mxu0
      %2460 = vmatprep.subr.mxu0 0.0
      %2461 = vmatpush1.msra.mxu0 %v1546
      %2462 = vmatprep.subr.mxu0 0.0
      %2463 = vmatpush1.msra.mxu0 %v1553
      %2464 = vmatprep.subr.mxu0 0.0
      %2465 = vmatpush1.msra.mxu0 %v1560
      %2466 = vmatprep.subr.mxu0 0.0
      %2467 = vmatpush1.msra.mxu0 %v1567
      %2468 = vmatprep.subr.mxu0 0.0
      %2469 = vmatpush1.msra.mxu0 %v1574
      %2470 = vmatprep.subr.mxu0 0.0
      %2471 = vmatpush1.msra.mxu0 %v1581
      %2472 = vmatprep.subr.mxu0 0.0
      %2473 = vmatpush1.msra.mxu0 %v1588
      %2474 = vmatprep.subr.mxu0 0.0
      %2475 = vmatpush1.msra.mxu0 %v1595
      %2476 = vmatprep.subr.mxu0 0.0
      %2477 = vmatpush1.msra.mxu0 %v1602
      %2478 = vmatprep.subr.mxu0 0.0
      %2479 = vmatpush1.msra.mxu0 %v1609
      %2480 = vmatprep.subr.mxu0 0.0
      %2481 = vmatpush1.msra.mxu0 %v1616
      %2482 = vmatprep.subr.mxu0 0.0
      %2483 = vmatpush1.msra.mxu0 %v1623
      %2484 = vmatprep.subr.mxu0 0.0
      %2485 = vmatpush1.msra.mxu0 %v1630
      %2486 = vmatprep.subr.mxu0 0.0
      %2487 = vmatpush1.msra.mxu0 %v1637
      %2488 = vmatprep.subr.mxu0 0.0
      %2489 = vmatpush1.msra.mxu0 %v1644
      %2490 = vmatprep.subr.mxu0 0.0
      %2491 = vmatpush1.msra.mxu0 %v1651
      %2492 = vmatprep.subr.mxu0 0.0
      %2493 = vmatpush1.msra.mxu0 0.0
      %2494 = vmatprep.subr.mxu0 0.0
      %2495 = vmatpush1.msra.mxu0 0.0
      %2496 = vmatprep.subr.mxu0 0.0
      %2497 = vmatpush1.msra.mxu0 0.0
      %2498 = vmatprep.subr.mxu0 0.0
      %2499 = vmatpush1.msra.mxu0 0.0
      %2500 = vmatprep.subr.mxu0 0.0
      %2501 = vmatpush1.msra.mxu0 0.0
      %2502 = vmatprep.subr.mxu0 0.0
      %2503 = vmatpush1.msra.mxu0 0.0
      %2504 = vmatprep.subr.mxu0 0.0
      %2505 = vmatpush1.msra.mxu0 0.0
      %2506 = vmatprep.subr.mxu0 0.0
      %2507 = vmatpush1.msra.mxu0 0.0
      %2508 = vmatprep.subr.mxu0 0.0
      %2509 = vmatpush1.msra.mxu0 0.0
      %2510 = vmatprep.subr.mxu0 0.0
      %2511 = vmatpush1.msra.mxu0 0.0
      %2512 = vmatprep.subr.mxu0 0.0
      %2513 = vmatpush1.msra.mxu0 0.0
      %2514 = vmatprep.subr.mxu0 0.0
      %2515 = vmatpush1.msra.mxu0 0.0
      %2516 = vmatprep.subr.mxu0 0.0
      %2517 = vmatpush1.msra.mxu0 0.0
      %2518 = vmatprep.subr.mxu0 0.0
      %2519 = vmatpush1.msra.mxu0 0.0
      %2520 = vmatprep.subr.mxu0 0.0
      %2521 = vmatpush1.msra.mxu0 0.0
      %2522 = vmatprep.subr.mxu0 0.0
      %2523 = vmatpush1.msra.mxu0 0.0
      %2524 = vmatprep.mubr.f32.mxu0 0.0
      %2525 = vmatmul.mubr.f32.gmra.mrb[0].mxu0 %v1508
      %v2526 = vpop.f32.mrb[0].mxu0
      %v2527 = vadd.f32 %v1681, %v2526
      %v2528 = vpop.f32.mrb[0].mxu0
      %2529 = vmatprep.mubr.f32.mxu0 0.0
      %2530 = vmatmul.mubr.f32.gmra.mrb[0].mxu0 %v1509
      %v2531 = vpop.f32.mrb[0].mxu0
      %v2532 = vadd.f32 %v1681, %v2531
      %v2533 = vpop.f32.mrb[0].mxu0
      %2534 = vmatprep.mubr.f32.mxu0 0.0
      %2535 = vmatmul.mubr.f32.gmra.mrb[0].mxu0 %v1510
      %v2536 = vpop.f32.mrb[0].mxu0
      %v2537 = vadd.f32 %v1681, %v2536
      %v2538 = vpop.f32.mrb[0].mxu0
      %2539 = vmatprep.mubr.f32.mxu0 0.0
      %2540 = vmatmul.mubr.f32.gmra.mrb[0].mxu0 %v1511
      %v2541 = vpop.f32.mrb[0].mxu0
      %v2542 = vadd.f32 %v1681, %v2541
      %v2543 = vpop.f32.mrb[0].mxu0
      %2544 = vmatprep.mubr.f32.mxu0 0.0
      %2545 = vmatmul.mubr.f32.gmra.mrb[0].mxu0 %v1512
      %v2546 = vpop.f32.mrb[0].mxu0
      %v2547 = vadd.f32 %v1681, %v2546
      %v2548 = vpop.f32.mrb[0].mxu0
      %2549 = vmatprep.mubr.f32.mxu0 0.0
      %2550 = vmatmul.mubr.f32.gmra.mrb[0].mxu0 %v1513
      %v2551 = vpop.f32.mrb[0].mxu0
      %v2552 = vadd.f32 %v1681, %v2551
      %v2553 = vpop.f32.mrb[0].mxu0
      %2554 = vmatprep.mubr.f32.mxu0 0.0
      %2555 = vmatmul.mubr.f32.gmra.mrb[0].mxu0 %v1514
      %v2556 = vpop.f32.mrb[0].mxu0
      %v2557 = vadd.f32 %v1681, %v2556
      %v2558 = vpop.f32.mrb[0].mxu0
      %2559 = vmatprep.mubr.f32.mxu0 0.0
      %2560 = vmatmul.mubr.f32.gmra.mrb[0].mxu0 %v1515
      %v2561 = vpop.f32.mrb[0].mxu0
      %v2562 = vadd.f32 %v1681, %v2561
      %v2563 = vpop.f32.mrb[0].mxu0
      %2564 = vmatprep.mubr.f32.mxu0 0.0
      %2565 = vmatmul.mubr.f32.gmra.mrb[0].mxu0 %v1516
      %v2566 = vpop.f32.mrb[0].mxu0
      %v2567 = vadd.f32 %v1681, %v2566
      %v2568 = vpop.f32.mrb[0].mxu0
      %2569 = vmatprep.mubr.f32.mxu0 0.0
      %2570 = vmatmul.mubr.f32.gmra.mrb[0].mxu0 %v1517
      %v2571 = vpop.f32.mrb[0].mxu0
      %v2572 = vadd.f32 %v1681, %v2571
      %v2573 = vpop.f32.mrb[0].mxu0
      %2574 = vmatprep.mubr.f32.mxu0 0.0
      %2575 = vmatmul.mubr.f32.gmra.mrb[0].mxu0 %v1518
      %v2576 = vpop.f32.mrb[0].mxu0
      %v2577 = vadd.f32 %v1681, %v2576
      %v2578 = vpop.f32.mrb[0].mxu0
      %2579 = vmatprep.mubr.f32.mxu0 0.0
      %2580 = vmatmul.mubr.f32.gmra.mrb[0].mxu0 %v1519
      %v2581 = vpop.f32.mrb[0].mxu0
      %v2582 = vadd.f32 %v1681, %v2581
      %v2583 = vpop.f32.mrb[0].mxu0
      %2584 = vmatprep.mubr.f32.mxu0 0.0
      %2585 = vmatmul.mubr.f32.gmra.mrb[0].mxu0 %v1520
      %v2586 = vpop.f32.mrb[0].mxu0
      %v2587 = vadd.f32 %v1681, %v2586
      %v2588 = vpop.f32.mrb[0].mxu0
      %2589 = vmatprep.mubr.f32.mxu0 0.0
      %2590 = vmatmul.mubr.f32.gmra.mrb[0].mxu0 %v1521
      %v2591 = vpop.f32.mrb[0].mxu0
      %v2592 = vadd.f32 %v1681, %v2591
      %v2593 = vpop.f32.mrb[0].mxu0
      %2594 = vmatprep.mubr.f32.mxu0 0.0
      %2595 = vmatmul.mubr.f32.gmra.mrb[0].mxu0 %v1522
      %v2596 = vpop.f32.mrb[0].mxu0
      %v2597 = vadd.f32 %v1681, %v2596
      %v2598 = vpop.f32.mrb[0].mxu0
      %2599 = vmatprep.mubr.f32.mxu0 0.0
      %2600 = vmatmul.mubr.f32.gmra.mrb[0].mxu0 %v1523
      %v2601 = vpop.f32.mrb[0].mxu0
      %v2602 = vadd.f32 %v1681, %v2601
      %v2603 = vpop.f32.mrb[0].mxu0
      %2604 = vmatprep.mubr.f32.mxu0 0.0
      %2605 = vmatmul.mubr.f32.gmra.mrb[0].mxu0 %v1524
      %v2606 = vpop.f32.mrb[0].mxu0
      %v2607 = vadd.f32 %v1681, %v2606
      %v2608 = vpop.f32.mrb[0].mxu0
      %2609 = vmatprep.mubr.f32.mxu0 0.0
      %2610 = vmatmul.mubr.f32.gmra.mrb[0].mxu0 %v1525
      %v2611 = vpop.f32.mrb[0].mxu0
      %v2612 = vadd.f32 %v1681, %v2611
      %v2613 = vpop.f32.mrb[0].mxu0
      %2614 = vmatprep.mubr.f32.mxu0 0.0
      %2615 = vmatmul.mubr.f32.gmra.mrb[0].mxu0 %v1526
      %v2616 = vpop.f32.mrb[0].mxu0
      %v2617 = vadd.f32 %v1681, %v2616
      %v2618 = vpop.f32.mrb[0].mxu0
      %2619 = vmatprep.mubr.f32.mxu0 0.0
      %2620 = vmatmul.mubr.f32.gmra.mrb[0].mxu0 %v1527
      %v2621 = vpop.f32.mrb[0].mxu0
      %v2622 = vadd.f32 %v1681, %v2621
      %v2623 = vpop.f32.mrb[0].mxu0
      %2624 = vmatprep.mubr.f32.mxu0 0.0
      %2625 = vmatmul.mubr.f32.gmra.mrb[0].mxu0 %v1528
      %v2626 = vpop.f32.mrb[0].mxu0
      %v2627 = vadd.f32 %v1681, %v2626
      %v2628 = vpop.f32.mrb[0].mxu0
      %2629 = vmatprep.mubr.f32.mxu0 0.0
      %2630 = vmatmul.mubr.f32.gmra.mrb[0].mxu0 %v1529
      %v2631 = vpop.f32.mrb[0].mxu0
      %v2632 = vadd.f32 %v1681, %v2631
      %v2633 = vpop.f32.mrb[0].mxu0
      %2634 = vmatprep.mubr.f32.mxu0 0.0
      %2635 = vmatmul.mubr.f32.gmra.mrb[0].mxu0 %v1530
      %v2636 = vpop.f32.mrb[0].mxu0
      %v2637 = vadd.f32 %v1681, %v2636
      %v2638 = vpop.f32.mrb[0].mxu0
      %2639 = vmatprep.mubr.f32.mxu0 0.0
      %2640 = vmatmul.mubr.f32.gmra.mrb[0].mxu0 %v1531
      %v2641 = vpop.f32.mrb[0].mxu0
      %v2642 = vadd.f32 %v1681, %v2641
      %v2643 = vpop.f32.mrb[0].mxu0
      %2644 = vmatprep.mubr.f32.mxu0 0.0
      %2645 = vmatmul.mubr.f32.gmra.mrb[0].mxu0 %v1532
      %v2646 = vpop.f32.mrb[0].mxu0
      %v2647 = vadd.f32 %v1681, %v2646
      %v2648 = vpop.f32.mrb[0].mxu0
      %2649 = vmatprep.mubr.f32.mxu0 0.0
      %2650 = vmatmul.mubr.f32.gmra.mrb[0].mxu0 %v1533
      %v2651 = vpop.f32.mrb[0].mxu0
      %v2652 = vadd.f32 %v1681, %v2651
      %v2653 = vpop.f32.mrb[0].mxu0
      %2654 = vmatprep.mubr.f32.mxu0 0.0
      %2655 = vmatmul.mubr.f32.gmra.mrb[0].mxu0 %v1534
      %v2656 = vpop.f32.mrb[0].mxu0
      %v2657 = vadd.f32 %v1681, %v2656
      %v2658 = vpop.f32.mrb[0].mxu0
      %2659 = vmatprep.mubr.f32.mxu0 0.0
      %2660 = vmatmul.mubr.f32.gmra.mrb[0].mxu0 %v1535
      %v2661 = vpop.f32.mrb[0].mxu0
      %v2662 = vadd.f32 %v1681, %v2661
      %v2663 = vpop.f32.mrb[0].mxu0
      %2664 = vmatprep.mubr.f32.mxu0 0.0
      %2665 = vmatmul.mubr.f32.gmra.mrb[0].mxu0 %v1536
      %v2666 = vpop.f32.mrb[0].mxu0
      %v2667 = vadd.f32 %v1681, %v2666
      %v2668 = vpop.f32.mrb[0].mxu0
      %2669 = vmatprep.mubr.f32.mxu0 0.0
      %2670 = vmatmul.mubr.f32.gmra.mrb[0].mxu0 %v1537
      %v2671 = vpop.f32.mrb[0].mxu0
      %v2672 = vadd.f32 %v1681, %v2671
      %v2673 = vpop.f32.mrb[0].mxu0
      %2674 = vmatprep.mubr.f32.mxu0 0.0
      %2675 = vmatmul.mubr.f32.gmra.mrb[0].mxu0 %v1538
      %v2676 = vpop.f32.mrb[0].mxu0
      %v2677 = vadd.f32 %v1681, %v2676
      %v2678 = vpop.f32.mrb[0].mxu0
      %2679 = vmatprep.mubr.f32.mxu0 0.0
      %2680 = vmatmul.mubr.f32.gmra.mrb[0].mxu0 %v1539
      %v2681 = vpop.f32.mrb[0].mxu0
      %v2682 = vadd.f32 %v1681, %v2681
      %v2683 = vpop.f32.mrb[0].mxu0
      %2684 = vdwg.mxu0
      %v2685 = vtanh.pop %v1756
      %v2686 = vtanh.pop %v1758
      %v2687 = vtanh.pop %v2013
      %v2688 = vtanh.pop %v2015
      %v2689 = vtanh.pop %v2270
      %v2690 = vtanh.pop %v2272
      %v2691 = vtanh.pop %v2527
      %v2692 = vtanh.pop %v1762
      %v2693 = vtanh.pop %v1764
      %v2694 = vtanh.pop %v2019
      %v2695 = vtanh.pop %v2021
      %v2696 = vtanh.pop %v2276
      %v2697 = vtanh.pop %v2278
      %v2698 = vtanh.pop %v2532
      %v2699 = vtanh.pop %v1768
      %v2700 = vtanh.pop %v1770
      %v2701 = vtanh.pop %v2025
      %v2702 = vtanh.pop %v2027
      %v2703 = vtanh.pop %v2282
      %v2704 = vtanh.pop %v2284
      %v2705 = vtanh.pop %v2537
      %v2706 = vtanh.pop %v1774
      %v2707 = vtanh.pop %v1776
      %v2708 = vtanh.pop %v2031
      %v2709 = vtanh.pop %v2033
      %v2710 = vtanh.pop %v2288
      %v2711 = vtanh.pop %v2290
      %v2712 = vtanh.pop %v2542
      %v2713 = vtanh.pop %v1780
      %v2714 = vtanh.pop %v1782
      %v2715 = vtanh.pop %v2037
      %v2716 = vtanh.pop %v2039
      %v2717 = vtanh.pop %v2294
      %v2718 = vtanh.pop %v2296
      %v2719 = vtanh.pop %v2547
      %v2720 = vtanh.pop %v1786
      %v2721 = vtanh.pop %v1788
      %v2722 = vtanh.pop %v2043
      %v2723 = vtanh.pop %v2045
      %v2724 = vtanh.pop %v2300
      %v2725 = vtanh.pop %v2302
      %v2726 = vtanh.pop %v2552
      %v2727 = vtanh.pop %v1792
      %v2728 = vtanh.pop %v1794
      %v2729 = vtanh.pop %v2049
      %v2730 = vtanh.pop %v2051
      %v2731 = vtanh.pop %v2306
      %v2732 = vtanh.pop %v2308
      %v2733 = vtanh.pop %v2557
      %v2734 = vtanh.pop %v1798
      %v2735 = vtanh.pop %v1800
      %v2736 = vtanh.pop %v2055
      %v2737 = vtanh.pop %v2057
      %v2738 = vtanh.pop %v2312
      %v2739 = vtanh.pop %v2314
      %v2740 = vtanh.pop %v2562
      %v2741 = vtanh.pop %v1804
      %v2742 = vtanh.pop %v1806
      %v2743 = vtanh.pop %v2061
      %v2744 = vtanh.pop %v2063
      %v2745 = vtanh.pop %v2318
      %v2746 = vtanh.pop %v2320
      %v2747 = vtanh.pop %v2567
      %v2748 = vtanh.pop %v1810
      %v2749 = vtanh.pop %v1812
      %v2750 = vtanh.pop %v2067
      %v2751 = vtanh.pop %v2069
      %v2752 = vtanh.pop %v2324
      %v2753 = vtanh.pop %v2326
      %v2754 = vtanh.pop %v2572
      %v2755 = vtanh.pop %v1816
      %v2756 = vtanh.pop %v1818
      %v2757 = vtanh.pop %v2073
      %v2758 = vtanh.pop %v2075
      %v2759 = vtanh.pop %v2330
      %v2760 = vtanh.pop %v2332
      %v2761 = vtanh.pop %v2577
      %v2762 = vtanh.pop %v1822
      %v2763 = vtanh.pop %v1824
      %v2764 = vtanh.pop %v2079
      %v2765 = vtanh.pop %v2081
      %v2766 = vtanh.pop %v2336
      %v2767 = vtanh.pop %v2338
      %v2768 = vtanh.pop %v2582
      %v2769 = vtanh.pop %v1828
      %v2770 = vtanh.pop %v1830
      %v2771 = vtanh.pop %v2085
      %v2772 = vtanh.pop %v2087
      %v2773 = vtanh.pop %v2342
      %v2774 = vtanh.pop %v2344
      %v2775 = vtanh.pop %v2587
      %v2776 = vtanh.pop %v1834
      %v2777 = vtanh.pop %v1836
      %v2778 = vtanh.pop %v2091
      %v2779 = vtanh.pop %v2093
      %v2780 = vtanh.pop %v2348
      %v2781 = vtanh.pop %v2350
      %v2782 = vtanh.pop %v2592
      %v2783 = vtanh.pop %v1840
      %v2784 = vtanh.pop %v1842
      %v2785 = vtanh.pop %v2097
      %v2786 = vtanh.pop %v2099
      %v2787 = vtanh.pop %v2354
      %v2788 = vtanh.pop %v2356
      %v2789 = vtanh.pop %v2597
      %v2790 = vtanh.pop %v1846
      %v2791 = vtanh.pop %v1848
      %v2792 = vtanh.pop %v2103
      %v2793 = vtanh.pop %v2105
      %v2794 = vtanh.pop %v2360
      %v2795 = vtanh.pop %v2362
      %v2796 = vtanh.pop %v2602
      %v2797 = vtanh.pop %v1852
      %v2798 = vtanh.pop %v1854
      %v2799 = vtanh.pop %v2109
      %v2800 = vtanh.pop %v2111
      %v2801 = vtanh.pop %v2366
      %v2802 = vtanh.pop %v2368
      %v2803 = vtanh.pop %v2607
      %v2804 = vtanh.pop %v1858
      %v2805 = vtanh.pop %v1860
      %v2806 = vtanh.pop %v2115
      %v2807 = vtanh.pop %v2117
      %v2808 = vtanh.pop %v2372
      %v2809 = vtanh.pop %v2374
      %v2810 = vtanh.pop %v2612
      %v2811 = vtanh.pop %v1864
      %v2812 = vtanh.pop %v1866
      %v2813 = vtanh.pop %v2121
      %v2814 = vtanh.pop %v2123
      %v2815 = vtanh.pop %v2378
      %v2816 = vtanh.pop %v2380
      %v2817 = vtanh.pop %v2617
      %v2818 = vtanh.pop %v1870
      %v2819 = vtanh.pop %v1872
      %v2820 = vtanh.pop %v2127
      %v2821 = vtanh.pop %v2129
      %v2822 = vtanh.pop %v2384
      %v2823 = vtanh.pop %v2386
      %v2824 = vtanh.pop %v2622
      %v2825 = vtanh.pop %v1876
      %v2826 = vtanh.pop %v1878
      %v2827 = vtanh.pop %v2133
      %v2828 = vtanh.pop %v2135
      %v2829 = vtanh.pop %v2390
      %v2830 = vtanh.pop %v2392
      %v2831 = vtanh.pop %v2627
      %v2832 = vtanh.pop %v1882
      %v2833 = vtanh.pop %v1884
      %v2834 = vtanh.pop %v2139
      %v2835 = vtanh.pop %v2141
      %v2836 = vtanh.pop %v2396
      %v2837 = vtanh.pop %v2398
      %v2838 = vtanh.pop %v2632
      %v2839 = vtanh.pop %v1888
      %v2840 = vtanh.pop %v1890
      %v2841 = vtanh.pop %v2145
      %v2842 = vtanh.pop %v2147
      %v2843 = vtanh.pop %v2402
      %v2844 = vtanh.pop %v2404
      %v2845 = vtanh.pop %v2637
      %v2846 = vtanh.pop %v1894
      %v2847 = vtanh.pop %v1896
      %v2848 = vtanh.pop %v2151
      %v2849 = vtanh.pop %v2153
      %v2850 = vtanh.pop %v2408
      %v2851 = vtanh.pop %v2410
      %v2852 = vtanh.pop %v2642
      %v2853 = vtanh.pop %v1900
      %v2854 = vtanh.pop %v1902
      %v2855 = vtanh.pop %v2157
      %v2856 = vtanh.pop %v2159
      %v2857 = vtanh.pop %v2414
      %v2858 = vtanh.pop %v2416
      %v2859 = vtanh.pop %v2647
      %v2860 = vtanh.pop %v1906
      %v2861 = vtanh.pop %v1908
      %v2862 = vtanh.pop %v2163
      %v2863 = vtanh.pop %v2165
      %v2864 = vtanh.pop %v2420
      %v2865 = vtanh.pop %v2422
      %v2866 = vtanh.pop %v2652
      %v2867 = vtanh.pop %v1912
      %v2868 = vtanh.pop %v1914
      %v2869 = vtanh.pop %v2169
      %v2870 = vtanh.pop %v2171
      %v2871 = vtanh.pop %v2426
      %v2872 = vtanh.pop %v2428
      %v2873 = vtanh.pop %v2657
      %v2874 = vtanh.pop %v1918
      %v2875 = vtanh.pop %v1920
      %v2876 = vtanh.pop %v2175
      %v2877 = vtanh.pop %v2177
      %v2878 = vtanh.pop %v2432
      %v2879 = vtanh.pop %v2434
      %v2880 = vtanh.pop %v2662
      %v2881 = vtanh.pop %v1924
      %v2882 = vtanh.pop %v1926
      %v2883 = vtanh.pop %v2181
      %v2884 = vtanh.pop %v2183
      %v2885 = vtanh.pop %v2438
      %v2886 = vtanh.pop %v2440
      %v2887 = vtanh.pop %v2667
      %v2888 = vtanh.pop %v1930
      %v2889 = vtanh.pop %v1932
      %v2890 = vtanh.pop %v2187
      %v2891 = vtanh.pop %v2189
      %v2892 = vtanh.pop %v2444
      %v2893 = vtanh.pop %v2446
      %v2894 = vtanh.pop %v2672
      %v2895 = vtanh.pop %v1936
      %v2896 = vtanh.pop %v1938
      %v2897 = vtanh.pop %v2193
      %v2898 = vtanh.pop %v2195
      %v2899 = vtanh.pop %v2450
      %v2900 = vtanh.pop %v2452
      %v2901 = vtanh.pop %v2677
      %v2902 = vtanh.pop %v1942
      %v2903 = vtanh.pop %v1944
      %v2904 = vtanh.pop %v2199
      %v2905 = vtanh.pop %v2201
      %v2906 = vtanh.pop %v2456
      %v2907 = vtanh.pop %v2458
      %v2908 = vtanh.pop %v2682
      %2909 = vst [vmem:[%s231] sm:$0xff] %v2685
      %2910 = vst [vmem:[%s231 + $0x8] sm:$0xff] %v2686
      %2911 = vst [vmem:[%s231 + $0x10] sm:$0xff] %v2687
      %2912 = vst [vmem:[%s231 + $0x18] sm:$0xff] %v2688
      %2913 = vst [vmem:[%s231 + $0x20] sm:$0xff] %v2689
      %2914 = vst [vmem:[%s231 + $0x28] sm:$0xff] %v2690
      %2915 = vst [vmem:[%s231 + $0x30] sm:$0xff] %v2691
      %2916 = vst [vmem:[%s231 + $0x38] sm:$0xff] %v2692
      %2917 = vst [vmem:[%s231 + $0x40] sm:$0xff] %v2693
      %2918 = vst [vmem:[%s231 + $0x48] sm:$0xff] %v2694
      %2919 = vst [vmem:[%s231 + $0x50] sm:$0xff] %v2695
      %2920 = vst [vmem:[%s231 + $0x58] sm:$0xff] %v2696
      %2921 = vst [vmem:[%s231 + $0x60] sm:$0xff] %v2697
      %2922 = vst [vmem:[%s231 + $0x68] sm:$0xff] %v2698
      %2923 = vst [vmem:[%s231 + $0x70] sm:$0xff] %v2699
      %2924 = vst [vmem:[%s231 + $0x78] sm:$0xff] %v2700
      %2925 = vst [vmem:[%s231 + $0x80] sm:$0xff] %v2701
      %2926 = vst [vmem:[%s231 + $0x88] sm:$0xff] %v2702
      %2927 = vst [vmem:[%s231 + $0x90] sm:$0xff] %v2703
      %2928 = vst [vmem:[%s231 + $0x98] sm:$0xff] %v2704
      %2929 = vst [vmem:[%s231 + $0xa0] sm:$0xff] %v2705
      %2930 = vst [vmem:[%s231 + $0xa8] sm:$0xff] %v2706
      %2931 = vst [vmem:[%s231 + $0xb0] sm:$0xff] %v2707
      %2932 = vst [vmem:[%s231 + $0xb8] sm:$0xff] %v2708
      %2933 = vst [vmem:[%s231 + $0xc0] sm:$0xff] %v2709
      %2934 = vst [vmem:[%s231 + $0xc8] sm:$0xff] %v2710
      %2935 = vst [vmem:[%s231 + $0xd0] sm:$0xff] %v2711
      %2936 = vst [vmem:[%s231 + $0xd8] sm:$0xff] %v2712
      %2937 = vst [vmem:[%s231 + $0xe0] sm:$0xff] %v2713
      %2938 = vst [vmem:[%s231 + $0xe8] sm:$0xff] %v2714
      %2939 = vst [vmem:[%s231 + $0xf0] sm:$0xff] %v2715
      %2940 = vst [vmem:[%s231 + $0xf8] sm:$0xff] %v2716
      %2941 = vst [vmem:[%s231 + $0x100] sm:$0xff] %v2717
      %2942 = vst [vmem:[%s231 + $0x108] sm:$0xff] %v2718
      %2943 = vst [vmem:[%s231 + $0x110] sm:$0xff] %v2719
      %2944 = vst [vmem:[%s231 + $0x118] sm:$0xff] %v2720
      %2945 = vst [vmem:[%s231 + $0x120] sm:$0xff] %v2721
      %2946 = vst [vmem:[%s231 + $0x128] sm:$0xff] %v2722
      %2947 = vst [vmem:[%s231 + $0x130] sm:$0xff] %v2723
      %2948 = vst [vmem:[%s231 + $0x138] sm:$0xff] %v2724
      %2949 = vst [vmem:[%s231 + $0x140] sm:$0xff] %v2725
      %2950 = vst [vmem:[%s231 + $0x148] sm:$0xff] %v2726
      %2951 = vst [vmem:[%s231 + $0x150] sm:$0xff] %v2727
      %2952 = vst [vmem:[%s231 + $0x158] sm:$0xff] %v2728
      %2953 = vst [vmem:[%s231 + $0x160] sm:$0xff] %v2729
      %2954 = vst [vmem:[%s231 + $0x168] sm:$0xff] %v2730
      %2955 = vst [vmem:[%s231 + $0x170] sm:$0xff] %v2731
      %2956 = vst [vmem:[%s231 + $0x178] sm:$0xff] %v2732
      %2957 = vst [vmem:[%s231 + $0x180] sm:$0xff] %v2733
      %2958 = vst [vmem:[%s231 + $0x188] sm:$0xff] %v2734
      %2959 = vst [vmem:[%s231 + $0x190] sm:$0xff] %v2735
      %2960 = vst [vmem:[%s231 + $0x198] sm:$0xff] %v2736
      %2961 = vst [vmem:[%s231 + $0x1a0] sm:$0xff] %v2737
      %2962 = vst [vmem:[%s231 + $0x1a8] sm:$0xff] %v2738
      %2963 = vst [vmem:[%s231 + $0x1b0] sm:$0xff] %v2739
      %2964 = vst [vmem:[%s231 + $0x1b8] sm:$0xff] %v2740
      %2965 = vst [vmem:[%s231 + $0x1c0] sm:$0xff] %v2741
      %2966 = vst [vmem:[%s231 + $0x1c8] sm:$0xff] %v2742
      %2967 = vst [vmem:[%s231 + $0x1d0] sm:$0xff] %v2743
      %2968 = vst [vmem:[%s231 + $0x1d8] sm:$0xff] %v2744
      %2969 = vst [vmem:[%s231 + $0x1e0] sm:$0xff] %v2745
      %2970 = vst [vmem:[%s231 + $0x1e8] sm:$0xff] %v2746
      %2971 = vst [vmem:[%s231 + $0x1f0] sm:$0xff] %v2747
      %2972 = vst [vmem:[%s231 + $0x1f8] sm:$0xff] %v2748
      %2973 = vst [vmem:[%s231 + $0x200] sm:$0xff] %v2749
      %2974 = vst [vmem:[%s231 + $0x208] sm:$0xff] %v2750
      %2975 = vst [vmem:[%s231 + $0x210] sm:$0xff] %v2751
      %2976 = vst [vmem:[%s231 + $0x218] sm:$0xff] %v2752
      %2977 = vst [vmem:[%s231 + $0x220] sm:$0xff] %v2753
      %2978 = vst [vmem:[%s231 + $0x228] sm:$0xff] %v2754
      %2979 = vst [vmem:[%s231 + $0x230] sm:$0xff] %v2755
      %2980 = vst [vmem:[%s231 + $0x238] sm:$0xff] %v2756
      %2981 = vst [vmem:[%s231 + $0x240] sm:$0xff] %v2757
      %2982 = vst [vmem:[%s231 + $0x248] sm:$0xff] %v2758
      %2983 = vst [vmem:[%s231 + $0x250] sm:$0xff] %v2759
      %2984 = vst [vmem:[%s231 + $0x258] sm:$0xff] %v2760
      %2985 = vst [vmem:[%s231 + $0x260] sm:$0xff] %v2761
      %2986 = vst [vmem:[%s231 + $0x268] sm:$0xff] %v2762
      %2987 = vst [vmem:[%s231 + $0x270] sm:$0xff] %v2763
      %2988 = vst [vmem:[%s231 + $0x278] sm:$0xff] %v2764
      %2989 = vst [vmem:[%s231 + $0x280] sm:$0xff] %v2765
      %2990 = vst [vmem:[%s231 + $0x288] sm:$0xff] %v2766
      %2991 = vst [vmem:[%s231 + $0x290] sm:$0xff] %v2767
      %2992 = vst [vmem:[%s231 + $0x298] sm:$0xff] %v2768
      %2993 = vst [vmem:[%s231 + $0x2a0] sm:$0xff] %v2769
      %2994 = vst [vmem:[%s231 + $0x2a8] sm:$0xff] %v2770
      %2995 = vst [vmem:[%s231 + $0x2b0] sm:$0xff] %v2771
      %2996 = vst [vmem:[%s231 + $0x2b8] sm:$0xff] %v2772
      %2997 = vst [vmem:[%s231 + $0x2c0] sm:$0xff] %v2773
      %2998 = vst [vmem:[%s231 + $0x2c8] sm:$0xff] %v2774
      %2999 = vst [vmem:[%s231 + $0x2d0] sm:$0xff] %v2775
      %3000 = vst [vmem:[%s231 + $0x2d8] sm:$0xff] %v2776
      %3001 = vst [vmem:[%s231 + $0x2e0] sm:$0xff] %v2777
      %3002 = vst [vmem:[%s231 + $0x2e8] sm:$0xff] %v2778
      %3003 = vst [vmem:[%s231 + $0x2f0] sm:$0xff] %v2779
      %3004 = vst [vmem:[%s231 + $0x2f8] sm:$0xff] %v2780
      %3005 = vst [vmem:[%s231 + $0x300] sm:$0xff] %v2781
      %3006 = vst [vmem:[%s231 + $0x308] sm:$0xff] %v2782
      %3007 = vst [vmem:[%s231 + $0x310] sm:$0xff] %v2783
      %3008 = vst [vmem:[%s231 + $0x318] sm:$0xff] %v2784
      %3009 = vst [vmem:[%s231 + $0x320] sm:$0xff] %v2785
      %3010 = vst [vmem:[%s231 + $0x328] sm:$0xff] %v2786
      %3011 = vst [vmem:[%s231 + $0x330] sm:$0xff] %v2787
      %3012 = vst [vmem:[%s231 + $0x338] sm:$0xff] %v2788
      %3013 = vst [vmem:[%s231 + $0x340] sm:$0xff] %v2789
      %3014 = vst [vmem:[%s231 + $0x348] sm:$0xff] %v2790
      %3015 = vst [vmem:[%s231 + $0x350] sm:$0xff] %v2791
      %3016 = vst [vmem:[%s231 + $0x358] sm:$0xff] %v2792
      %3017 = vst [vmem:[%s231 + $0x360] sm:$0xff] %v2793
      %3018 = vst [vmem:[%s231 + $0x368] sm:$0xff] %v2794
      %3019 = vst [vmem:[%s231 + $0x370] sm:$0xff] %v2795
      %3020 = vst [vmem:[%s231 + $0x378] sm:$0xff] %v2796
      %3021 = vst [vmem:[%s231 + $0x380] sm:$0xff] %v2797
      %3022 = vst [vmem:[%s231 + $0x388] sm:$0xff] %v2798
      %3023 = vst [vmem:[%s231 + $0x390] sm:$0xff] %v2799
      %3024 = vst [vmem:[%s231 + $0x398] sm:$0xff] %v2800
      %3025 = vst [vmem:[%s231 + $0x3a0] sm:$0xff] %v2801
      %3026 = vst [vmem:[%s231 + $0x3a8] sm:$0xff] %v2802
      %3027 = vst [vmem:[%s231 + $0x3b0] sm:$0xff] %v2803
      %3028 = vst [vmem:[%s231 + $0x3b8] sm:$0xff] %v2804
      %3029 = vst [vmem:[%s231 + $0x3c0] sm:$0xff] %v2805
      %3030 = vst [vmem:[%s231 + $0x3c8] sm:$0xff] %v2806
      %3031 = vst [vmem:[%s231 + $0x3d0] sm:$0xff] %v2807
      %3032 = vst [vmem:[%s231 + $0x3d8] sm:$0xff] %v2808
      %3033 = vst [vmem:[%s231 + $0x3e0] sm:$0xff] %v2809
      %3034 = vst [vmem:[%s231 + $0x3e8] sm:$0xff] %v2810
      %3035 = vst [vmem:[%s231 + $0x3f0] sm:$0xff] %v2811
      %3036 = vst [vmem:[%s231 + $0x3f8] sm:$0xff] %v2812
      %3037 = vst [vmem:[%s231 + $0x400] sm:$0xff] %v2813
      %3038 = vst [vmem:[%s231 + $0x408] sm:$0xff] %v2814
      %3039 = vst [vmem:[%s231 + $0x410] sm:$0xff] %v2815
      %3040 = vst [vmem:[%s231 + $0x418] sm:$0xff] %v2816
      %3041 = vst [vmem:[%s231 + $0x420] sm:$0xff] %v2817
      %3042 = vst [vmem:[%s231 + $0x428] sm:$0xff] %v2818
      %3043 = vst [vmem:[%s231 + $0x430] sm:$0xff] %v2819
      %3044 = vst [vmem:[%s231 + $0x438] sm:$0xff] %v2820
      %3045 = vst [vmem:[%s231 + $0x440] sm:$0xff] %v2821
      %3046 = vst [vmem:[%s231 + $0x448] sm:$0xff] %v2822
      %3047 = vst [vmem:[%s231 + $0x450] sm:$0xff] %v2823
      %3048 = vst [vmem:[%s231 + $0x458] sm:$0xff] %v2824
      %3049 = vst [vmem:[%s231 + $0x460] sm:$0xff] %v2825
      %3050 = vst [vmem:[%s231 + $0x468] sm:$0xff] %v2826
      %3051 = vst [vmem:[%s231 + $0x470] sm:$0xff] %v2827
      %3052 = vst [vmem:[%s231 + $0x478] sm:$0xff] %v2828
      %3053 = vst [vmem:[%s231 + $0x480] sm:$0xff] %v2829
      %3054 = vst [vmem:[%s231 + $0x488] sm:$0xff] %v2830
      %3055 = vst [vmem:[%s231 + $0x490] sm:$0xff] %v2831
      %3056 = vst [vmem:[%s231 + $0x498] sm:$0xff] %v2832
      %3057 = vst [vmem:[%s231 + $0x4a0] sm:$0xff] %v2833
      %3058 = vst [vmem:[%s231 + $0x4a8] sm:$0xff] %v2834
      %3059 = vst [vmem:[%s231 + $0x4b0] sm:$0xff] %v2835
      %3060 = vst [vmem:[%s231 + $0x4b8] sm:$0xff] %v2836
      %3061 = vst [vmem:[%s231 + $0x4c0] sm:$0xff] %v2837
      %3062 = vst [vmem:[%s231 + $0x4c8] sm:$0xff] %v2838
      %3063 = vst [vmem:[%s231 + $0x4d0] sm:$0xff] %v2839
      %3064 = vst [vmem:[%s231 + $0x4d8] sm:$0xff] %v2840
      %3065 = vst [vmem:[%s231 + $0x4e0] sm:$0xff] %v2841
      %3066 = vst [vmem:[%s231 + $0x4e8] sm:$0xff] %v2842
      %3067 = vst [vmem:[%s231 + $0x4f0] sm:$0xff] %v2843
      %3068 = vst [vmem:[%s231 + $0x4f8] sm:$0xff] %v2844
      %3069 = vst [vmem:[%s231 + $0x500] sm:$0xff] %v2845
      %3070 = vst [vmem:[%s231 + $0x508] sm:$0xff] %v2846
      %3071 = vst [vmem:[%s231 + $0x510] sm:$0xff] %v2847
      %3072 = vst [vmem:[%s231 + $0x518] sm:$0xff] %v2848
      %3073 = vst [vmem:[%s231 + $0x520] sm:$0xff] %v2849
      %3074 = vst [vmem:[%s231 + $0x528] sm:$0xff] %v2850
      %3075 = vst [vmem:[%s231 + $0x530] sm:$0xff] %v2851
      %3076 = vst [vmem:[%s231 + $0x538] sm:$0xff] %v2852
      %3077 = vst [vmem:[%s231 + $0x540] sm:$0xff] %v2853
      %3078 = vst [vmem:[%s231 + $0x548] sm:$0xff] %v2854
      %3079 = vst [vmem:[%s231 + $0x550] sm:$0xff] %v2855
      %3080 = vst [vmem:[%s231 + $0x558] sm:$0xff] %v2856
      %3081 = vst [vmem:[%s231 + $0x560] sm:$0xff] %v2857
      %3082 = vst [vmem:[%s231 + $0x568] sm:$0xff] %v2858
      %3083 = vst [vmem:[%s231 + $0x570] sm:$0xff] %v2859
      %3084 = vst [vmem:[%s231 + $0x578] sm:$0xff] %v2860
      %3085 = vst [vmem:[%s231 + $0x580] sm:$0xff] %v2861
      %3086 = vst [vmem:[%s231 + $0x588] sm:$0xff] %v2862
      %3087 = vst [vmem:[%s231 + $0x590] sm:$0xff] %v2863
      %3088 = vst [vmem:[%s231 + $0x598] sm:$0xff] %v2864
      %3089 = vst [vmem:[%s231 + $0x5a0] sm:$0xff] %v2865
      %3090 = vst [vmem:[%s231 + $0x5a8] sm:$0xff] %v2866
      %3091 = vst [vmem:[%s231 + $0x5b0] sm:$0xff] %v2867
      %3092 = vst [vmem:[%s231 + $0x5b8] sm:$0xff] %v2868
      %3093 = vst [vmem:[%s231 + $0x5c0] sm:$0xff] %v2869
      %3094 = vst [vmem:[%s231 + $0x5c8] sm:$0xff] %v2870
      %3095 = vst [vmem:[%s231 + $0x5d0] sm:$0xff] %v2871
      %3096 = vst [vmem:[%s231 + $0x5d8] sm:$0xff] %v2872
      %3097 = vst [vmem:[%s231 + $0x5e0] sm:$0xff] %v2873
      %3098 = vst [vmem:[%s231 + $0x5e8] sm:$0xff] %v2874
      %3099 = vst [vmem:[%s231 + $0x5f0] sm:$0xff] %v2875
      %3100 = vst [vmem:[%s231 + $0x5f8] sm:$0xff] %v2876
      %3101 = vst [vmem:[%s231 + $0x600] sm:$0xff] %v2877
      %3102 = vst [vmem:[%s231 + $0x608] sm:$0xff] %v2878
      %3103 = vst [vmem:[%s231 + $0x610] sm:$0xff] %v2879
      %3104 = vst [vmem:[%s231 + $0x618] sm:$0xff] %v2880
      %3105 = vst [vmem:[%s231 + $0x620] sm:$0xff] %v2881
      %3106 = vst [vmem:[%s231 + $0x628] sm:$0xff] %v2882
      %3107 = vst [vmem:[%s231 + $0x630] sm:$0xff] %v2883
      %3108 = vst [vmem:[%s231 + $0x638] sm:$0xff] %v2884
      %3109 = vst [vmem:[%s231 + $0x640] sm:$0xff] %v2885
      %3110 = vst [vmem:[%s231 + $0x648] sm:$0xff] %v2886
      %3111 = vst [vmem:[%s231 + $0x650] sm:$0xff] %v2887
      %3112 = vst [vmem:[%s231 + $0x658] sm:$0xff] %v2888
      %3113 = vst [vmem:[%s231 + $0x660] sm:$0xff] %v2889
      %3114 = vst [vmem:[%s231 + $0x668] sm:$0xff] %v2890
      %3115 = vst [vmem:[%s231 + $0x670] sm:$0xff] %v2891
      %3116 = vst [vmem:[%s231 + $0x678] sm:$0xff] %v2892
      %3117 = vst [vmem:[%s231 + $0x680] sm:$0xff] %v2893
      %3118 = vst [vmem:[%s231 + $0x688] sm:$0xff] %v2894
      %3119 = vst [vmem:[%s231 + $0x690] sm:$0xff] %v2895
      %3120 = vst [vmem:[%s231 + $0x698] sm:$0xff] %v2896
      %3121 = vst [vmem:[%s231 + $0x6a0] sm:$0xff] %v2897
      %3122 = vst [vmem:[%s231 + $0x6a8] sm:$0xff] %v2898
      %3123 = vst [vmem:[%s231 + $0x6b0] sm:$0xff] %v2899
      %3124 = vst [vmem:[%s231 + $0x6b8] sm:$0xff] %v2900
      %3125 = vst [vmem:[%s231 + $0x6c0] sm:$0xff] %v2901
      %3126 = vst [vmem:[%s231 + $0x6c8] sm:$0xff] %v2902
      %3127 = vst [vmem:[%s231 + $0x6d0] sm:$0xff] %v2903
      %3128 = vst [vmem:[%s231 + $0x6d8] sm:$0xff] %v2904
      %3129 = vst [vmem:[%s231 + $0x6e0] sm:$0xff] %v2905
      %3130 = vst [vmem:[%s231 + $0x6e8] sm:$0xff] %v2906
      %3131 = vst [vmem:[%s231 + $0x6f0] sm:$0xff] %v2907
      %3132 = vst [vmem:[%s231 + $0x6f8] sm:$0xff] %v2908
      %s3133 = smul.u32 32, %s16
      %p3134 = scmp.lt.s32.totalorder %s3133, 63
      %s3135 = scalar_select %p3134, %s3133, 63
      %s3136 = smul.addr %s3135, 7
      %s3137 = smul.addr %s3136, 8
      %s3138 = scalar_lea.vmem %s5, %s3137
      // Predicated region
      $region41: #{generator_forward.1} parent=39 // pred_check
        %p3139 = pneg %p144
      $region42: #{generator_forward.1} parent=39 // pred_check_branch
        %3141 = sbr.rel (%p3139) target = $region44
      $region43: #{generator_forward.1} parent=39 // pred_region
        %s3142 = smul.u32 32, %s16
      $region44: #{generator_forward.1} parent=39 // pred_fallthru
        _
    $region40: #{generator_forward.1} parent=5 // pred_fallthru
      _
    %p3143 = scmp.le.s32.totalorder 2, %s11
    // Predicated region
    $region45: #{generator_forward.1} parent=5 // pred_check
      %p3144 = pneg %p3143
    $region46: #{generator_forward.1} parent=5 // pred_check_branch
      %3146 = sbr.rel (%p3144) target = $region48
    $region47: #{generator_forward.1} parent=5 // pred_region
      %s3147 = ssub.s32 %s11, 2
      // Predicated region
      $region49: #{generator_forward.1} parent=47 // pred_check
        %p3148 = pneg %p150
      $region50: #{generator_forward.1} parent=47 // pred_check_branch
        %3150 = sbr.rel (%p3148) target = $region52
      $region51: #{generator_forward.1} parent=47 // pred_region
        %s3151 = smul.u32 32, %s17
        %p3152 = scmp.lt.s32.totalorder %s3151, 63
        %s3153 = scalar_select %p3152, %s3151, 63
        %s3154 = smul.addr %s3153, 7
        %s3155 = smul.addr %s3154, 8
        %s3156 = scalar_lea.vmem %s5, %s3155
      $region52: #{generator_forward.1} parent=47 // pred_fallthru
        _
    $region48: #{generator_forward.1} parent=5 // pred_fallthru
      _
  $region6: #{generator_forward.1} parent=0 // loop_footer
    %s15 = sadd.s32 1, %s11
  $region7: #{generator_forward.1} parent=0 // loop_footer_branch
    %10 = sbr.rel target = $region3
  $region8: #{generator_forward.1} parent=0 // loop_exit
    _

</llo_original>
